<compile_context>
chip_gen: v5e
topology: v5e:2x2
jax: 0.10.0
libtpu: 0.0.40
codegen_flags: <defaults>
</compile_context>

<pallas_src>
import numpy as np
import jax
import jax.numpy as jnp
from jax.experimental import pallas as pl
from jax.experimental.pallas import tpu as pltpu


# ---------------------------------------------------------------------------
# Pure-JAX window helpers — used only by the reference implementation.
# ---------------------------------------------------------------------------
def im2win(x, H, W, H_sp, W_sp, num_heads):
    """(B, L, C) -> (B*nW, num_heads, N, head_dim), N = H_sp*W_sp (torch-equivalent)."""
    B, L, C = x.shape
    x = jnp.transpose(x, (0, 2, 1)).reshape(B, C, H, W)
    x = x.reshape(B, C, H // H_sp, H_sp, W // W_sp, W_sp)
    x = jnp.transpose(x, (0, 2, 4, 3, 5, 1)).reshape(-1, H_sp * W_sp, C)
    x = x.reshape(-1, H_sp * W_sp, num_heads, C // num_heads)
    return jnp.transpose(x, (0, 2, 1, 3))


def windows2img(xw, H_sp, W_sp, H, W):
    """(B*nW, N, C) -> (B, H, W, C)."""
    B = xw.shape[0] // ((H * W) // (H_sp * W_sp))
    x = xw.reshape(B, H // H_sp, W // W_sp, H_sp, W_sp, -1)
    return jnp.transpose(x, (0, 1, 3, 2, 4, 5)).reshape(B, H, W, -1)


# ---------------------------------------------------------------------------
# DynamicPosBias (residual=False) — tiny MLP over (2*H_sp-1)*(2*W_sp-1) points.
# Parameter-side glue (runs once per forward, not the hot path) -> plain JAX.
# ---------------------------------------------------------------------------
def layer_norm(x, g, b, eps=1e-5):
    mu = jnp.mean(x, axis=-1, keepdims=True)
    var = jnp.mean((x - mu) ** 2, axis=-1, keepdims=True)
    return (x - mu) / jnp.sqrt(var + eps) * g + b


def dynamic_pos_bias(params, biases):
    x = biases @ params["proj_w"].T + params["proj_b"]
    for name in ("pos1", "pos2", "pos3"):
        p = params[name]
        x = layer_norm(x, p["ln_g"], p["ln_b"])
        x = jnp.maximum(x, 0.0)
        x = x @ p["w"].T + p["b"]
    return x  # (num_pos, num_heads)


# ---------------------------------------------------------------------------
# Block-size selection with honest VMEM accounting (generation-aware).
# ---------------------------------------------------------------------------
def _round_up(x, m):
    return ((x + m - 1) // m) * m


def _tpu_cores_and_block_budget():
    """Returns (TensorCores per chip, per-step VMEM budget in bytes).

    v7x: 2 TCs, only 64 MiB VMEM per TC -> smaller per-step budget and keep the
    grid splittable in two.  v5e/v6e: single TC (grid is a serial loop, not a
    parallel launch) and 128 MiB VMEM -> larger blocks, no min-grid constraint."""
    try:
        kind = jax.devices()[0].device_kind.lower()
    except Exception:  # pragma: no cover - defensive, e.g. no devices yet
        kind = ""
    if "v7" in kind or "7x" in kind:
        return 2, 8 * 1024 * 1024
    return 1, 12 * 1024 * 1024


def _estimate_step_vmem_bytes(wins, N, C, num_heads, D, in_itemsize):
    """Per-grid-step VMEM estimate for `wins` windows, including:
    double-buffered q/k/v/out blocks (minor dim lane-padded to 128), f32 softmax
    intermediates (s/e, ~2 heads of lifetime overlap), per-head f32 outputs kept
    alive until the concatenate, bf16 matmul operand copies, and the resident
    (double-buffered) bias block."""
    c_pad = _round_up(C, 128)
    n_pad = _round_up(N, 128)
    d_pad = _round_up(D, 128)
    io = 2 * 4 * wins * N * c_pad * in_itemsize          # q/k/v/out, double-buffered
    smax = 2 * 2 * wins * N * n_pad * 4                  # s and e (f32), ~2 heads live
    houts = num_heads * wins * N * d_pad * 4             # per-head outputs (f32)
    ops = wins * N * (3 * d_pad + n_pad) * 2             # bf16 q/k/v/e copies, one head
    bias = 2 * num_heads * N * n_pad * 4                 # resident bias block
    return io + smax + houts + ops + bias


def _pick_hb(R, nWw, N, C, D, num_heads, in_itemsize, *, budget, num_cores):
    """Largest divisor `hb` of R whose per-step footprint fits `budget`.
    On multi-core chips prefer divisors whose grid splits evenly across cores."""
    divisors = [d for d in range(1, R + 1) if R % d == 0]
    feasible = [d for d in divisors
                if _estimate_step_vmem_bytes(d, N, C, num_heads, D,
                                             in_itemsize) <= budget]
    if not feasible:
        # Even a single window-row exceeds the budget; fall back to hb=1 and let
        # the raised vmem_limit_bytes absorb it.
        return 1
    if num_cores > 1:
        pref = [d for d in feasible
                if (R // d) * nWw >= num_cores
                and ((R // d) * nWw) % num_cores == 0]
        if pref:
            return max(pref)
    return max(feasible)


# ---------------------------------------------------------------------------
# Pallas kernel: batched per-window multi-head attention
# ---------------------------------------------------------------------------
def window_attention_pallas(q, k, v, bias, *, scale, num_heads,
                            matmul_dtype=jnp.bfloat16):
    """q, k, v: (R, H_sp, nWw, W_sp, C) float32, R = B * nWh.
    bias: (num_heads, N, N) float32, N = H_sp * W_sp.
    Returns the attention output in the same (R, H_sp, nWw, W_sp, C) layout with
    heads merged back into C (caller just reshapes to (B, H, W, C))."""
    R, H_sp, nWw, W_sp, C = q.shape
    N = H_sp * W_sp
    D = C // num_heads
    num_cores, budget = _tpu_cores_and_block_budget()
    hb = _pick_hb(R, nWw, N, C, D, num_heads, q.dtype.itemsize,
                  budget=budget, num_cores=num_cores)

    def kernel(b_ref, q_ref, k_ref, v_ref, o_ref):
        # Refs are (hb, H_sp, W_sp, C): the nWw axis is squeezed by the BlockSpec,
        # and merging (H_sp, W_sp) -> N is layout-free (W_sp == sublane tile).
        qb = q_ref[...].reshape(hb, N, C) * scale                # f32
        kb = k_ref[...].reshape(hb, N, C)
        vb = v_ref[...].reshape(hb, N, C)
        bias_all = b_ref[...]                                    # (heads, N, N) f32

        # Heads stay as a small unrolled loop on purpose: Mosaic's dot_general
        # takes a single leading batch dim, and splitting C = heads*D in-kernel
        # would need lane-relayout reshapes/transposes.  Each per-head einsum is
        # still batched over the hb-window batch -> back-to-back MXU issues.
        head_outs = []
        for h in range(num_heads):
            qh = qb[:, :, h * D:(h + 1) * D].astype(matmul_dtype)
            kh = kb[:, :, h * D:(h + 1) * D].astype(matmul_dtype)
            vh = vb[:, :, h * D:(h + 1) * D].astype(matmul_dtype)
            s = jnp.einsum("wqd,wkd->wqk", qh, kh,
                           preferred_element_type=jnp.float32)   # (hb, N, N) f32
            s = s + bias_all[h][None]
            # Softmax reductions strictly in f32 (v5e has no bf16 VPU/EUP).
            m = jnp.max(s, axis=-1, keepdims=True)
            e = jnp.exp(s - m)
            denom = jnp.sum(e, axis=-1, keepdims=True)           # (hb, N, 1) f32
            oh = jnp.einsum("wqk,wkd->wqd", e.astype(matmul_dtype), vh,
                            preferred_element_type=jnp.float32)  # (hb, N, D) f32
            # Deferred softmax normalization: scale AFTER P@V (hb*N*D VPU mults
            # instead of hb*N*N), reciprocal on the EUP slot (~free).
            head_outs.append(oh * pl.reciprocal(denom, approx=True))
        # Heads merged back into C (lane-minor), already in output window layout.
        out = jnp.concatenate(head_outs, axis=-1)                # (hb, N, C)
        o_ref[...] = out.reshape(hb, H_sp, W_sp, C).astype(o_ref.dtype)

    win_spec = pl.BlockSpec((hb, H_sp, None, W_sp, C),
                            lambda i, j: (i, 0, j, 0, 0))
    bias_spec = pl.BlockSpec((num_heads, N, N), lambda i, j: (0, 0, 0))

    return pl.pallas_call(
        kernel,
        out_shape=jax.ShapeDtypeStruct(q.shape, q.dtype),
        grid_spec=pltpu.PrefetchScalarGridSpec(
            num_scalar_prefetch=0,
            grid=(R // hb, nWw),
            in_specs=[bias_spec, win_spec, win_spec, win_spec],
            out_specs=win_spec,
        ),
        compiler_params=pltpu.CompilerParams(
            dimension_semantics=("parallel", "parallel"),
            vmem_limit_bytes=32 * 1024 * 1024),
    )(bias, q, k, v)


# ---------------------------------------------------------------------------
# Full WindowAttention forward
# ---------------------------------------------------------------------------
class WindowAttentionJAX:
    def __init__(self, dim, idx, split_size=(8, 8), num_heads=2,
                 qk_scale=None, position_bias=True,
                 matmul_dtype=jnp.bfloat16, key=None):
        self.dim = dim
        self.num_heads = num_heads
        self.position_bias = position_bias
        self.matmul_dtype = matmul_dtype
        head_dim = dim // num_heads
        self.scale = qk_scale or head_dim ** (-0.5)
        if idx == 0:
            H_sp, W_sp = split_size[0], split_size[1]
        elif idx == 1:
            W_sp, H_sp = split_size[0], split_size[1]
        else:
            raise ValueError("ERROR MODE")
        self.H_sp, self.W_sp = H_sp, W_sp

        # --- DynamicPosBias(dim // 4, num_heads, residual=False) parameters ---
        pos_in_dim = dim // 4
        self.pos_dim = pos_in_dim // 4
        key = key if key is not None else jax.random.PRNGKey(0)
        ks = jax.random.split(key, 8)

        def lin(kk, fan_in, fan_out):
            return 0.05 * jax.random.normal(kk, (fan_out, fan_in), jnp.float32)

        self.pos_params = {
            "proj_w": lin(ks[0], 2, self.pos_dim),
            "proj_b": 0.05 * jax.random.normal(ks[1], (self.pos_dim,), jnp.float32),
            "pos1": {"ln_g": jnp.ones((self.pos_dim,), jnp.float32),
                     "ln_b": jnp.zeros((self.pos_dim,), jnp.float32),
                     "w": lin(ks[2], self.pos_dim, self.pos_dim),
                     "b": 0.05 * jax.random.normal(ks[3], (self.pos_dim,), jnp.float32)},
            "pos2": {"ln_g": jnp.ones((self.pos_dim,), jnp.float32),
                     "ln_b": jnp.zeros((self.pos_dim,), jnp.float32),
                     "w": lin(ks[4], self.pos_dim, self.pos_dim),
                     "b": 0.05 * jax.random.normal(ks[5], (self.pos_dim,), jnp.float32)},
            "pos3": {"ln_g": jnp.ones((self.pos_dim,), jnp.float32),
                     "ln_b": jnp.zeros((self.pos_dim,), jnp.float32),
                     "w": lin(ks[6], self.pos_dim, num_heads),
                     "b": 0.05 * jax.random.normal(ks[7], (num_heads,), jnp.float32)},
        }

        # rpe_biases and relative_position_index buffers ('ij' meshgrid, as torch).
        pbh = np.arange(1 - H_sp, H_sp)
        pbw = np.arange(1 - W_sp, W_sp)
        biases = np.stack(np.meshgrid(pbh, pbw, indexing="ij"))
        self.rpe_biases = jnp.asarray(
            biases.reshape(2, -1).T.astype(np.float32))           # (num_pos, 2)

        coords = np.stack(np.meshgrid(np.arange(H_sp), np.arange(W_sp),
                                      indexing="ij"))              # (2, H_sp, W_sp)
        cf = coords.reshape(2, -1)
        rel = (cf[:, :, None] - cf[:, None, :]).transpose(1, 2, 0)
        rel[:, :, 0] += H_sp - 1
        rel[:, :, 1] += W_sp - 1
        rel[:, :, 0] *= 2 * W_sp - 1
        self.relative_position_index = jnp.asarray(rel.sum(-1))    # (N, N)

    def _pos_bias(self, N):
        if self.position_bias:
            pos = dynamic_pos_bias(self.pos_params, self.rpe_biases)   # (num_pos, heads)
            rpb = pos[self.relative_position_index.reshape(-1)]
            rpb = rpb.reshape(N, N, self.num_heads)
            return jnp.transpose(rpb, (2, 0, 1)).astype(jnp.float32)   # (heads, N, N)
        return jnp.zeros((self.num_heads, N, N), jnp.float32)

    def __call__(self, qkv, H, W, mask=None):
        # TODO(synk): the optional attention `mask` branch of the PyTorch module
        # is not wired into the kernel (not exercised by the module defaults).
        assert mask is None
        q, k, v = qkv[0], qkv[1], qkv[2]
        B, L, C = q.shape
        assert L == H * W, "flatten img_tokens has wrong size"
        H_sp, W_sp = self.H_sp, self.W_sp
        assert H % H_sp == 0 and W % W_sp == 0
        nWh, nWw = H // H_sp, W // W_sp
        N = H_sp * W_sp

        # Free reshapes — the actual window gather is done by the BlockSpec DMA.
        def to_win_layout(x):
            return x.reshape(B * nWh, H_sp, nWw, W_sp, C)

        qw, kw, vw = to_win_layout(q), to_win_layout(k), to_win_layout(v)
        rpb = self._pos_bias(N)

        out = window_attention_pallas(qw, kw, vw, rpb, scale=self.scale,
                                      num_heads=self.num_heads,
                                      matmul_dtype=self.matmul_dtype)
        return out.reshape(B, H, W, C)     # free reshape back to image layout

    def reference(self, qkv, H, W):
        """Pure-JAX reference (mirrors the PyTorch forward) for correctness checks."""
        q, k, v = qkv[0], qkv[1], qkv[2]
        B, L, C = q.shape
        N = self.H_sp * self.W_sp
        qw = im2win(q, H, W, self.H_sp, self.W_sp, self.num_heads) * self.scale
        kw = im2win(k, H, W, self.H_sp, self.W_sp, self.num_heads)
        vw = im2win(v, H, W, self.H_sp, self.W_sp, self.num_heads)
        attn = jnp.einsum("whqd,whkd->whqk", qw, kw)
        attn = attn + self._pos_bias(N)[None]
        attn = jax.nn.softmax(attn, axis=-1)
        out = jnp.einsum("whqk,whkd->whqd", attn, vw)
        out = jnp.transpose(out, (0, 2, 1, 3)).reshape(-1, N, C)
        return windows2img(out, self.H_sp, self.W_sp, H, W)


if __name__ == "__main__":
    # Small, module-consistent shapes: dim=32, heads=2, split 8x8, image 16x16.
    B, H, W, C = 2, 16, 16, 32
    num_heads = 2
    key = jax.random.PRNGKey(0)
    k_qkv, k_params = jax.random.split(key)
    qkv = jax.random.normal(k_qkv, (3, B, H * W, C), jnp.float32)

    # Deployed path: bf16 MXU inputs, f32 accumulation / softmax reductions.
    attn = WindowAttentionJAX(dim=C, idx=0, split_size=(8, 8),
                              num_heads=num_heads, key=k_params)
    fwd = jax.jit(attn.__call__, static_argnums=(1, 2))
    out = jax.block_until_ready(fwd(qkv, H, W))
    ref = jax.block_until_ready(attn.reference(qkv, H, W))
    assert out.shape == (B, H, W, C)
    # Tolerance covers bf16-rounded MXU inputs (f32 accumulation, typ. max err
    # ~5e-3 at these magnitudes) plus the approx (EUP) softmax reciprocal.
    assert jnp.allclose(out, ref, atol=3e-2, rtol=3e-2), "bf16 path mismatch vs reference"

    # Logic check of the same kernel with exact f32 matmuls (tight tolerance,
    # only the approx reciprocal differs from the pure-JAX reference).
    attn_f32 = WindowAttentionJAX(dim=C, idx=0, split_size=(8, 8),
                                  num_heads=num_heads, key=k_params,
                                  matmul_dtype=jnp.float32)
    out_f32 = jax.block_until_ready(
        jax.jit(attn_f32.__call__, static_argnums=(1, 2))(qkv, H, W))
    assert jnp.allclose(out_f32, ref, atol=2e-3, rtol=2e-3), "f32 path mismatch vs reference"
    print("KERNEL_OK")
</pallas_src>

<mosaic_0001>
module attributes {stable_mosaic.version = 11 : i64} {
  func.func @kernel(%arg0: i32, %arg1: i32, %arg2: memref<2x64x64xf32, #tpu.memory_space<vmem>>, %arg3: memref<4x8x1x8x32xf32, #tpu.memory_space<vmem>>, %arg4: memref<4x8x1x8x32xf32, #tpu.memory_space<vmem>>, %arg5: memref<4x8x1x8x32xf32, #tpu.memory_space<vmem>>, %arg6: memref<4x8x1x8x32xf32, #tpu.memory_space<vmem>>) attributes {dimension_semantics = [#tpu.dimension_semantics<parallel>, #tpu.dimension_semantics<parallel>], iteration_bounds = array<i64: 1, 2>, scalar_prefetch = 0 : i64, scratch_operands = 0 : i64, tpu.core_type = #tpu.core_type<tc>, window_params = [{pipeline_mode = #tpu.pipeline_mode<synchronous>, transform_indices = @transform_0, window_bounds = array<i64: 2, 64, 64>}, {transform_indices = @transform_1, window_bounds = array<i64: 4, 8, 1, 8, 32>}, {transform_indices = @transform_2, window_bounds = array<i64: 4, 8, 1, 8, 32>}, {transform_indices = @transform_3, window_bounds = array<i64: 4, 8, 1, 8, 32>}, {transform_indices = @transform_4, window_bounds = array<i64: 4, 8, 1, 8, 32>}]} {
    %c0 = arith.constant 0 : index
    %c0_0 = arith.constant 0 : index
    %c0_1 = arith.constant 0 : index
    %c0_2 = arith.constant 0 : index
    %c0_3 = arith.constant 0 : index
    %0 = vector.load %arg3[%c0, %c0_0, %c0_1, %c0_2, %c0_3] : memref<4x8x1x8x32xf32, #tpu.memory_space<vmem>>, vector<4x8x1x8x32xf32>
    %1 = vector.shape_cast %0 : vector<4x8x1x8x32xf32> to vector<4x8x8x32xf32>
    %2 = vector.shape_cast %1 : vector<4x8x8x32xf32> to vector<4x64x32xf32>
    %cst = arith.constant 2.500000e-01 : f32
    %3 = vector.broadcast %cst : f32 to vector<4x64x32xf32>
    %4 = arith.mulf %2, %3 : vector<4x64x32xf32>
    %c0_4 = arith.constant 0 : index
    %c0_5 = arith.constant 0 : index
    %c0_6 = arith.constant 0 : index
    %c0_7 = arith.constant 0 : index
    %c0_8 = arith.constant 0 : index
    %5 = vector.load %arg4[%c0_4, %c0_5, %c0_6, %c0_7, %c0_8] : memref<4x8x1x8x32xf32, #tpu.memory_space<vmem>>, vector<4x8x1x8x32xf32>
    %6 = vector.shape_cast %5 : vector<4x8x1x8x32xf32> to vector<4x8x8x32xf32>
    %7 = vector.shape_cast %6 : vector<4x8x8x32xf32> to vector<4x64x32xf32>
    %c0_9 = arith.constant 0 : index
    %c0_10 = arith.constant 0 : index
    %c0_11 = arith.constant 0 : index
    %c0_12 = arith.constant 0 : index
    %c0_13 = arith.constant 0 : index
    %8 = vector.load %arg5[%c0_9, %c0_10, %c0_11, %c0_12, %c0_13] : memref<4x8x1x8x32xf32, #tpu.memory_space<vmem>>, vector<4x8x1x8x32xf32>
    %9 = vector.shape_cast %8 : vector<4x8x1x8x32xf32> to vector<4x8x8x32xf32>
    %10 = vector.shape_cast %9 : vector<4x8x8x32xf32> to vector<4x64x32xf32>
    %c0_14 = arith.constant 0 : index
    %c0_15 = arith.constant 0 : index
    %c0_16 = arith.constant 0 : index
    %11 = vector.load %arg2[%c0_14, %c0_15, %c0_16] : memref<2x64x64xf32, #tpu.memory_space<vmem>>, vector<2x64x64xf32>
    %12 = vector.extract_strided_slice %4 {offsets = [0, 0, 0], sizes = [4, 64, 16], strides = [1, 1, 1]} : vector<4x64x32xf32> to vector<4x64x16xf32>
    %13 = arith.truncf %12 : vector<4x64x16xf32> to vector<4x64x16xbf16>
    %14 = vector.extract_strided_slice %7 {offsets = [0, 0, 0], sizes = [4, 64, 16], strides = [1, 1, 1]} : vector<4x64x32xf32> to vector<4x64x16xf32>
    %15 = arith.truncf %14 : vector<4x64x16xf32> to vector<4x64x16xbf16>
    %16 = vector.extract_strided_slice %10 {offsets = [0, 0, 0], sizes = [4, 64, 16], strides = [1, 1, 1]} : vector<4x64x32xf32> to vector<4x64x16xf32>
    %17 = arith.truncf %16 : vector<4x64x16xf32> to vector<4x64x16xbf16>
    "tpu.trace_start"() <{level = 10 : i32, message = "wqd,wkd->wqk"}> : () -> ()
    %cst_17 = arith.constant dense<0.000000e+00> : vector<4x64x64xf32>
    %18 = tpu.matmul %13, %15, %cst_17 {dimension_numbers = #tpu.dot_dimension_numbers<[2], [2], [1], [1], [0, 0, 0, 1, 1, 1], [0], [0]>} : vector<4x64x16xbf16>, vector<4x64x16xbf16>, vector<4x64x64xf32> -> vector<4x64x64xf32>
    "tpu.trace_stop"() : () -> ()
    %19 = vector.extract_strided_slice %11 {offsets = [0, 0, 0], sizes = [1, 64, 64], strides = [1, 1, 1]} : vector<2x64x64xf32> to vector<1x64x64xf32>
    %20 = vector.shape_cast %19 : vector<1x64x64xf32> to vector<64x64xf32>
    %21 = vector.shape_cast %20 : vector<64x64xf32> to vector<1x64x64xf32>
    %22 = vector.broadcast %21 : vector<1x64x64xf32> to vector<4x64x64xf32>
    %23 = arith.addf %18, %22 : vector<4x64x64xf32>
    %cst_18 = arith.constant dense<0xFF800000> : vector<4x64xf32>
    %24 = vector.multi_reduction <maximumf>, %23, %cst_18 [2] : vector<4x64x64xf32> to vector<4x64xf32>
    %25 = vector.shape_cast %24 : vector<4x64xf32> to vector<4x64x1xf32>
    %26 = vector.broadcast %25 : vector<4x64x1xf32> to vector<4x64x64xf32>
    %27 = arith.subf %23, %26 : vector<4x64x64xf32>
    %28 = math.exp %27 : vector<4x64x64xf32>
    %cst_19 = arith.constant dense<0.000000e+00> : vector<4x64xf32>
    %29 = vector.multi_reduction <add>, %28, %cst_19 [2] : vector<4x64x64xf32> to vector<4x64xf32>
    %30 = vector.shape_cast %29 : vector<4x64xf32> to vector<4x64x1xf32>
    %31 = arith.truncf %28 : vector<4x64x64xf32> to vector<4x64x64xbf16>
    "tpu.trace_start"() <{level = 10 : i32, message = "wqk,wkd->wqd"}> : () -> ()
    %cst_20 = arith.constant dense<0.000000e+00> : vector<4x64x16xf32>
    %32 = tpu.matmul %31, %17, %cst_20 {dimension_numbers = #tpu.dot_dimension_numbers<[2], [1], [1], [2], [0, 0, 0, 1, 1, 2], [0], [0]>} : vector<4x64x64xbf16>, vector<4x64x16xbf16>, vector<4x64x16xf32> -> vector<4x64x16xf32>
    "tpu.trace_stop"() : () -> ()
    %33 = tpu.reciprocal %30 {approx = true} : vector<4x64x1xf32> -> vector<4x64x1xf32>
    %34 = vector.broadcast %33 : vector<4x64x1xf32> to vector<4x64x16xf32>
    %35 = arith.mulf %32, %34 : vector<4x64x16xf32>
    %36 = vector.extract_strided_slice %4 {offsets = [0, 0, 16], sizes = [4, 64, 16], strides = [1, 1, 1]} : vector<4x64x32xf32> to vector<4x64x16xf32>
    %37 = arith.truncf %36 : vector<4x64x16xf32> to vector<4x64x16xbf16>
    %38 = vector.extract_strided_slice %7 {offsets = [0, 0, 16], sizes = [4, 64, 16], strides = [1, 1, 1]} : vector<4x64x32xf32> to vector<4x64x16xf32>
    %39 = arith.truncf %38 : vector<4x64x16xf32> to vector<4x64x16xbf16>
    %40 = vector.extract_strided_slice %10 {offsets = [0, 0, 16], sizes = [4, 64, 16], strides = [1, 1, 1]} : vector<4x64x32xf32> to vector<4x64x16xf32>
    %41 = arith.truncf %40 : vector<4x64x16xf32> to vector<4x64x16xbf16>
    "tpu.trace_start"() <{level = 10 : i32, message = "wqd,wkd->wqk"}> : () -> ()
    %cst_21 = arith.constant dense<0.000000e+00> : vector<4x64x64xf32>
    %42 = tpu.matmul %37, %39, %cst_21 {dimension_numbers = #tpu.dot_dimension_numbers<[2], [2], [1], [1], [0, 0, 0, 1, 1, 1], [0], [0]>} : vector<4x64x16xbf16>, vector<4x64x16xbf16>, vector<4x64x64xf32> -> vector<4x64x64xf32>
    "tpu.trace_stop"() : () -> ()
    %43 = vector.extract_strided_slice %11 {offsets = [1, 0, 0], sizes = [1, 64, 64], strides = [1, 1, 1]} : vector<2x64x64xf32> to vector<1x64x64xf32>
    %44 = vector.shape_cast %43 : vector<1x64x64xf32> to vector<64x64xf32>
    %45 = vector.shape_cast %44 : vector<64x64xf32> to vector<1x64x64xf32>
    %46 = vector.broadcast %45 : vector<1x64x64xf32> to vector<4x64x64xf32>
    %47 = arith.addf %42, %46 : vector<4x64x64xf32>
    %cst_22 = arith.constant dense<0xFF800000> : vector<4x64xf32>
    %48 = vector.multi_reduction <maximumf>, %47, %cst_22 [2] : vector<4x64x64xf32> to vector<4x64xf32>
    %49 = vector.shape_cast %48 : vector<4x64xf32> to vector<4x64x1xf32>
    %50 = vector.broadcast %49 : vector<4x64x1xf32> to vector<4x64x64xf32>
    %51 = arith.subf %47, %50 : vector<4x64x64xf32>
    %52 = math.exp %51 : vector<4x64x64xf32>
    %cst_23 = arith.constant dense<0.000000e+00> : vector<4x64xf32>
    %53 = vector.multi_reduction <add>, %52, %cst_23 [2] : vector<4x64x64xf32> to vector<4x64xf32>
    %54 = vector.shape_cast %53 : vector<4x64xf32> to vector<4x64x1xf32>
    %55 = arith.truncf %52 : vector<4x64x64xf32> to vector<4x64x64xbf16>
    "tpu.trace_start"() <{level = 10 : i32, message = "wqk,wkd->wqd"}> : () -> ()
    %cst_24 = arith.constant dense<0.000000e+00> : vector<4x64x16xf32>
    %56 = tpu.matmul %55, %41, %cst_24 {dimension_numbers = #tpu.dot_dimension_numbers<[2], [1], [1], [2], [0, 0, 0, 1, 1, 2], [0], [0]>} : vector<4x64x64xbf16>, vector<4x64x16xbf16>, vector<4x64x16xf32> -> vector<4x64x16xf32>
    "tpu.trace_stop"() : () -> ()
    %57 = tpu.reciprocal %54 {approx = true} : vector<4x64x1xf32> -> vector<4x64x1xf32>
    %58 = vector.broadcast %57 : vector<4x64x1xf32> to vector<4x64x16xf32>
    %59 = arith.mulf %56, %58 : vector<4x64x16xf32>
    %60 = tpu.concatenate %35, %59 in 2 : vector<4x64x16xf32>, vector<4x64x16xf32> -> vector<4x64x32xf32>
    %61 = vector.shape_cast %60 : vector<4x64x32xf32> to vector<4x8x8x32xf32>
    %c0_25 = arith.constant 0 : index
    %c0_26 = arith.constant 0 : index
    %c0_27 = arith.constant 0 : index
    %c0_28 = arith.constant 0 : index
    %c0_29 = arith.constant 0 : index
    %62 = vector.load %arg6[%c0_25, %c0_26, %c0_27, %c0_28, %c0_29] : memref<4x8x1x8x32xf32, #tpu.memory_space<vmem>>, vector<4x8x1x8x32xf32>
    %63 = vector.shape_cast %62 : vector<4x8x1x8x32xf32> to vector<4x8x8x32xf32>
    %64 = vector.shape_cast %61 : vector<4x8x8x32xf32> to vector<4x8x1x8x32xf32>
    tpu.vector_store %arg6[%c0_25, %c0_26, %c0_27, %c0_28, %c0_29], %64 {strides = array<i32>} : memref<4x8x1x8x32xf32, #tpu.memory_space<vmem>>, vector<4x8x1x8x32xf32>,
    return
  }
  func.func @transform_0(%arg0: i32, %arg1: i32) -> (i32, i32, i32) {
    %c0_i32 = arith.constant 0 : i32
    %c0_i32_0 = arith.constant 0 : i32
    %c0_i32_1 = arith.constant 0 : i32
    %c0_i32_2 = arith.constant 0 : i32
    return %c0_i32, %c0_i32_0, %c0_i32_1 : i32, i32, i32
  }
  func.func @transform_1(%arg0: i32, %arg1: i32) -> (i32, i32, i32, i32, i32) {
    %c0_i32 = arith.constant 0 : i32
    %c0_i32_0 = arith.constant 0 : i32
    %c0_i32_1 = arith.constant 0 : i32
    %c0_i32_2 = arith.constant 0 : i32
    return %arg0, %c0_i32, %arg1, %c0_i32_0, %c0_i32_1 : i32, i32, i32, i32, i32
  }
  func.func @transform_2(%arg0: i32, %arg1: i32) -> (i32, i32, i32, i32, i32) {
    %c0_i32 = arith.constant 0 : i32
    %c0_i32_0 = arith.constant 0 : i32
    %c0_i32_1 = arith.constant 0 : i32
    %c0_i32_2 = arith.constant 0 : i32
    return %arg0, %c0_i32, %arg1, %c0_i32_0, %c0_i32_1 : i32, i32, i32, i32, i32
  }
  func.func @transform_3(%arg0: i32, %arg1: i32) -> (i32, i32, i32, i32, i32) {
    %c0_i32 = arith.constant 0 : i32
    %c0_i32_0 = arith.constant 0 : i32
    %c0_i32_1 = arith.constant 0 : i32
    %c0_i32_2 = arith.constant 0 : i32
    return %arg0, %c0_i32, %arg1, %c0_i32_0, %c0_i32_1 : i32, i32, i32, i32, i32
  }
  func.func @transform_4(%arg0: i32, %arg1: i32) -> (i32, i32, i32, i32, i32) {
    %c0_i32 = arith.constant 0 : i32
    %c0_i32_0 = arith.constant 0 : i32
    %c0_i32_1 = arith.constant 0 : i32
    %c0_i32_2 = arith.constant 0 : i32
    return %arg0, %c0_i32, %arg1, %c0_i32_0, %c0_i32_1 : i32, i32, i32, i32, i32
  }
}

</mosaic_0001>

<llo_original>
// kernel: a_call__.1
$region0: #{a_call__.1}
  #allocation0 [shape = 'u32[]', space=smem, size = 0x4, offset = 0x4, fixed_abs, tag = 'smem constant byte address 0x4 - core index']
  #allocation1 [shape = 'u32[72,128]{1,0:T(1,128)}', space=vmem, size = 0x9000, scoped, tag = 'internal scratch']
  %s0 = inlined_call_operand.vmem [shape: f32[2,64,64], index: 0, kind: input, shape index: {}]
  %s1 = inlined_call_operand.vmem [shape: f32[4,8,2,8,32], index: 1, kind: input, shape index: {}]
  %s2 = inlined_call_operand.vmem [shape: f32[4,8,2,8,32], index: 2, kind: input, shape index: {}]
  %s3 = inlined_call_operand.vmem [shape: f32[4,8,2,8,32], index: 3, kind: input, shape index: {}]
  %s4 = inlined_call_operand.hbm [shape: f32[4,8,2,8,32], index: 4, kind: output, shape index: {}]
  %s5 = sld [smem:[#allocation0]]
  $region163: #{a_call__.1} parent=0
    _
  %s7 = ssub.s32 1, %s5
  %s8 = scalar_select 0, %s7, %s5
  $region1: #{a_call__.1} parent=0
    #allocation2 [shape = 'u8[262144]{0}', space=vmem, size = 0x40000, scoped, tag = 'input window, operand 1']
    #allocation3 [shape = 'u8[262144]{0}', space=vmem, size = 0x40000, scoped, tag = 'input window, operand 2']
    #allocation4 [shape = 'u8[262144]{0}', space=vmem, size = 0x40000, scoped, tag = 'input window, operand 3']
    #allocation5 [shape = 'u8[262144]{0}', space=vmem, size = 0x40000, scoped, tag = 'output window, operand 0']
    #allocation6 [shape = 's32[2]{0}', space=sflag, size = 0x8, scoped, tag = 'scoped memory for a_call__.1']
    %9 = vsyncpa [#allocation6], 0
    %s10 = scalar_lea.sflag [#allocation6], 1
    %11 = vsyncpa %s10, 0
    loop: start=0, step=1, limit=4
    $region2: #{a_call__.1} parent=1 // loop_pre_header
      _
    $region3: #{a_call__.1} parent=1 // loop_header
      %s13 = sphi 0, %s17
      %p14 = scmp.ge.s32.totalorder %s13, 4
      %s20 = sphi 0, %s32
      %s21 = sphi 0, %s28
      %s22 = sphi 0, %s20
      %s23 = sphi 0, %s21
      %s24 = sphi 0, %s22
      %s25 = sphi 0, %s23
      %s33 = sphi 0, %s33
      %s35 = sphi 0, %s33
      %s36 = sphi 0, %s35
      %s50 = sphi 0, %s36
      %s58 = sphi 0, %s60
      %s61 = sphi 0, %s58
      %s62 = sphi 0, %s61
      %s78 = sphi 0, %s62
      %s86 = sphi 0, %s88
      %s89 = sphi 0, %s86
      %s90 = sphi 0, %s89
      %s106 = sphi 0, %s90
      %s114 = sphi 0, %s116
      %s117 = sphi 0, %s114
      %s118 = sphi 0, %s117
      %s134 = sphi 0, %s118
      %s142 = sphi 0, %s144
      %s145 = sphi 0, %s142
      %s146 = sphi 0, %s145
      %s162 = sphi 0, %s146
    $region4: #{a_call__.1} parent=1 // loop_header_branch
      %16 = sbr.rel (%p14) target = $region8
    $region5: #{a_call__.1} parent=1 // loop_body
      %s18 = ssub.s32 %s13, 1
      %s19 = ssub.s32 %s13, 2
      %s26 = sadd.s32 1, %s21
      %p27 = scmp.ge.s32.totalorder %s26, 2
      %s28 = scalar_select %p27, 0, %s26
      %s29 = sadd.s32 1, %s20
      %s30 = scalar_select %p27, %s29, %s20
      %p31 = scmp.ge.s32.totalorder %s30, 1
      %s32 = scalar_select %p31, 0, %s30
      %s34 = sadd.s32 %s33, 1
      %p37 = scmp.eq.s32.totalorder %s13, 1
      %p38 = scmp.ne.s32.totalorder %s33, %s35
      %p39 = scmp.eq.s32.totalorder %s13, 0
      %p40 = por %p38, %p39
      %p41 = scmp.ne.s32.totalorder %s33, %s35
      %p42 = scmp.eq.s32.totalorder %s18, 1
      %p43 = por %p41, %p42
      %p44 = scmp.ne.s32.totalorder %s35, %s36
      %p45 = scmp.eq.s32.totalorder %s18, 0
      %p46 = por %p44, %p45
      %p47 = scmp.ne.s32.totalorder %s35, %s36
      %p48 = scmp.eq.s32.totalorder %s19, 1
      %p49 = por %p47, %p48
      %p51 = scmp.ne.s32.totalorder %s36, %s50
      %p52 = scmp.eq.s32.totalorder %s19, 0
      %p53 = por %p51, %p52
      %s54 = ssub.s32 %s20, %s32
      %s55 = ssub.s32 %s21, %s28
      %s56 = sor.u32 %s54, %s55
      %p57 = scmp.eq.s32.totalorder %s56, 0
      %s59 = sadd.s32 %s58, 1
      %s60 = scalar_select %p57, %s58, %s59
      %p63 = pneg %p57
      %p64 = scmp.eq.s32.totalorder %s13, 1
      %p65 = por %p63, %p64
      %p66 = scmp.ne.s32.totalorder %s58, %s61
      %p67 = scmp.eq.s32.totalorder %s13, 0
      %p68 = por %p66, %p67
      %p69 = scmp.ne.s32.totalorder %s58, %s61
      %p70 = scmp.eq.s32.totalorder %s18, 1
      %p71 = por %p69, %p70
      %p72 = scmp.ne.s32.totalorder %s61, %s62
      %p73 = scmp.eq.s32.totalorder %s18, 0
      %p74 = por %p72, %p73
      %p75 = scmp.ne.s32.totalorder %s61, %s62
      %p76 = scmp.eq.s32.totalorder %s19, 1
      %p77 = por %p75, %p76
      %p79 = scmp.ne.s32.totalorder %s62, %s78
      %p80 = scmp.eq.s32.totalorder %s19, 0
      %p81 = por %p79, %p80
      %s82 = ssub.s32 %s20, %s32
      %s83 = ssub.s32 %s21, %s28
      %s84 = sor.u32 %s82, %s83
      %p85 = scmp.eq.s32.totalorder %s84, 0
      %s87 = sadd.s32 %s86, 1
      %s88 = scalar_select %p85, %s86, %s87
      %p91 = pneg %p85
      %p92 = scmp.eq.s32.totalorder %s13, 1
      %p93 = por %p91, %p92
      %p94 = scmp.ne.s32.totalorder %s86, %s89
      %p95 = scmp.eq.s32.totalorder %s13, 0
      %p96 = por %p94, %p95
      %p97 = scmp.ne.s32.totalorder %s86, %s89
      %p98 = scmp.eq.s32.totalorder %s18, 1
      %p99 = por %p97, %p98
      %p100 = scmp.ne.s32.totalorder %s89, %s90
      %p101 = scmp.eq.s32.totalorder %s18, 0
      %p102 = por %p100, %p101
      %p103 = scmp.ne.s32.totalorder %s89, %s90
      %p104 = scmp.eq.s32.totalorder %s19, 1
      %p105 = por %p103, %p104
      %p107 = scmp.ne.s32.totalorder %s90, %s106
      %p108 = scmp.eq.s32.totalorder %s19, 0
      %p109 = por %p107, %p108
      %s110 = ssub.s32 %s20, %s32
      %s111 = ssub.s32 %s21, %s28
      %s112 = sor.u32 %s110, %s111
      %p113 = scmp.eq.s32.totalorder %s112, 0
      %s115 = sadd.s32 %s114, 1
      %s116 = scalar_select %p113, %s114, %s115
      %p119 = pneg %p113
      %p120 = scmp.eq.s32.totalorder %s13, 1
      %p121 = por %p119, %p120
      %p122 = scmp.ne.s32.totalorder %s114, %s117
      %p123 = scmp.eq.s32.totalorder %s13, 0
      %p124 = por %p122, %p123
      %p125 = scmp.ne.s32.totalorder %s114, %s117
      %p126 = scmp.eq.s32.totalorder %s18, 1
      %p127 = por %p125, %p126
      %p128 = scmp.ne.s32.totalorder %s117, %s118
      %p129 = scmp.eq.s32.totalorder %s18, 0
      %p130 = por %p128, %p129
      %p131 = scmp.ne.s32.totalorder %s117, %s118
      %p132 = scmp.eq.s32.totalorder %s19, 1
      %p133 = por %p131, %p132
      %p135 = scmp.ne.s32.totalorder %s118, %s134
      %p136 = scmp.eq.s32.totalorder %s19, 0
      %p137 = por %p135, %p136
      %s138 = ssub.s32 %s20, %s32
      %s139 = ssub.s32 %s21, %s28
      %s140 = sor.u32 %s138, %s139
      %p141 = scmp.eq.s32.totalorder %s140, 0
      %s143 = sadd.s32 %s142, 1
      %s144 = scalar_select %p141, %s142, %s143
      %p147 = pneg %p141
      %p148 = scmp.eq.s32.totalorder %s13, 1
      %p149 = por %p147, %p148
      %p150 = scmp.ne.s32.totalorder %s142, %s145
      %p151 = scmp.eq.s32.totalorder %s13, 0
      %p152 = por %p150, %p151
      %p153 = scmp.ne.s32.totalorder %s142, %s145
      %p154 = scmp.eq.s32.totalorder %s18, 1
      %p155 = por %p153, %p154
      %p156 = scmp.ne.s32.totalorder %s145, %s146
      %p157 = scmp.eq.s32.totalorder %s18, 0
      %p158 = por %p156, %p157
      %p159 = scmp.ne.s32.totalorder %s145, %s146
      %p160 = scmp.eq.s32.totalorder %s19, 1
      %p161 = por %p159, %p160
      %p163 = scmp.ne.s32.totalorder %s146, %s162
      %p164 = scmp.eq.s32.totalorder %s19, 0
      %p165 = por %p163, %p164
      %p166 = scmp.le.s32.totalorder 1, %s13
      %p167 = scmp.lt.s32.totalorder %s13, 3
      %p168 = pnand %p166, %p167
      %p169 = pneg %p168
      // Predicated region
      $region9: #{a_call__.1} parent=5 // pred_check
        _
      $region10: #{a_call__.1} parent=5 // pred_check_branch
        %171 = sbr.rel (%p168) target = $region12
      $region11: #{a_call__.1} parent=5 // pred_region
        %s172 = ssub.s32 %s13, 1
        // Predicated region
        $region13: #{a_call__.1} parent=11 // pred_check
          %p173 = pneg %p46
        $region14: #{a_call__.1} parent=11 // pred_check_branch
          %175 = sbr.rel (%p173) target = $region16
        $region15: #{a_call__.1} parent=11 // pred_region
          _
        $region16: #{a_call__.1} parent=11 // pred_fallthru
          _
      $region12: #{a_call__.1} parent=5 // pred_fallthru
        _
      %p176 = scmp.lt.s32.totalorder %s13, 2
      // Predicated region
      $region17: #{a_call__.1} parent=5 // pred_check
        %p177 = pneg %p176
      $region18: #{a_call__.1} parent=5 // pred_check_branch
        %179 = sbr.rel (%p177) target = $region20
      $region19: #{a_call__.1} parent=5 // pred_region
        // Predicated region
        $region21: #{a_call__.1} parent=19 // pred_check
          %p180 = pneg %p68
        $region22: #{a_call__.1} parent=19 // pred_check_branch
          %182 = sbr.rel (%p180) target = $region24
        $region23: #{a_call__.1} parent=19 // pred_region
          %s183 = sand.u32 %s58, 1
          %s184 = sand.u32 %s58, 1
          %s185 = smul.addr %s184, 256
          %s186 = scalar_lea.vmem [#allocation2], %s185
          %s187 = smul.u32 4, %s20
          %s188 = smul.addr %s187, 16
          %s189 = sadd.s32 %s21, %s188
          %s190 = smul.addr %s189, 8
          %s191 = scalar_lea.vmem %s1, %s190
          // Predicated region
          $region25: #{a_call__.1} parent=23 // pred_check
            _
          $region26: #{a_call__.1} parent=23 // pred_check_branch
            %193 = sbr.rel (0) target = $region28
          $region27: #{a_call__.1} parent=23 // pred_region
            // Predicated region
            $region29: #{a_call__.1} parent=27 // pred_check
              _
            $region30: #{a_call__.1} parent=27 // pred_check_branch
              %195 = sbr.rel (0) target = $region32
            $region31: #{a_call__.1} parent=27 // pred_region
              // Predicated region
              $region44: #{a_call__.1} parent=31 // pred_check
                _
              $region45: #{a_call__.1} parent=31 // pred_check_branch
                %273 = sbr.rel (0) target = $region47
              $region46: #{a_call__.1} parent=31 // pred_region
                loop: start=0, step=1, limit=1
                $region48: #{a_call__.1} parent=46 // loop_pre_header
                  _
                $region49: #{a_call__.1} parent=46 // loop_header
                  %s275 = sphi 0, %s279
                  %p276 = scmp.ge.s32.totalorder %s275, 1
                  %s280 = sphi %s191, %s191
                  %s281 = sphi %s186, %s186
                $region50: #{a_call__.1} parent=46 // loop_header_branch
                  %278 = sbr.rel (%p276) target = $region54
                $region51: #{a_call__.1} parent=46 // loop_body
                  %v282 = vld [vmem:[%s280] sm:$0xff]
                  %283 = vst [vmem:[%s281] sm:$0xff] %v282
                  %v284 = vld [vmem:[%s280 + $0x10] sm:$0xff]
                  %285 = vst [vmem:[%s281 + $0x8] sm:$0xff] %v284
                  %v286 = vld [vmem:[%s280 + $0x20] sm:$0xff]
                  %287 = vst [vmem:[%s281 + $0x10] sm:$0xff] %v286
                  %v288 = vld [vmem:[%s280 + $0x30] sm:$0xff]
                  %289 = vst [vmem:[%s281 + $0x18] sm:$0xff] %v288
                  %v290 = vld [vmem:[%s280 + $0x40] sm:$0xff]
                  %291 = vst [vmem:[%s281 + $0x20] sm:$0xff] %v290
                  %v292 = vld [vmem:[%s280 + $0x50] sm:$0xff]
                  %293 = vst [vmem:[%s281 + $0x28] sm:$0xff] %v292
                  %v294 = vld [vmem:[%s280 + $0x60] sm:$0xff]
                  %295 = vst [vmem:[%s281 + $0x30] sm:$0xff] %v294
                  %v296 = vld [vmem:[%s280 + $0x70] sm:$0xff]
                  %297 = vst [vmem:[%s281 + $0x38] sm:$0xff] %v296
                  %v298 = vld [vmem:[%s280 + $0x80] sm:$0xff]
                  %299 = vst [vmem:[%s281 + $0x40] sm:$0xff] %v298
                  %v300 = vld [vmem:[%s280 + $0x90] sm:$0xff]
                  %301 = vst [vmem:[%s281 + $0x48] sm:$0xff] %v300
                  %v302 = vld [vmem:[%s280 + $0xa0] sm:$0xff]
                  %303 = vst [vmem:[%s281 + $0x50] sm:$0xff] %v302
                  %v304 = vld [vmem:[%s280 + $0xb0] sm:$0xff]
                  %305 = vst [vmem:[%s281 + $0x58] sm:$0xff] %v304
                  %v306 = vld [vmem:[%s280 + $0xc0] sm:$0xff]
                  %307 = vst [vmem:[%s281 + $0x60] sm:$0xff] %v306
                  %v308 = vld [vmem:[%s280 + $0xd0] sm:$0xff]
                  %309 = vst [vmem:[%s281 + $0x68] sm:$0xff] %v308
                  %v310 = vld [vmem:[%s280 + $0xe0] sm:$0xff]
                  %311 = vst [vmem:[%s281 + $0x70] sm:$0xff] %v310
                  %v312 = vld [vmem:[%s280 + $0xf0] sm:$0xff]
                  %313 = vst [vmem:[%s281 + $0x78] sm:$0xff] %v312
                  %v314 = vld [vmem:[%s280 + $0x100] sm:$0xff]
                  %315 = vst [vmem:[%s281 + $0x80] sm:$0xff] %v314
                  %v316 = vld [vmem:[%s280 + $0x110] sm:$0xff]
                  %317 = vst [vmem:[%s281 + $0x88] sm:$0xff] %v316
                  %v318 = vld [vmem:[%s280 + $0x120] sm:$0xff]
                  %319 = vst [vmem:[%s281 + $0x90] sm:$0xff] %v318
                  %v320 = vld [vmem:[%s280 + $0x130] sm:$0xff]
                  %321 = vst [vmem:[%s281 + $0x98] sm:$0xff] %v320
                  %v322 = vld [vmem:[%s280 + $0x140] sm:$0xff]
                  %323 = vst [vmem:[%s281 + $0xa0] sm:$0xff] %v322
                  %v324 = vld [vmem:[%s280 + $0x150] sm:$0xff]
                  %325 = vst [vmem:[%s281 + $0xa8] sm:$0xff] %v324
                  %v326 = vld [vmem:[%s280 + $0x160] sm:$0xff]
                  %327 = vst [vmem:[%s281 + $0xb0] sm:$0xff] %v326
                  %v328 = vld [vmem:[%s280 + $0x170] sm:$0xff]
                  %329 = vst [vmem:[%s281 + $0xb8] sm:$0xff] %v328
                  %v330 = vld [vmem:[%s280 + $0x180] sm:$0xff]
                  %331 = vst [vmem:[%s281 + $0xc0] sm:$0xff] %v330
                  %v332 = vld [vmem:[%s280 + $0x190] sm:$0xff]
                  %333 = vst [vmem:[%s281 + $0xc8] sm:$0xff] %v332
                  %v334 = vld [vmem:[%s280 + $0x1a0] sm:$0xff]
                  %335 = vst [vmem:[%s281 + $0xd0] sm:$0xff] %v334
                  %v336 = vld [vmem:[%s280 + $0x1b0] sm:$0xff]
                  %337 = vst [vmem:[%s281 + $0xd8] sm:$0xff] %v336
                  %v338 = vld [vmem:[%s280 + $0x1c0] sm:$0xff]
                  %339 = vst [vmem:[%s281 + $0xe0] sm:$0xff] %v338
                  %v340 = vld [vmem:[%s280 + $0x1d0] sm:$0xff]
                  %341 = vst [vmem:[%s281 + $0xe8] sm:$0xff] %v340
                  %v342 = vld [vmem:[%s280 + $0x1e0] sm:$0xff]
                  %343 = vst [vmem:[%s281 + $0xf0] sm:$0xff] %v342
                  %v344 = vld [vmem:[%s280 + $0x1f0] sm:$0xff]
                  %345 = vst [vmem:[%s281 + $0xf8] sm:$0xff] %v344
                $region52: #{a_call__.1} parent=46 // loop_footer
                  %s279 = sadd.s32 1, %s275
                $region53: #{a_call__.1} parent=46 // loop_footer_branch
                  %274 = sbr.rel target = $region49
                $region54: #{a_call__.1} parent=46 // loop_exit
                  _
              $region47: #{a_call__.1} parent=31 // pred_fallthru
                _
              // Predicated region
              $region55: #{a_call__.1} parent=31 // pred_check
                _
              $region56: #{a_call__.1} parent=31 // pred_check_branch
                %347 = sbr.rel target = $region58
              $region57: #{a_call__.1} parent=31 // pred_region
                _
              $region58: #{a_call__.1} parent=31 // pred_fallthru
                _
            $region32: #{a_call__.1} parent=27 // pred_fallthru
              _
            // Predicated region
            $region33: #{a_call__.1} parent=27 // pred_check
              _
            $region34: #{a_call__.1} parent=27 // pred_check_branch
              %197 = sbr.rel target = $region36
            $region35: #{a_call__.1} parent=27 // pred_region
              %s199 = ssub.s32 256, 1
              loop: start=0, step=1, limit=1
              $region37: #{a_call__.1} parent=35 // loop_pre_header
                _
              $region38: #{a_call__.1} parent=35 // loop_header
                %s201 = sphi 0, %s205
                %p202 = scmp.ge.s32.totalorder %s201, 1
                %s206 = sphi %s191, %s191
                %s207 = sphi %s186, %s186
              $region39: #{a_call__.1} parent=35 // loop_header_branch
                %204 = sbr.rel (%p202) target = $region43
              $region40: #{a_call__.1} parent=35 // loop_body
                %v208 = vld [vmem:[%s206] sm:%s199]
                %209 = vst [vmem:[%s207] sm:%s199] %v208
                %v210 = vld [vmem:[%s206 + $0x10] sm:%s199]
                %211 = vst [vmem:[%s207 + $0x8] sm:%s199] %v210
                %v212 = vld [vmem:[%s206 + $0x20] sm:%s199]
                %213 = vst [vmem:[%s207 + $0x10] sm:%s199] %v212
                %v214 = vld [vmem:[%s206 + $0x30] sm:%s199]
                %215 = vst [vmem:[%s207 + $0x18] sm:%s199] %v214
                %v216 = vld [vmem:[%s206 + $0x40] sm:%s199]
                %217 = vst [vmem:[%s207 + $0x20] sm:%s199] %v216
                %v218 = vld [vmem:[%s206 + $0x50] sm:%s199]
                %219 = vst [vmem:[%s207 + $0x28] sm:%s199] %v218
                %v220 = vld [vmem:[%s206 + $0x60] sm:%s199]
                %221 = vst [vmem:[%s207 + $0x30] sm:%s199] %v220
                %v222 = vld [vmem:[%s206 + $0x70] sm:%s199]
                %223 = vst [vmem:[%s207 + $0x38] sm:%s199] %v222
                %v224 = vld [vmem:[%s206 + $0x80] sm:%s199]
                %225 = vst [vmem:[%s207 + $0x40] sm:%s199] %v224
                %v226 = vld [vmem:[%s206 + $0x90] sm:%s199]
                %227 = vst [vmem:[%s207 + $0x48] sm:%s199] %v226
                %v228 = vld [vmem:[%s206 + $0xa0] sm:%s199]
                %229 = vst [vmem:[%s207 + $0x50] sm:%s199] %v228
                %v230 = vld [vmem:[%s206 + $0xb0] sm:%s199]
                %231 = vst [vmem:[%s207 + $0x58] sm:%s199] %v230
                %v232 = vld [vmem:[%s206 + $0xc0] sm:%s199]
                %233 = vst [vmem:[%s207 + $0x60] sm:%s199] %v232
                %v234 = vld [vmem:[%s206 + $0xd0] sm:%s199]
                %235 = vst [vmem:[%s207 + $0x68] sm:%s199] %v234
                %v236 = vld [vmem:[%s206 + $0xe0] sm:%s199]
                %237 = vst [vmem:[%s207 + $0x70] sm:%s199] %v236
                %v238 = vld [vmem:[%s206 + $0xf0] sm:%s199]
                %239 = vst [vmem:[%s207 + $0x78] sm:%s199] %v238
                %v240 = vld [vmem:[%s206 + $0x100] sm:%s199]
                %241 = vst [vmem:[%s207 + $0x80] sm:%s199] %v240
                %v242 = vld [vmem:[%s206 + $0x110] sm:%s199]
                %243 = vst [vmem:[%s207 + $0x88] sm:%s199] %v242
                %v244 = vld [vmem:[%s206 + $0x120] sm:%s199]
                %245 = vst [vmem:[%s207 + $0x90] sm:%s199] %v244
                %v246 = vld [vmem:[%s206 + $0x130] sm:%s199]
                %247 = vst [vmem:[%s207 + $0x98] sm:%s199] %v246
                %v248 = vld [vmem:[%s206 + $0x140] sm:%s199]
                %249 = vst [vmem:[%s207 + $0xa0] sm:%s199] %v248
                %v250 = vld [vmem:[%s206 + $0x150] sm:%s199]
                %251 = vst [vmem:[%s207 + $0xa8] sm:%s199] %v250
                %v252 = vld [vmem:[%s206 + $0x160] sm:%s199]
                %253 = vst [vmem:[%s207 + $0xb0] sm:%s199] %v252
                %v254 = vld [vmem:[%s206 + $0x170] sm:%s199]
                %255 = vst [vmem:[%s207 + $0xb8] sm:%s199] %v254
                %v256 = vld [vmem:[%s206 + $0x180] sm:%s199]
                %257 = vst [vmem:[%s207 + $0xc0] sm:%s199] %v256
                %v258 = vld [vmem:[%s206 + $0x190] sm:%s199]
                %259 = vst [vmem:[%s207 + $0xc8] sm:%s199] %v258
                %v260 = vld [vmem:[%s206 + $0x1a0] sm:%s199]
                %261 = vst [vmem:[%s207 + $0xd0] sm:%s199] %v260
                %v262 = vld [vmem:[%s206 + $0x1b0] sm:%s199]
                %263 = vst [vmem:[%s207 + $0xd8] sm:%s199] %v262
                %v264 = vld [vmem:[%s206 + $0x1c0] sm:%s199]
                %265 = vst [vmem:[%s207 + $0xe0] sm:%s199] %v264
                %v266 = vld [vmem:[%s206 + $0x1d0] sm:%s199]
                %267 = vst [vmem:[%s207 + $0xe8] sm:%s199] %v266
                %v268 = vld [vmem:[%s206 + $0x1e0] sm:%s199]
                %269 = vst [vmem:[%s207 + $0xf0] sm:%s199] %v268
                %v270 = vld [vmem:[%s206 + $0x1f0] sm:%s199]
                %271 = vst [vmem:[%s207 + $0xf8] sm:%s199] %v270
              $region41: #{a_call__.1} parent=35 // loop_footer
                %s205 = sadd.s32 1, %s201
              $region42: #{a_call__.1} parent=35 // loop_footer_branch
                %200 = sbr.rel target = $region38
              $region43: #{a_call__.1} parent=35 // loop_exit
                _
            $region36: #{a_call__.1} parent=27 // pred_fallthru
              _
          $region28: #{a_call__.1} parent=23 // pred_fallthru
            _
          %348 = vnop
        $region24: #{a_call__.1} parent=19 // pred_fallthru
          _
        // Predicated region
        $region59: #{a_call__.1} parent=19 // pred_check
          %p349 = pneg %p96
        $region60: #{a_call__.1} parent=19 // pred_check_branch
          %351 = sbr.rel (%p349) target = $region62
        $region61: #{a_call__.1} parent=19 // pred_region
          %s352 = sand.u32 %s86, 1
          %s353 = sand.u32 %s86, 1
          %s354 = smul.addr %s353, 256
          %s355 = scalar_lea.vmem [#allocation3], %s354
          %s356 = smul.u32 4, %s20
          %s357 = smul.addr %s356, 16
          %s358 = sadd.s32 %s21, %s357
          %s359 = smul.addr %s358, 8
          %s360 = scalar_lea.vmem %s2, %s359
          // Predicated region
          $region63: #{a_call__.1} parent=61 // pred_check
            _
          $region64: #{a_call__.1} parent=61 // pred_check_branch
            %362 = sbr.rel (0) target = $region66
          $region65: #{a_call__.1} parent=61 // pred_region
            // Predicated region
            $region67: #{a_call__.1} parent=65 // pred_check
              _
            $region68: #{a_call__.1} parent=65 // pred_check_branch
              %364 = sbr.rel (0) target = $region70
            $region69: #{a_call__.1} parent=65 // pred_region
              // Predicated region
              $region82: #{a_call__.1} parent=69 // pred_check
                _
              $region83: #{a_call__.1} parent=69 // pred_check_branch
                %442 = sbr.rel (0) target = $region85
              $region84: #{a_call__.1} parent=69 // pred_region
                loop: start=0, step=1, limit=1
                $region86: #{a_call__.1} parent=84 // loop_pre_header
                  _
                $region87: #{a_call__.1} parent=84 // loop_header
                  %s444 = sphi 0, %s448
                  %p445 = scmp.ge.s32.totalorder %s444, 1
                  %s449 = sphi %s360, %s360
                  %s450 = sphi %s355, %s355
                $region88: #{a_call__.1} parent=84 // loop_header_branch
                  %447 = sbr.rel (%p445) target = $region92
                $region89: #{a_call__.1} parent=84 // loop_body
                  %v451 = vld [vmem:[%s449] sm:$0xff]
                  %452 = vst [vmem:[%s450] sm:$0xff] %v451
                  %v453 = vld [vmem:[%s449 + $0x10] sm:$0xff]
                  %454 = vst [vmem:[%s450 + $0x8] sm:$0xff] %v453
                  %v455 = vld [vmem:[%s449 + $0x20] sm:$0xff]
                  %456 = vst [vmem:[%s450 + $0x10] sm:$0xff] %v455
                  %v457 = vld [vmem:[%s449 + $0x30] sm:$0xff]
                  %458 = vst [vmem:[%s450 + $0x18] sm:$0xff] %v457
                  %v459 = vld [vmem:[%s449 + $0x40] sm:$0xff]
                  %460 = vst [vmem:[%s450 + $0x20] sm:$0xff] %v459
                  %v461 = vld [vmem:[%s449 + $0x50] sm:$0xff]
                  %462 = vst [vmem:[%s450 + $0x28] sm:$0xff] %v461
                  %v463 = vld [vmem:[%s449 + $0x60] sm:$0xff]
                  %464 = vst [vmem:[%s450 + $0x30] sm:$0xff] %v463
                  %v465 = vld [vmem:[%s449 + $0x70] sm:$0xff]
                  %466 = vst [vmem:[%s450 + $0x38] sm:$0xff] %v465
                  %v467 = vld [vmem:[%s449 + $0x80] sm:$0xff]
                  %468 = vst [vmem:[%s450 + $0x40] sm:$0xff] %v467
                  %v469 = vld [vmem:[%s449 + $0x90] sm:$0xff]
                  %470 = vst [vmem:[%s450 + $0x48] sm:$0xff] %v469
                  %v471 = vld [vmem:[%s449 + $0xa0] sm:$0xff]
                  %472 = vst [vmem:[%s450 + $0x50] sm:$0xff] %v471
                  %v473 = vld [vmem:[%s449 + $0xb0] sm:$0xff]
                  %474 = vst [vmem:[%s450 + $0x58] sm:$0xff] %v473
                  %v475 = vld [vmem:[%s449 + $0xc0] sm:$0xff]
                  %476 = vst [vmem:[%s450 + $0x60] sm:$0xff] %v475
                  %v477 = vld [vmem:[%s449 + $0xd0] sm:$0xff]
                  %478 = vst [vmem:[%s450 + $0x68] sm:$0xff] %v477
                  %v479 = vld [vmem:[%s449 + $0xe0] sm:$0xff]
                  %480 = vst [vmem:[%s450 + $0x70] sm:$0xff] %v479
                  %v481 = vld [vmem:[%s449 + $0xf0] sm:$0xff]
                  %482 = vst [vmem:[%s450 + $0x78] sm:$0xff] %v481
                  %v483 = vld [vmem:[%s449 + $0x100] sm:$0xff]
                  %484 = vst [vmem:[%s450 + $0x80] sm:$0xff] %v483
                  %v485 = vld [vmem:[%s449 + $0x110] sm:$0xff]
                  %486 = vst [vmem:[%s450 + $0x88] sm:$0xff] %v485
                  %v487 = vld [vmem:[%s449 + $0x120] sm:$0xff]
                  %488 = vst [vmem:[%s450 + $0x90] sm:$0xff] %v487
                  %v489 = vld [vmem:[%s449 + $0x130] sm:$0xff]
                  %490 = vst [vmem:[%s450 + $0x98] sm:$0xff] %v489
                  %v491 = vld [vmem:[%s449 + $0x140] sm:$0xff]
                  %492 = vst [vmem:[%s450 + $0xa0] sm:$0xff] %v491
                  %v493 = vld [vmem:[%s449 + $0x150] sm:$0xff]
                  %494 = vst [vmem:[%s450 + $0xa8] sm:$0xff] %v493
                  %v495 = vld [vmem:[%s449 + $0x160] sm:$0xff]
                  %496 = vst [vmem:[%s450 + $0xb0] sm:$0xff] %v495
                  %v497 = vld [vmem:[%s449 + $0x170] sm:$0xff]
                  %498 = vst [vmem:[%s450 + $0xb8] sm:$0xff] %v497
                  %v499 = vld [vmem:[%s449 + $0x180] sm:$0xff]
                  %500 = vst [vmem:[%s450 + $0xc0] sm:$0xff] %v499
                  %v501 = vld [vmem:[%s449 + $0x190] sm:$0xff]
                  %502 = vst [vmem:[%s450 + $0xc8] sm:$0xff] %v501
                  %v503 = vld [vmem:[%s449 + $0x1a0] sm:$0xff]
                  %504 = vst [vmem:[%s450 + $0xd0] sm:$0xff] %v503
                  %v505 = vld [vmem:[%s449 + $0x1b0] sm:$0xff]
                  %506 = vst [vmem:[%s450 + $0xd8] sm:$0xff] %v505
                  %v507 = vld [vmem:[%s449 + $0x1c0] sm:$0xff]
                  %508 = vst [vmem:[%s450 + $0xe0] sm:$0xff] %v507
                  %v509 = vld [vmem:[%s449 + $0x1d0] sm:$0xff]
                  %510 = vst [vmem:[%s450 + $0xe8] sm:$0xff] %v509
                  %v511 = vld [vmem:[%s449 + $0x1e0] sm:$0xff]
                  %512 = vst [vmem:[%s450 + $0xf0] sm:$0xff] %v511
                  %v513 = vld [vmem:[%s449 + $0x1f0] sm:$0xff]
                  %514 = vst [vmem:[%s450 + $0xf8] sm:$0xff] %v513
                $region90: #{a_call__.1} parent=84 // loop_footer
                  %s448 = sadd.s32 1, %s444
                $region91: #{a_call__.1} parent=84 // loop_footer_branch
                  %443 = sbr.rel target = $region87
                $region92: #{a_call__.1} parent=84 // loop_exit
                  _
              $region85: #{a_call__.1} parent=69 // pred_fallthru
                _
              // Predicated region
              $region93: #{a_call__.1} parent=69 // pred_check
                _
              $region94: #{a_call__.1} parent=69 // pred_check_branch
                %516 = sbr.rel target = $region96
              $region95: #{a_call__.1} parent=69 // pred_region
                _
              $region96: #{a_call__.1} parent=69 // pred_fallthru
                _
            $region70: #{a_call__.1} parent=65 // pred_fallthru
              _
            // Predicated region
            $region71: #{a_call__.1} parent=65 // pred_check
              _
            $region72: #{a_call__.1} parent=65 // pred_check_branch
              %366 = sbr.rel target = $region74
            $region73: #{a_call__.1} parent=65 // pred_region
              %s368 = ssub.s32 256, 1
              loop: start=0, step=1, limit=1
              $region75: #{a_call__.1} parent=73 // loop_pre_header
                _
              $region76: #{a_call__.1} parent=73 // loop_header
                %s370 = sphi 0, %s374
                %p371 = scmp.ge.s32.totalorder %s370, 1
                %s375 = sphi %s360, %s360
                %s376 = sphi %s355, %s355
              $region77: #{a_call__.1} parent=73 // loop_header_branch
                %373 = sbr.rel (%p371) target = $region81
              $region78: #{a_call__.1} parent=73 // loop_body
                %v377 = vld [vmem:[%s375] sm:%s368]
                %378 = vst [vmem:[%s376] sm:%s368] %v377
                %v379 = vld [vmem:[%s375 + $0x10] sm:%s368]
                %380 = vst [vmem:[%s376 + $0x8] sm:%s368] %v379
                %v381 = vld [vmem:[%s375 + $0x20] sm:%s368]
                %382 = vst [vmem:[%s376 + $0x10] sm:%s368] %v381
                %v383 = vld [vmem:[%s375 + $0x30] sm:%s368]
                %384 = vst [vmem:[%s376 + $0x18] sm:%s368] %v383
                %v385 = vld [vmem:[%s375 + $0x40] sm:%s368]
                %386 = vst [vmem:[%s376 + $0x20] sm:%s368] %v385
                %v387 = vld [vmem:[%s375 + $0x50] sm:%s368]
                %388 = vst [vmem:[%s376 + $0x28] sm:%s368] %v387
                %v389 = vld [vmem:[%s375 + $0x60] sm:%s368]
                %390 = vst [vmem:[%s376 + $0x30] sm:%s368] %v389
                %v391 = vld [vmem:[%s375 + $0x70] sm:%s368]
                %392 = vst [vmem:[%s376 + $0x38] sm:%s368] %v391
                %v393 = vld [vmem:[%s375 + $0x80] sm:%s368]
                %394 = vst [vmem:[%s376 + $0x40] sm:%s368] %v393
                %v395 = vld [vmem:[%s375 + $0x90] sm:%s368]
                %396 = vst [vmem:[%s376 + $0x48] sm:%s368] %v395
                %v397 = vld [vmem:[%s375 + $0xa0] sm:%s368]
                %398 = vst [vmem:[%s376 + $0x50] sm:%s368] %v397
                %v399 = vld [vmem:[%s375 + $0xb0] sm:%s368]
                %400 = vst [vmem:[%s376 + $0x58] sm:%s368] %v399
                %v401 = vld [vmem:[%s375 + $0xc0] sm:%s368]
                %402 = vst [vmem:[%s376 + $0x60] sm:%s368] %v401
                %v403 = vld [vmem:[%s375 + $0xd0] sm:%s368]
                %404 = vst [vmem:[%s376 + $0x68] sm:%s368] %v403
                %v405 = vld [vmem:[%s375 + $0xe0] sm:%s368]
                %406 = vst [vmem:[%s376 + $0x70] sm:%s368] %v405
                %v407 = vld [vmem:[%s375 + $0xf0] sm:%s368]
                %408 = vst [vmem:[%s376 + $0x78] sm:%s368] %v407
                %v409 = vld [vmem:[%s375 + $0x100] sm:%s368]
                %410 = vst [vmem:[%s376 + $0x80] sm:%s368] %v409
                %v411 = vld [vmem:[%s375 + $0x110] sm:%s368]
                %412 = vst [vmem:[%s376 + $0x88] sm:%s368] %v411
                %v413 = vld [vmem:[%s375 + $0x120] sm:%s368]
                %414 = vst [vmem:[%s376 + $0x90] sm:%s368] %v413
                %v415 = vld [vmem:[%s375 + $0x130] sm:%s368]
                %416 = vst [vmem:[%s376 + $0x98] sm:%s368] %v415
                %v417 = vld [vmem:[%s375 + $0x140] sm:%s368]
                %418 = vst [vmem:[%s376 + $0xa0] sm:%s368] %v417
                %v419 = vld [vmem:[%s375 + $0x150] sm:%s368]
                %420 = vst [vmem:[%s376 + $0xa8] sm:%s368] %v419
                %v421 = vld [vmem:[%s375 + $0x160] sm:%s368]
                %422 = vst [vmem:[%s376 + $0xb0] sm:%s368] %v421
                %v423 = vld [vmem:[%s375 + $0x170] sm:%s368]
                %424 = vst [vmem:[%s376 + $0xb8] sm:%s368] %v423
                %v425 = vld [vmem:[%s375 + $0x180] sm:%s368]
                %426 = vst [vmem:[%s376 + $0xc0] sm:%s368] %v425
                %v427 = vld [vmem:[%s375 + $0x190] sm:%s368]
                %428 = vst [vmem:[%s376 + $0xc8] sm:%s368] %v427
                %v429 = vld [vmem:[%s375 + $0x1a0] sm:%s368]
                %430 = vst [vmem:[%s376 + $0xd0] sm:%s368] %v429
                %v431 = vld [vmem:[%s375 + $0x1b0] sm:%s368]
                %432 = vst [vmem:[%s376 + $0xd8] sm:%s368] %v431
                %v433 = vld [vmem:[%s375 + $0x1c0] sm:%s368]
                %434 = vst [vmem:[%s376 + $0xe0] sm:%s368] %v433
                %v435 = vld [vmem:[%s375 + $0x1d0] sm:%s368]
                %436 = vst [vmem:[%s376 + $0xe8] sm:%s368] %v435
                %v437 = vld [vmem:[%s375 + $0x1e0] sm:%s368]
                %438 = vst [vmem:[%s376 + $0xf0] sm:%s368] %v437
                %v439 = vld [vmem:[%s375 + $0x1f0] sm:%s368]
                %440 = vst [vmem:[%s376 + $0xf8] sm:%s368] %v439
              $region79: #{a_call__.1} parent=73 // loop_footer
                %s374 = sadd.s32 1, %s370
              $region80: #{a_call__.1} parent=73 // loop_footer_branch
                %369 = sbr.rel target = $region76
              $region81: #{a_call__.1} parent=73 // loop_exit
                _
            $region74: #{a_call__.1} parent=65 // pred_fallthru
              _
          $region66: #{a_call__.1} parent=61 // pred_fallthru
            _
          %517 = vnop
        $region62: #{a_call__.1} parent=19 // pred_fallthru
          _
        // Predicated region
        $region97: #{a_call__.1} parent=19 // pred_check
          %p518 = pneg %p124
        $region98: #{a_call__.1} parent=19 // pred_check_branch
          %520 = sbr.rel (%p518) target = $region100
        $region99: #{a_call__.1} parent=19 // pred_region
          %s521 = sand.u32 %s114, 1
          %s522 = sand.u32 %s114, 1
          %s523 = smul.addr %s522, 256
          %s524 = scalar_lea.vmem [#allocation4], %s523
          %s525 = smul.u32 4, %s20
          %s526 = smul.addr %s525, 16
          %s527 = sadd.s32 %s21, %s526
          %s528 = smul.addr %s527, 8
          %s529 = scalar_lea.vmem %s3, %s528
          // Predicated region
          $region101: #{a_call__.1} parent=99 // pred_check
            _
          $region102: #{a_call__.1} parent=99 // pred_check_branch
            %531 = sbr.rel (0) target = $region104
          $region103: #{a_call__.1} parent=99 // pred_region
            // Predicated region
            $region105: #{a_call__.1} parent=103 // pred_check
              _
            $region106: #{a_call__.1} parent=103 // pred_check_branch
              %533 = sbr.rel (0) target = $region108
            $region107: #{a_call__.1} parent=103 // pred_region
              // Predicated region
              $region120: #{a_call__.1} parent=107 // pred_check
                _
              $region121: #{a_call__.1} parent=107 // pred_check_branch
                %611 = sbr.rel (0) target = $region123
              $region122: #{a_call__.1} parent=107 // pred_region
                loop: start=0, step=1, limit=1
                $region124: #{a_call__.1} parent=122 // loop_pre_header
                  _
                $region125: #{a_call__.1} parent=122 // loop_header
                  %s613 = sphi 0, %s617
                  %p614 = scmp.ge.s32.totalorder %s613, 1
                  %s618 = sphi %s529, %s529
                  %s619 = sphi %s524, %s524
                $region126: #{a_call__.1} parent=122 // loop_header_branch
                  %616 = sbr.rel (%p614) target = $region130
                $region127: #{a_call__.1} parent=122 // loop_body
                  %v620 = vld [vmem:[%s618] sm:$0xff]
                  %621 = vst [vmem:[%s619] sm:$0xff] %v620
                  %v622 = vld [vmem:[%s618 + $0x10] sm:$0xff]
                  %623 = vst [vmem:[%s619 + $0x8] sm:$0xff] %v622
                  %v624 = vld [vmem:[%s618 + $0x20] sm:$0xff]
                  %625 = vst [vmem:[%s619 + $0x10] sm:$0xff] %v624
                  %v626 = vld [vmem:[%s618 + $0x30] sm:$0xff]
                  %627 = vst [vmem:[%s619 + $0x18] sm:$0xff] %v626
                  %v628 = vld [vmem:[%s618 + $0x40] sm:$0xff]
                  %629 = vst [vmem:[%s619 + $0x20] sm:$0xff] %v628
                  %v630 = vld [vmem:[%s618 + $0x50] sm:$0xff]
                  %631 = vst [vmem:[%s619 + $0x28] sm:$0xff] %v630
                  %v632 = vld [vmem:[%s618 + $0x60] sm:$0xff]
                  %633 = vst [vmem:[%s619 + $0x30] sm:$0xff] %v632
                  %v634 = vld [vmem:[%s618 + $0x70] sm:$0xff]
                  %635 = vst [vmem:[%s619 + $0x38] sm:$0xff] %v634
                  %v636 = vld [vmem:[%s618 + $0x80] sm:$0xff]
                  %637 = vst [vmem:[%s619 + $0x40] sm:$0xff] %v636
                  %v638 = vld [vmem:[%s618 + $0x90] sm:$0xff]
                  %639 = vst [vmem:[%s619 + $0x48] sm:$0xff] %v638
                  %v640 = vld [vmem:[%s618 + $0xa0] sm:$0xff]
                  %641 = vst [vmem:[%s619 + $0x50] sm:$0xff] %v640
                  %v642 = vld [vmem:[%s618 + $0xb0] sm:$0xff]
                  %643 = vst [vmem:[%s619 + $0x58] sm:$0xff] %v642
                  %v644 = vld [vmem:[%s618 + $0xc0] sm:$0xff]
                  %645 = vst [vmem:[%s619 + $0x60] sm:$0xff] %v644
                  %v646 = vld [vmem:[%s618 + $0xd0] sm:$0xff]
                  %647 = vst [vmem:[%s619 + $0x68] sm:$0xff] %v646
                  %v648 = vld [vmem:[%s618 + $0xe0] sm:$0xff]
                  %649 = vst [vmem:[%s619 + $0x70] sm:$0xff] %v648
                  %v650 = vld [vmem:[%s618 + $0xf0] sm:$0xff]
                  %651 = vst [vmem:[%s619 + $0x78] sm:$0xff] %v650
                  %v652 = vld [vmem:[%s618 + $0x100] sm:$0xff]
                  %653 = vst [vmem:[%s619 + $0x80] sm:$0xff] %v652
                  %v654 = vld [vmem:[%s618 + $0x110] sm:$0xff]
                  %655 = vst [vmem:[%s619 + $0x88] sm:$0xff] %v654
                  %v656 = vld [vmem:[%s618 + $0x120] sm:$0xff]
                  %657 = vst [vmem:[%s619 + $0x90] sm:$0xff] %v656
                  %v658 = vld [vmem:[%s618 + $0x130] sm:$0xff]
                  %659 = vst [vmem:[%s619 + $0x98] sm:$0xff] %v658
                  %v660 = vld [vmem:[%s618 + $0x140] sm:$0xff]
                  %661 = vst [vmem:[%s619 + $0xa0] sm:$0xff] %v660
                  %v662 = vld [vmem:[%s618 + $0x150] sm:$0xff]
                  %663 = vst [vmem:[%s619 + $0xa8] sm:$0xff] %v662
                  %v664 = vld [vmem:[%s618 + $0x160] sm:$0xff]
                  %665 = vst [vmem:[%s619 + $0xb0] sm:$0xff] %v664
                  %v666 = vld [vmem:[%s618 + $0x170] sm:$0xff]
                  %667 = vst [vmem:[%s619 + $0xb8] sm:$0xff] %v666
                  %v668 = vld [vmem:[%s618 + $0x180] sm:$0xff]
                  %669 = vst [vmem:[%s619 + $0xc0] sm:$0xff] %v668
                  %v670 = vld [vmem:[%s618 + $0x190] sm:$0xff]
                  %671 = vst [vmem:[%s619 + $0xc8] sm:$0xff] %v670
                  %v672 = vld [vmem:[%s618 + $0x1a0] sm:$0xff]
                  %673 = vst [vmem:[%s619 + $0xd0] sm:$0xff] %v672
                  %v674 = vld [vmem:[%s618 + $0x1b0] sm:$0xff]
                  %675 = vst [vmem:[%s619 + $0xd8] sm:$0xff] %v674
                  %v676 = vld [vmem:[%s618 + $0x1c0] sm:$0xff]
                  %677 = vst [vmem:[%s619 + $0xe0] sm:$0xff] %v676
                  %v678 = vld [vmem:[%s618 + $0x1d0] sm:$0xff]
                  %679 = vst [vmem:[%s619 + $0xe8] sm:$0xff] %v678
                  %v680 = vld [vmem:[%s618 + $0x1e0] sm:$0xff]
                  %681 = vst [vmem:[%s619 + $0xf0] sm:$0xff] %v680
                  %v682 = vld [vmem:[%s618 + $0x1f0] sm:$0xff]
                  %683 = vst [vmem:[%s619 + $0xf8] sm:$0xff] %v682
                $region128: #{a_call__.1} parent=122 // loop_footer
                  %s617 = sadd.s32 1, %s613
                $region129: #{a_call__.1} parent=122 // loop_footer_branch
                  %612 = sbr.rel target = $region125
                $region130: #{a_call__.1} parent=122 // loop_exit
                  _
              $region123: #{a_call__.1} parent=107 // pred_fallthru
                _
              // Predicated region
              $region131: #{a_call__.1} parent=107 // pred_check
                _
              $region132: #{a_call__.1} parent=107 // pred_check_branch
                %685 = sbr.rel target = $region134
              $region133: #{a_call__.1} parent=107 // pred_region
                _
              $region134: #{a_call__.1} parent=107 // pred_fallthru
                _
            $region108: #{a_call__.1} parent=103 // pred_fallthru
              _
            // Predicated region
            $region109: #{a_call__.1} parent=103 // pred_check
              _
            $region110: #{a_call__.1} parent=103 // pred_check_branch
              %535 = sbr.rel target = $region112
            $region111: #{a_call__.1} parent=103 // pred_region
              %s537 = ssub.s32 256, 1
              loop: start=0, step=1, limit=1
              $region113: #{a_call__.1} parent=111 // loop_pre_header
                _
              $region114: #{a_call__.1} parent=111 // loop_header
                %s539 = sphi 0, %s543
                %p540 = scmp.ge.s32.totalorder %s539, 1
                %s544 = sphi %s529, %s529
                %s545 = sphi %s524, %s524
              $region115: #{a_call__.1} parent=111 // loop_header_branch
                %542 = sbr.rel (%p540) target = $region119
              $region116: #{a_call__.1} parent=111 // loop_body
                %v546 = vld [vmem:[%s544] sm:%s537]
                %547 = vst [vmem:[%s545] sm:%s537] %v546
                %v548 = vld [vmem:[%s544 + $0x10] sm:%s537]
                %549 = vst [vmem:[%s545 + $0x8] sm:%s537] %v548
                %v550 = vld [vmem:[%s544 + $0x20] sm:%s537]
                %551 = vst [vmem:[%s545 + $0x10] sm:%s537] %v550
                %v552 = vld [vmem:[%s544 + $0x30] sm:%s537]
                %553 = vst [vmem:[%s545 + $0x18] sm:%s537] %v552
                %v554 = vld [vmem:[%s544 + $0x40] sm:%s537]
                %555 = vst [vmem:[%s545 + $0x20] sm:%s537] %v554
                %v556 = vld [vmem:[%s544 + $0x50] sm:%s537]
                %557 = vst [vmem:[%s545 + $0x28] sm:%s537] %v556
                %v558 = vld [vmem:[%s544 + $0x60] sm:%s537]
                %559 = vst [vmem:[%s545 + $0x30] sm:%s537] %v558
                %v560 = vld [vmem:[%s544 + $0x70] sm:%s537]
                %561 = vst [vmem:[%s545 + $0x38] sm:%s537] %v560
                %v562 = vld [vmem:[%s544 + $0x80] sm:%s537]
                %563 = vst [vmem:[%s545 + $0x40] sm:%s537] %v562
                %v564 = vld [vmem:[%s544 + $0x90] sm:%s537]
                %565 = vst [vmem:[%s545 + $0x48] sm:%s537] %v564
                %v566 = vld [vmem:[%s544 + $0xa0] sm:%s537]
                %567 = vst [vmem:[%s545 + $0x50] sm:%s537] %v566
                %v568 = vld [vmem:[%s544 + $0xb0] sm:%s537]
                %569 = vst [vmem:[%s545 + $0x58] sm:%s537] %v568
                %v570 = vld [vmem:[%s544 + $0xc0] sm:%s537]
                %571 = vst [vmem:[%s545 + $0x60] sm:%s537] %v570
                %v572 = vld [vmem:[%s544 + $0xd0] sm:%s537]
                %573 = vst [vmem:[%s545 + $0x68] sm:%s537] %v572
                %v574 = vld [vmem:[%s544 + $0xe0] sm:%s537]
                %575 = vst [vmem:[%s545 + $0x70] sm:%s537] %v574
                %v576 = vld [vmem:[%s544 + $0xf0] sm:%s537]
                %577 = vst [vmem:[%s545 + $0x78] sm:%s537] %v576
                %v578 = vld [vmem:[%s544 + $0x100] sm:%s537]
                %579 = vst [vmem:[%s545 + $0x80] sm:%s537] %v578
                %v580 = vld [vmem:[%s544 + $0x110] sm:%s537]
                %581 = vst [vmem:[%s545 + $0x88] sm:%s537] %v580
                %v582 = vld [vmem:[%s544 + $0x120] sm:%s537]
                %583 = vst [vmem:[%s545 + $0x90] sm:%s537] %v582
                %v584 = vld [vmem:[%s544 + $0x130] sm:%s537]
                %585 = vst [vmem:[%s545 + $0x98] sm:%s537] %v584
                %v586 = vld [vmem:[%s544 + $0x140] sm:%s537]
                %587 = vst [vmem:[%s545 + $0xa0] sm:%s537] %v586
                %v588 = vld [vmem:[%s544 + $0x150] sm:%s537]
                %589 = vst [vmem:[%s545 + $0xa8] sm:%s537] %v588
                %v590 = vld [vmem:[%s544 + $0x160] sm:%s537]
                %591 = vst [vmem:[%s545 + $0xb0] sm:%s537] %v590
                %v592 = vld [vmem:[%s544 + $0x170] sm:%s537]
                %593 = vst [vmem:[%s545 + $0xb8] sm:%s537] %v592
                %v594 = vld [vmem:[%s544 + $0x180] sm:%s537]
                %595 = vst [vmem:[%s545 + $0xc0] sm:%s537] %v594
                %v596 = vld [vmem:[%s544 + $0x190] sm:%s537]
                %597 = vst [vmem:[%s545 + $0xc8] sm:%s537] %v596
                %v598 = vld [vmem:[%s544 + $0x1a0] sm:%s537]
                %599 = vst [vmem:[%s545 + $0xd0] sm:%s537] %v598
                %v600 = vld [vmem:[%s544 + $0x1b0] sm:%s537]
                %601 = vst [vmem:[%s545 + $0xd8] sm:%s537] %v600
                %v602 = vld [vmem:[%s544 + $0x1c0] sm:%s537]
                %603 = vst [vmem:[%s545 + $0xe0] sm:%s537] %v602
                %v604 = vld [vmem:[%s544 + $0x1d0] sm:%s537]
                %605 = vst [vmem:[%s545 + $0xe8] sm:%s537] %v604
                %v606 = vld [vmem:[%s544 + $0x1e0] sm:%s537]
                %607 = vst [vmem:[%s545 + $0xf0] sm:%s537] %v606
                %v608 = vld [vmem:[%s544 + $0x1f0] sm:%s537]
                %609 = vst [vmem:[%s545 + $0xf8] sm:%s537] %v608
              $region117: #{a_call__.1} parent=111 // loop_footer
                %s543 = sadd.s32 1, %s539
              $region118: #{a_call__.1} parent=111 // loop_footer_branch
                %538 = sbr.rel target = $region114
              $region119: #{a_call__.1} parent=111 // loop_exit
                _
            $region112: #{a_call__.1} parent=103 // pred_fallthru
              _
          $region104: #{a_call__.1} parent=99 // pred_fallthru
            _
          %686 = vnop
        $region100: #{a_call__.1} parent=19 // pred_fallthru
          _
      $region20: #{a_call__.1} parent=5 // pred_fallthru
        _
      %p687 = scmp.le.s32.totalorder 1, %s13
      %p688 = scmp.lt.s32.totalorder %s13, 3
      %p689 = pnand %p687, %p688
      %p690 = pneg %p689
      // Predicated region
      $region135: #{a_call__.1} parent=5 // pred_check
        _
      $region136: #{a_call__.1} parent=5 // pred_check_branch
        %692 = sbr.rel (%p689) target = $region138
      $region137: #{a_call__.1} parent=5 // pred_region
        %s693 = ssub.s32 %s13, 1
        %s694 = sand.u32 %s61, 1
        %s695 = sand.u32 %s61, 1
        %s696 = smul.addr %s695, 256
        %s697 = scalar_lea.vmem [#allocation2], %s696
        // Predicated region
        $region139: #{a_call__.1} parent=137 // pred_check
          %p698 = pneg %p74
        $region140: #{a_call__.1} parent=137 // pred_check_branch
          %700 = sbr.rel (%p698) target = $region142
        $region141: #{a_call__.1} parent=137 // pred_region
          _
        $region142: #{a_call__.1} parent=137 // pred_fallthru
          _
        %s701 = sand.u32 %s89, 1
        %s702 = sand.u32 %s89, 1
        %s703 = smul.addr %s702, 256
        %s704 = scalar_lea.vmem [#allocation3], %s703
        // Predicated region
        $region143: #{a_call__.1} parent=137 // pred_check
          %p705 = pneg %p102
        $region144: #{a_call__.1} parent=137 // pred_check_branch
          %707 = sbr.rel (%p705) target = $region146
        $region145: #{a_call__.1} parent=137 // pred_region
          _
        $region146: #{a_call__.1} parent=137 // pred_fallthru
          _
        %s708 = sand.u32 %s117, 1
        %s709 = sand.u32 %s117, 1
        %s710 = smul.addr %s709, 256
        %s711 = scalar_lea.vmem [#allocation4], %s710
        // Predicated region
        $region147: #{a_call__.1} parent=137 // pred_check
          %p712 = pneg %p130
        $region148: #{a_call__.1} parent=137 // pred_check_branch
          %714 = sbr.rel (%p712) target = $region150
        $region149: #{a_call__.1} parent=137 // pred_region
          _
        $region150: #{a_call__.1} parent=137 // pred_fallthru
          _
        %p715 = pneg %p46
        %p716 = pneg %p43
        %s717 = sand.u32 %s61, 1
        %s718 = sand.u32 %s61, 1
        %s719 = smul.addr %s718, 256
        %s720 = scalar_lea.vmem [#allocation2], %s719
        %p721 = pneg %p74
        %p722 = pneg %p71
        %s723 = sand.u32 %s89, 1
        %s724 = sand.u32 %s89, 1
        %s725 = smul.addr %s724, 256
        %s726 = scalar_lea.vmem [#allocation3], %s725
        %p727 = pneg %p102
        %p728 = pneg %p99
        %s729 = sand.u32 %s117, 1
        %s730 = sand.u32 %s117, 1
        %s731 = smul.addr %s730, 256
        %s732 = scalar_lea.vmem [#allocation4], %s731
        %p733 = pneg %p130
        %p734 = pneg %p127
        %p735 = pneg %p158
        %p736 = pneg %p155
        %s737 = sand.u32 %s145, 1
        %s738 = scalar_lea.sflag [#allocation6], %s737
        %s739 = sand.u32 %s145, 1
        %s740 = smul.addr %s739, 256
        %s741 = scalar_lea.vmem [#allocation5], %s740
        %s742 = smul.u32 4, %s22
        %s743 = smul.u32 4, %s22
        %s744 = smul.u32 4, %s22
        %s745 = smul.u32 4, %s22
        %v747 = vld [vmem:[%s697] sm:$0xff]
        %v748 = vld [vmem:[%s697 + $0x8] sm:$0xff]
        %v749 = vld [vmem:[%s697 + $0x10] sm:$0xff]
        %v750 = vld [vmem:[%s697 + $0x18] sm:$0xff]
        %v751 = vld [vmem:[%s697 + $0x20] sm:$0xff]
        %v752 = vld [vmem:[%s697 + $0x28] sm:$0xff]
        %v753 = vld [vmem:[%s697 + $0x30] sm:$0xff]
        %v754 = vld [vmem:[%s697 + $0x38] sm:$0xff]
        %v755 = vld [vmem:[%s697 + $0x40] sm:$0xff]
        %v756 = vld [vmem:[%s697 + $0x48] sm:$0xff]
        %v757 = vld [vmem:[%s697 + $0x50] sm:$0xff]
        %v758 = vld [vmem:[%s697 + $0x58] sm:$0xff]
        %v759 = vld [vmem:[%s697 + $0x60] sm:$0xff]
        %v760 = vld [vmem:[%s697 + $0x68] sm:$0xff]
        %v761 = vld [vmem:[%s697 + $0x70] sm:$0xff]
        %v762 = vld [vmem:[%s697 + $0x78] sm:$0xff]
        %v763 = vld [vmem:[%s697 + $0x80] sm:$0xff]
        %v764 = vld [vmem:[%s697 + $0x88] sm:$0xff]
        %v765 = vld [vmem:[%s697 + $0x90] sm:$0xff]
        %v766 = vld [vmem:[%s697 + $0x98] sm:$0xff]
        %v767 = vld [vmem:[%s697 + $0xa0] sm:$0xff]
        %v768 = vld [vmem:[%s697 + $0xa8] sm:$0xff]
        %v769 = vld [vmem:[%s697 + $0xb0] sm:$0xff]
        %v770 = vld [vmem:[%s697 + $0xb8] sm:$0xff]
        %v771 = vld [vmem:[%s697 + $0xc0] sm:$0xff]
        %v772 = vld [vmem:[%s697 + $0xc8] sm:$0xff]
        %v773 = vld [vmem:[%s697 + $0xd0] sm:$0xff]
        %v774 = vld [vmem:[%s697 + $0xd8] sm:$0xff]
        %v775 = vld [vmem:[%s697 + $0xe0] sm:$0xff]
        %v776 = vld [vmem:[%s697 + $0xe8] sm:$0xff]
        %v777 = vld [vmem:[%s697 + $0xf0] sm:$0xff]
        %v778 = vld [vmem:[%s697 + $0xf8] sm:$0xff]
        %v779 = vmul.f32 %v747, 0.25
        %v780 = vmul.f32 %v748, 0.25
        %v781 = vmul.f32 %v749, 0.25
        %v782 = vmul.f32 %v750, 0.25
        %v783 = vmul.f32 %v751, 0.25
        %v784 = vmul.f32 %v752, 0.25
        %v785 = vmul.f32 %v753, 0.25
        %v786 = vmul.f32 %v754, 0.25
        %v787 = vmul.f32 %v755, 0.25
        %v788 = vmul.f32 %v756, 0.25
        %v789 = vmul.f32 %v757, 0.25
        %v790 = vmul.f32 %v758, 0.25
        %v791 = vmul.f32 %v759, 0.25
        %v792 = vmul.f32 %v760, 0.25
        %v793 = vmul.f32 %v761, 0.25
        %v794 = vmul.f32 %v762, 0.25
        %v795 = vmul.f32 %v763, 0.25
        %v796 = vmul.f32 %v764, 0.25
        %v797 = vmul.f32 %v765, 0.25
        %v798 = vmul.f32 %v766, 0.25
        %v799 = vmul.f32 %v767, 0.25
        %v800 = vmul.f32 %v768, 0.25
        %v801 = vmul.f32 %v769, 0.25
        %v802 = vmul.f32 %v770, 0.25
        %v803 = vmul.f32 %v771, 0.25
        %v804 = vmul.f32 %v772, 0.25
        %v805 = vmul.f32 %v773, 0.25
        %v806 = vmul.f32 %v774, 0.25
        %v807 = vmul.f32 %v775, 0.25
        %v808 = vmul.f32 %v776, 0.25
        %v809 = vmul.f32 %v777, 0.25
        %v810 = vmul.f32 %v778, 0.25
        %v811 = vld [vmem:[%s704] sm:$0xff]
        %v812 = vld [vmem:[%s704 + $0x8] sm:$0xff]
        %v813 = vld [vmem:[%s704 + $0x10] sm:$0xff]
        %v814 = vld [vmem:[%s704 + $0x18] sm:$0xff]
        %v815 = vld [vmem:[%s704 + $0x20] sm:$0xff]
        %v816 = vld [vmem:[%s704 + $0x28] sm:$0xff]
        %v817 = vld [vmem:[%s704 + $0x30] sm:$0xff]
        %v818 = vld [vmem:[%s704 + $0x38] sm:$0xff]
        %v819 = vld [vmem:[%s704 + $0x40] sm:$0xff]
        %v820 = vld [vmem:[%s704 + $0x48] sm:$0xff]
        %v821 = vld [vmem:[%s704 + $0x50] sm:$0xff]
        %v822 = vld [vmem:[%s704 + $0x58] sm:$0xff]
        %v823 = vld [vmem:[%s704 + $0x60] sm:$0xff]
        %v824 = vld [vmem:[%s704 + $0x68] sm:$0xff]
        %v825 = vld [vmem:[%s704 + $0x70] sm:$0xff]
        %v826 = vld [vmem:[%s704 + $0x78] sm:$0xff]
        %v827 = vld [vmem:[%s704 + $0x80] sm:$0xff]
        %v828 = vld [vmem:[%s704 + $0x88] sm:$0xff]
        %v829 = vld [vmem:[%s704 + $0x90] sm:$0xff]
        %v830 = vld [vmem:[%s704 + $0x98] sm:$0xff]
        %v831 = vld [vmem:[%s704 + $0xa0] sm:$0xff]
        %v832 = vld [vmem:[%s704 + $0xa8] sm:$0xff]
        %v833 = vld [vmem:[%s704 + $0xb0] sm:$0xff]
        %v834 = vld [vmem:[%s704 + $0xb8] sm:$0xff]
        %v835 = vld [vmem:[%s704 + $0xc0] sm:$0xff]
        %v836 = vld [vmem:[%s704 + $0xc8] sm:$0xff]
        %v837 = vld [vmem:[%s704 + $0xd0] sm:$0xff]
        %v838 = vld [vmem:[%s704 + $0xd8] sm:$0xff]
        %v839 = vld [vmem:[%s704 + $0xe0] sm:$0xff]
        %v840 = vld [vmem:[%s704 + $0xe8] sm:$0xff]
        %v841 = vld [vmem:[%s704 + $0xf0] sm:$0xff]
        %v842 = vld [vmem:[%s704 + $0xf8] sm:$0xff]
        %v843 = vld [vmem:[%s711] sm:$0xff]
        %v844 = vld [vmem:[%s711 + $0x8] sm:$0xff]
        %v845 = vld [vmem:[%s711 + $0x10] sm:$0xff]
        %v846 = vld [vmem:[%s711 + $0x18] sm:$0xff]
        %v847 = vld [vmem:[%s711 + $0x20] sm:$0xff]
        %v848 = vld [vmem:[%s711 + $0x28] sm:$0xff]
        %v849 = vld [vmem:[%s711 + $0x30] sm:$0xff]
        %v850 = vld [vmem:[%s711 + $0x38] sm:$0xff]
        %v851 = vld [vmem:[%s711 + $0x40] sm:$0xff]
        %v852 = vld [vmem:[%s711 + $0x48] sm:$0xff]
        %v853 = vld [vmem:[%s711 + $0x50] sm:$0xff]
        %v854 = vld [vmem:[%s711 + $0x58] sm:$0xff]
        %v855 = vld [vmem:[%s711 + $0x60] sm:$0xff]
        %v856 = vld [vmem:[%s711 + $0x68] sm:$0xff]
        %v857 = vld [vmem:[%s711 + $0x70] sm:$0xff]
        %v858 = vld [vmem:[%s711 + $0x78] sm:$0xff]
        %v859 = vld [vmem:[%s711 + $0x80] sm:$0xff]
        %v860 = vld [vmem:[%s711 + $0x88] sm:$0xff]
        %v861 = vld [vmem:[%s711 + $0x90] sm:$0xff]
        %v862 = vld [vmem:[%s711 + $0x98] sm:$0xff]
        %v863 = vld [vmem:[%s711 + $0xa0] sm:$0xff]
        %v864 = vld [vmem:[%s711 + $0xa8] sm:$0xff]
        %v865 = vld [vmem:[%s711 + $0xb0] sm:$0xff]
        %v866 = vld [vmem:[%s711 + $0xb8] sm:$0xff]
        %v867 = vld [vmem:[%s711 + $0xc0] sm:$0xff]
        %v868 = vld [vmem:[%s711 + $0xc8] sm:$0xff]
        %v869 = vld [vmem:[%s711 + $0xd0] sm:$0xff]
        %v870 = vld [vmem:[%s711 + $0xd8] sm:$0xff]
        %v871 = vld [vmem:[%s711 + $0xe0] sm:$0xff]
        %v872 = vld [vmem:[%s711 + $0xe8] sm:$0xff]
        %v873 = vld [vmem:[%s711 + $0xf0] sm:$0xff]
        %v874 = vld [vmem:[%s711 + $0xf8] sm:$0xff]
        %v875 = vld [vmem:[%s0] sm:$0xff]
        %v876 = vld [vmem:[%s0 + $0x8] sm:$0xff]
        %v877 = vld [vmem:[%s0 + $0x10] sm:$0xff]
        %v878 = vld [vmem:[%s0 + $0x18] sm:$0xff]
        %v879 = vld [vmem:[%s0 + $0x20] sm:$0xff]
        %v880 = vld [vmem:[%s0 + $0x28] sm:$0xff]
        %v881 = vld [vmem:[%s0 + $0x30] sm:$0xff]
        %v882 = vld [vmem:[%s0 + $0x38] sm:$0xff]
        %v883 = vld [vmem:[%s0 + $0x40] sm:$0xff]
        %v884 = vld [vmem:[%s0 + $0x48] sm:$0xff]
        %v885 = vld [vmem:[%s0 + $0x50] sm:$0xff]
        %v886 = vld [vmem:[%s0 + $0x58] sm:$0xff]
        %v887 = vld [vmem:[%s0 + $0x60] sm:$0xff]
        %v888 = vld [vmem:[%s0 + $0x68] sm:$0xff]
        %v889 = vld [vmem:[%s0 + $0x70] sm:$0xff]
        %v890 = vld [vmem:[%s0 + $0x78] sm:$0xff]
        %v891 = vpack.c.bf16 %v779, %v779
        %v892 = vpack.c.bf16 %v780, %v780
        %v893 = vpack.c.bf16 %v781, %v781
        %v894 = vpack.c.bf16 %v782, %v782
        %v895 = vpack.c.bf16 %v783, %v783
        %v896 = vpack.c.bf16 %v784, %v784
        %v897 = vpack.c.bf16 %v785, %v785
        %v898 = vpack.c.bf16 %v786, %v786
        %v899 = vpack.c.bf16 %v787, %v787
        %v900 = vpack.c.bf16 %v788, %v788
        %v901 = vpack.c.bf16 %v789, %v789
        %v902 = vpack.c.bf16 %v790, %v790
        %v903 = vpack.c.bf16 %v791, %v791
        %v904 = vpack.c.bf16 %v792, %v792
        %v905 = vpack.c.bf16 %v793, %v793
        %v906 = vpack.c.bf16 %v794, %v794
        %v907 = vpack.c.bf16 %v795, %v795
        %v908 = vpack.c.bf16 %v796, %v796
        %v909 = vpack.c.bf16 %v797, %v797
        %v910 = vpack.c.bf16 %v798, %v798
        %v911 = vpack.c.bf16 %v799, %v799
        %v912 = vpack.c.bf16 %v800, %v800
        %v913 = vpack.c.bf16 %v801, %v801
        %v914 = vpack.c.bf16 %v802, %v802
        %v915 = vpack.c.bf16 %v803, %v803
        %v916 = vpack.c.bf16 %v804, %v804
        %v917 = vpack.c.bf16 %v805, %v805
        %v918 = vpack.c.bf16 %v806, %v806
        %v919 = vpack.c.bf16 %v807, %v807
        %v920 = vpack.c.bf16 %v808, %v808
        %v921 = vpack.c.bf16 %v809, %v809
        %v922 = vpack.c.bf16 %v810, %v810
        %v923 = vpack.c.bf16 %v811, %v811
        %v924 = vpack.c.bf16 %v812, %v812
        %v925 = vpack.c.bf16 %v813, %v813
        %v926 = vpack.c.bf16 %v814, %v814
        %v927 = vpack.c.bf16 %v815, %v815
        %v928 = vpack.c.bf16 %v816, %v816
        %v929 = vpack.c.bf16 %v817, %v817
        %v930 = vpack.c.bf16 %v818, %v818
        %v931 = vpack.c.bf16 %v819, %v819
        %v932 = vpack.c.bf16 %v820, %v820
        %v933 = vpack.c.bf16 %v821, %v821
        %v934 = vpack.c.bf16 %v822, %v822
        %v935 = vpack.c.bf16 %v823, %v823
        %v936 = vpack.c.bf16 %v824, %v824
        %v937 = vpack.c.bf16 %v825, %v825
        %v938 = vpack.c.bf16 %v826, %v826
        %v939 = vpack.c.bf16 %v827, %v827
        %v940 = vpack.c.bf16 %v828, %v828
        %v941 = vpack.c.bf16 %v829, %v829
        %v942 = vpack.c.bf16 %v830, %v830
        %v943 = vpack.c.bf16 %v831, %v831
        %v944 = vpack.c.bf16 %v832, %v832
        %v945 = vpack.c.bf16 %v833, %v833
        %v946 = vpack.c.bf16 %v834, %v834
        %v947 = vpack.c.bf16 %v835, %v835
        %v948 = vpack.c.bf16 %v836, %v836
        %v949 = vpack.c.bf16 %v837, %v837
        %v950 = vpack.c.bf16 %v838, %v838
        %v951 = vpack.c.bf16 %v839, %v839
        %v952 = vpack.c.bf16 %v840, %v840
        %v953 = vpack.c.bf16 %v841, %v841
        %v954 = vpack.c.bf16 %v842, %v842
        %v955 = vpack.c.bf16 %v843, %v843
        %v956 = vpack.c.bf16 %v844, %v844
        %v957 = vpack.c.bf16 %v845, %v845
        %v958 = vpack.c.bf16 %v846, %v846
        %v959 = vpack.c.bf16 %v847, %v847
        %v960 = vpack.c.bf16 %v848, %v848
        %v961 = vpack.c.bf16 %v849, %v849
        %v962 = vpack.c.bf16 %v850, %v850
        %v963 = vpack.c.bf16 %v851, %v851
        %v964 = vpack.c.bf16 %v852, %v852
        %v965 = vpack.c.bf16 %v853, %v853
        %v966 = vpack.c.bf16 %v854, %v854
        %v967 = vpack.c.bf16 %v855, %v855
        %v968 = vpack.c.bf16 %v856, %v856
        %v969 = vpack.c.bf16 %v857, %v857
        %v970 = vpack.c.bf16 %v858, %v858
        %v971 = vpack.c.bf16 %v859, %v859
        %v972 = vpack.c.bf16 %v860, %v860
        %v973 = vpack.c.bf16 %v861, %v861
        %v974 = vpack.c.bf16 %v862, %v862
        %v975 = vpack.c.bf16 %v863, %v863
        %v976 = vpack.c.bf16 %v864, %v864
        %v977 = vpack.c.bf16 %v865, %v865
        %v978 = vpack.c.bf16 %v866, %v866
        %v979 = vpack.c.bf16 %v867, %v867
        %v980 = vpack.c.bf16 %v868, %v868
        %v981 = vpack.c.bf16 %v869, %v869
        %v982 = vpack.c.bf16 %v870, %v870
        %v983 = vpack.c.bf16 %v871, %v871
        %v984 = vpack.c.bf16 %v872, %v872
        %v985 = vpack.c.bf16 %v873, %v873
        %v986 = vpack.c.bf16 %v874, %v874
        %v995 = vunpack.c.l.b16 %v891
        %v996 = vunpack.c.l.b16 %v892
        %v997 = vunpack.c.l.b16 %v893
        %v998 = vunpack.c.l.b16 %v894
        %v999 = vunpack.c.l.b16 %v895
        %v1000 = vunpack.c.l.b16 %v896
        %v1001 = vunpack.c.l.b16 %v897
        %v1002 = vunpack.c.l.b16 %v898
        %v1003 = vpack.c.b16 %v996, %v995
        %v1004 = vpack.c.b16 %v998, %v997
        %v1005 = vpack.c.b16 %v1000, %v999
        %v1006 = vpack.c.b16 %v1002, %v1001
        %v1015 = vunpack.c.l.b16 %v923
        %v1016 = vunpack.c.l.b16 %v924
        %v1017 = vunpack.c.l.b16 %v925
        %v1018 = vunpack.c.l.b16 %v926
        %v1019 = vunpack.c.l.b16 %v927
        %v1020 = vunpack.c.l.b16 %v928
        %v1021 = vunpack.c.l.b16 %v929
        %v1022 = vunpack.c.l.b16 %v930
        %v1023 = vpack.c.b16 %v1016, %v1015
        %v1024 = vpack.c.b16 %v1018, %v1017
        %v1025 = vpack.c.b16 %v1020, %v1019
        %v1026 = vpack.c.b16 %v1022, %v1021
        %vm1027 = vcmask 130048
        %v1029 = vsel %vm1027, %v1003, 0
        %v1032 = vsel %vm1027, %v1004, 0
        %v1035 = vsel %vm1027, %v1005, 0
        %v1038 = vsel %vm1027, %v1006, 0
        %v1041 = vsel %vm1027, %v1023, 0
        %v1044 = vsel %vm1027, %v1024, 0
        %v1047 = vsel %vm1027, %v1025, 0
        %v1050 = vsel %vm1027, %v1026, 0
        %1052 = vmatpush.bf16.xpose.msra.mxu0 0
        %1053 = vmatpush.bf16.xpose.msra.mxu0 0
        %1054 = vmatpush.bf16.xpose.msra.mxu0 0
        %1055 = vmatpush.bf16.xpose.msra.mxu0 0
        %1056 = vmatpush.bf16.xpose.msra.mxu0 %v1050
        %1057 = vmatpush.bf16.xpose.msra.mxu0 %v1047
        %1058 = vmatpush.bf16.xpose.msra.mxu0 %v1044
        %1059 = vmatpush.bf16.xpose.msra.mxu0 %v1041
        %1060 = vmatmul.bf16.gmra.mxu0 %v1029
        %v1061 = vpop.f32.mrf.mxu0
        %v1062 = vadd.f32 %v875, %v1061
        %v1063 = vpop.f32.mrf.mxu0
        %v1064 = vadd.f32 %v876, %v1063
        %1065 = vmatmul.bf16.gmra.mxu0 %v1032
        %v1066 = vpop.f32.mrf.mxu0
        %v1067 = vadd.f32 %v877, %v1066
        %v1068 = vpop.f32.mrf.mxu0
        %v1069 = vadd.f32 %v878, %v1068
        %1070 = vmatmul.bf16.gmra.mxu0 %v1035
        %v1071 = vpop.f32.mrf.mxu0
        %v1072 = vadd.f32 %v879, %v1071
        %v1073 = vpop.f32.mrf.mxu0
        %v1074 = vadd.f32 %v880, %v1073
        %1075 = vmatmul.bf16.gmra.mxu0 %v1038
        %v1076 = vpop.f32.mrf.mxu0
        %v1077 = vadd.f32 %v881, %v1076
        %v1078 = vpop.f32.mrf.mxu0
        %v1079 = vadd.f32 %v882, %v1078
        %1080 = vdwg.mxu0
        %v1089 = vunpack.c.l.b16 %v899
        %v1090 = vunpack.c.l.b16 %v900
        %v1091 = vunpack.c.l.b16 %v901
        %v1092 = vunpack.c.l.b16 %v902
        %v1093 = vunpack.c.l.b16 %v903
        %v1094 = vunpack.c.l.b16 %v904
        %v1095 = vunpack.c.l.b16 %v905
        %v1096 = vunpack.c.l.b16 %v906
        %v1097 = vpack.c.b16 %v1090, %v1089
        %v1098 = vpack.c.b16 %v1092, %v1091
        %v1099 = vpack.c.b16 %v1094, %v1093
        %v1100 = vpack.c.b16 %v1096, %v1095
        %v1109 = vunpack.c.l.b16 %v931
        %v1110 = vunpack.c.l.b16 %v932
        %v1111 = vunpack.c.l.b16 %v933
        %v1112 = vunpack.c.l.b16 %v934
        %v1113 = vunpack.c.l.b16 %v935
        %v1114 = vunpack.c.l.b16 %v936
        %v1115 = vunpack.c.l.b16 %v937
        %v1116 = vunpack.c.l.b16 %v938
        %v1117 = vpack.c.b16 %v1110, %v1109
        %v1118 = vpack.c.b16 %v1112, %v1111
        %v1119 = vpack.c.b16 %v1114, %v1113
        %v1120 = vpack.c.b16 %v1116, %v1115
        %v1122 = vsel %vm1027, %v1097, 0
        %v1125 = vsel %vm1027, %v1098, 0
        %v1128 = vsel %vm1027, %v1099, 0
        %v1131 = vsel %vm1027, %v1100, 0
        %v1134 = vsel %vm1027, %v1117, 0
        %v1137 = vsel %vm1027, %v1118, 0
        %v1140 = vsel %vm1027, %v1119, 0
        %v1143 = vsel %vm1027, %v1120, 0
        %1145 = vmatpush.bf16.xpose.msra.mxu0 0
        %1146 = vmatpush.bf16.xpose.msra.mxu0 0
        %1147 = vmatpush.bf16.xpose.msra.mxu0 0
        %1148 = vmatpush.bf16.xpose.msra.mxu0 0
        %1149 = vmatpush.bf16.xpose.msra.mxu0 %v1143
        %1150 = vmatpush.bf16.xpose.msra.mxu0 %v1140
        %1151 = vmatpush.bf16.xpose.msra.mxu0 %v1137
        %1152 = vmatpush.bf16.xpose.msra.mxu0 %v1134
        %1153 = vmatmul.bf16.gmra.mxu0 %v1122
        %v1154 = vpop.f32.mrf.mxu0
        %v1155 = vadd.f32 %v875, %v1154
        %v1156 = vpop.f32.mrf.mxu0
        %v1157 = vadd.f32 %v876, %v1156
        %1158 = vmatmul.bf16.gmra.mxu0 %v1125
        %v1159 = vpop.f32.mrf.mxu0
        %v1160 = vadd.f32 %v877, %v1159
        %v1161 = vpop.f32.mrf.mxu0
        %v1162 = vadd.f32 %v878, %v1161
        %1163 = vmatmul.bf16.gmra.mxu0 %v1128
        %v1164 = vpop.f32.mrf.mxu0
        %v1165 = vadd.f32 %v879, %v1164
        %v1166 = vpop.f32.mrf.mxu0
        %v1167 = vadd.f32 %v880, %v1166
        %1168 = vmatmul.bf16.gmra.mxu0 %v1131
        %v1169 = vpop.f32.mrf.mxu0
        %v1170 = vadd.f32 %v881, %v1169
        %v1171 = vpop.f32.mrf.mxu0
        %v1172 = vadd.f32 %v882, %v1171
        %1173 = vdwg.mxu0
        %v1182 = vunpack.c.l.b16 %v907
        %v1183 = vunpack.c.l.b16 %v908
        %v1184 = vunpack.c.l.b16 %v909
        %v1185 = vunpack.c.l.b16 %v910
        %v1186 = vunpack.c.l.b16 %v911
        %v1187 = vunpack.c.l.b16 %v912
        %v1188 = vunpack.c.l.b16 %v913
        %v1189 = vunpack.c.l.b16 %v914
        %v1190 = vpack.c.b16 %v1183, %v1182
        %v1191 = vpack.c.b16 %v1185, %v1184
        %v1192 = vpack.c.b16 %v1187, %v1186
        %v1193 = vpack.c.b16 %v1189, %v1188
        %v1202 = vunpack.c.l.b16 %v939
        %v1203 = vunpack.c.l.b16 %v940
        %v1204 = vunpack.c.l.b16 %v941
        %v1205 = vunpack.c.l.b16 %v942
        %v1206 = vunpack.c.l.b16 %v943
        %v1207 = vunpack.c.l.b16 %v944
        %v1208 = vunpack.c.l.b16 %v945
        %v1209 = vunpack.c.l.b16 %v946
        %v1210 = vpack.c.b16 %v1203, %v1202
        %v1211 = vpack.c.b16 %v1205, %v1204
        %v1212 = vpack.c.b16 %v1207, %v1206
        %v1213 = vpack.c.b16 %v1209, %v1208
        %v1215 = vsel %vm1027, %v1190, 0
        %v1218 = vsel %vm1027, %v1191, 0
        %v1221 = vsel %vm1027, %v1192, 0
        %v1224 = vsel %vm1027, %v1193, 0
        %v1227 = vsel %vm1027, %v1210, 0
        %v1230 = vsel %vm1027, %v1211, 0
        %v1233 = vsel %vm1027, %v1212, 0
        %v1236 = vsel %vm1027, %v1213, 0
        %1238 = vmatpush.bf16.xpose.msra.mxu0 0
        %1239 = vmatpush.bf16.xpose.msra.mxu0 0
        %1240 = vmatpush.bf16.xpose.msra.mxu0 0
        %1241 = vmatpush.bf16.xpose.msra.mxu0 0
        %1242 = vmatpush.bf16.xpose.msra.mxu0 %v1236
        %1243 = vmatpush.bf16.xpose.msra.mxu0 %v1233
        %1244 = vmatpush.bf16.xpose.msra.mxu0 %v1230
        %1245 = vmatpush.bf16.xpose.msra.mxu0 %v1227
        %1246 = vmatmul.bf16.gmra.mxu0 %v1215
        %v1247 = vpop.f32.mrf.mxu0
        %v1248 = vadd.f32 %v875, %v1247
        %v1249 = vpop.f32.mrf.mxu0
        %v1250 = vadd.f32 %v876, %v1249
        %1251 = vmatmul.bf16.gmra.mxu0 %v1218
        %v1252 = vpop.f32.mrf.mxu0
        %v1253 = vadd.f32 %v877, %v1252
        %v1254 = vpop.f32.mrf.mxu0
        %v1255 = vadd.f32 %v878, %v1254
        %1256 = vmatmul.bf16.gmra.mxu0 %v1221
        %v1257 = vpop.f32.mrf.mxu0
        %v1258 = vadd.f32 %v879, %v1257
        %v1259 = vpop.f32.mrf.mxu0
        %v1260 = vadd.f32 %v880, %v1259
        %1261 = vmatmul.bf16.gmra.mxu0 %v1224
        %v1262 = vpop.f32.mrf.mxu0
        %v1263 = vadd.f32 %v881, %v1262
        %v1264 = vpop.f32.mrf.mxu0
        %v1265 = vadd.f32 %v882, %v1264
        %1266 = vdwg.mxu0
        %v1275 = vunpack.c.l.b16 %v915
        %v1276 = vunpack.c.l.b16 %v916
        %v1277 = vunpack.c.l.b16 %v917
        %v1278 = vunpack.c.l.b16 %v918
        %v1279 = vunpack.c.l.b16 %v919
        %v1280 = vunpack.c.l.b16 %v920
        %v1281 = vunpack.c.l.b16 %v921
        %v1282 = vunpack.c.l.b16 %v922
        %v1283 = vpack.c.b16 %v1276, %v1275
        %v1284 = vpack.c.b16 %v1278, %v1277
        %v1285 = vpack.c.b16 %v1280, %v1279
        %v1286 = vpack.c.b16 %v1282, %v1281
        %v1295 = vunpack.c.l.b16 %v947
        %v1296 = vunpack.c.l.b16 %v948
        %v1297 = vunpack.c.l.b16 %v949
        %v1298 = vunpack.c.l.b16 %v950
        %v1299 = vunpack.c.l.b16 %v951
        %v1300 = vunpack.c.l.b16 %v952
        %v1301 = vunpack.c.l.b16 %v953
        %v1302 = vunpack.c.l.b16 %v954
        %v1303 = vpack.c.b16 %v1296, %v1295
        %v1304 = vpack.c.b16 %v1298, %v1297
        %v1305 = vpack.c.b16 %v1300, %v1299
        %v1306 = vpack.c.b16 %v1302, %v1301
        %v1308 = vsel %vm1027, %v1283, 0
        %v1311 = vsel %vm1027, %v1284, 0
        %v1314 = vsel %vm1027, %v1285, 0
        %v1317 = vsel %vm1027, %v1286, 0
        %v1320 = vsel %vm1027, %v1303, 0
        %v1323 = vsel %vm1027, %v1304, 0
        %v1326 = vsel %vm1027, %v1305, 0
        %v1329 = vsel %vm1027, %v1306, 0
        %1331 = vmatpush.bf16.xpose.msra.mxu0 0
        %1332 = vmatpush.bf16.xpose.msra.mxu0 0
        %1333 = vmatpush.bf16.xpose.msra.mxu0 0
        %1334 = vmatpush.bf16.xpose.msra.mxu0 0
        %1335 = vmatpush.bf16.xpose.msra.mxu0 %v1329
        %1336 = vmatpush.bf16.xpose.msra.mxu0 %v1326
        %1337 = vmatpush.bf16.xpose.msra.mxu0 %v1323
        %1338 = vmatpush.bf16.xpose.msra.mxu0 %v1320
        %1339 = vmatmul.bf16.gmra.mxu0 %v1308
        %v1340 = vpop.f32.mrf.mxu0
        %v1341 = vadd.f32 %v875, %v1340
        %v1342 = vpop.f32.mrf.mxu0
        %v1343 = vadd.f32 %v876, %v1342
        %1344 = vmatmul.bf16.gmra.mxu0 %v1311
        %v1345 = vpop.f32.mrf.mxu0
        %v1346 = vadd.f32 %v877, %v1345
        %v1347 = vpop.f32.mrf.mxu0
        %v1348 = vadd.f32 %v878, %v1347
        %1349 = vmatmul.bf16.gmra.mxu0 %v1314
        %v1350 = vpop.f32.mrf.mxu0
        %v1351 = vadd.f32 %v879, %v1350
        %v1352 = vpop.f32.mrf.mxu0
        %v1353 = vadd.f32 %v880, %v1352
        %1354 = vmatmul.bf16.gmra.mxu0 %v1317
        %v1355 = vpop.f32.mrf.mxu0
        %v1356 = vadd.f32 %v881, %v1355
        %v1357 = vpop.f32.mrf.mxu0
        %v1358 = vadd.f32 %v882, %v1357
        %1359 = vdwg.mxu0
        %vm1360 = vcmask 523264
        %v1361 = vsel %vm1360, %v1062, -inf
        %1362 = vmax.xlane.f32.xlu0 %v1361
        %v1363 = vpop.xlane.xlu0 %1362
        %v1364 = vsel %vm1360, %v1064, -inf
        %1365 = vmax.xlane.f32.xlu0 %v1364
        %v1366 = vpop.xlane.xlu0 %1365
        %v1367 = vsel %vm1360, %v1067, -inf
        %1368 = vmax.xlane.f32.xlu0 %v1367
        %v1369 = vpop.xlane.xlu0 %1368
        %v1370 = vsel %vm1360, %v1069, -inf
        %1371 = vmax.xlane.f32.xlu0 %v1370
        %v1372 = vpop.xlane.xlu0 %1371
        %v1373 = vsel %vm1360, %v1072, -inf
        %1374 = vmax.xlane.f32.xlu0 %v1373
        %v1375 = vpop.xlane.xlu0 %1374
        %v1376 = vsel %vm1360, %v1074, -inf
        %1377 = vmax.xlane.f32.xlu0 %v1376
        %v1378 = vpop.xlane.xlu0 %1377
        %v1379 = vsel %vm1360, %v1077, -inf
        %1380 = vmax.xlane.f32.xlu0 %v1379
        %v1381 = vpop.xlane.xlu0 %1380
        %v1382 = vsel %vm1360, %v1079, -inf
        %1383 = vmax.xlane.f32.xlu0 %v1382
        %v1384 = vpop.xlane.xlu0 %1383
        %v1385 = vsel %vm1360, %v1155, -inf
        %1386 = vmax.xlane.f32.xlu0 %v1385
        %v1387 = vpop.xlane.xlu0 %1386
        %v1388 = vsel %vm1360, %v1157, -inf
        %1389 = vmax.xlane.f32.xlu0 %v1388
        %v1390 = vpop.xlane.xlu0 %1389
        %v1391 = vsel %vm1360, %v1160, -inf
        %1392 = vmax.xlane.f32.xlu0 %v1391
        %v1393 = vpop.xlane.xlu0 %1392
        %v1394 = vsel %vm1360, %v1162, -inf
        %1395 = vmax.xlane.f32.xlu0 %v1394
        %v1396 = vpop.xlane.xlu0 %1395
        %v1397 = vsel %vm1360, %v1165, -inf
        %1398 = vmax.xlane.f32.xlu0 %v1397
        %v1399 = vpop.xlane.xlu0 %1398
        %v1400 = vsel %vm1360, %v1167, -inf
        %1401 = vmax.xlane.f32.xlu0 %v1400
        %v1402 = vpop.xlane.xlu0 %1401
        %v1403 = vsel %vm1360, %v1170, -inf
        %1404 = vmax.xlane.f32.xlu0 %v1403
        %v1405 = vpop.xlane.xlu0 %1404
        %v1406 = vsel %vm1360, %v1172, -inf
        %1407 = vmax.xlane.f32.xlu0 %v1406
        %v1408 = vpop.xlane.xlu0 %1407
        %v1409 = vsel %vm1360, %v1248, -inf
        %1410 = vmax.xlane.f32.xlu0 %v1409
        %v1411 = vpop.xlane.xlu0 %1410
        %v1412 = vsel %vm1360, %v1250, -inf
        %1413 = vmax.xlane.f32.xlu0 %v1412
        %v1414 = vpop.xlane.xlu0 %1413
        %v1415 = vsel %vm1360, %v1253, -inf
        %1416 = vmax.xlane.f32.xlu0 %v1415
        %v1417 = vpop.xlane.xlu0 %1416
        %v1418 = vsel %vm1360, %v1255, -inf
        %1419 = vmax.xlane.f32.xlu0 %v1418
        %v1420 = vpop.xlane.xlu0 %1419
        %v1421 = vsel %vm1360, %v1258, -inf
        %1422 = vmax.xlane.f32.xlu0 %v1421
        %v1423 = vpop.xlane.xlu0 %1422
        %v1424 = vsel %vm1360, %v1260, -inf
        %1425 = vmax.xlane.f32.xlu0 %v1424
        %v1426 = vpop.xlane.xlu0 %1425
        %v1427 = vsel %vm1360, %v1263, -inf
        %1428 = vmax.xlane.f32.xlu0 %v1427
        %v1429 = vpop.xlane.xlu0 %1428
        %v1430 = vsel %vm1360, %v1265, -inf
        %1431 = vmax.xlane.f32.xlu0 %v1430
        %v1432 = vpop.xlane.xlu0 %1431
        %v1433 = vsel %vm1360, %v1341, -inf
        %1434 = vmax.xlane.f32.xlu0 %v1433
        %v1435 = vpop.xlane.xlu0 %1434
        %v1436 = vsel %vm1360, %v1343, -inf
        %1437 = vmax.xlane.f32.xlu0 %v1436
        %v1438 = vpop.xlane.xlu0 %1437
        %v1439 = vsel %vm1360, %v1346, -inf
        %1440 = vmax.xlane.f32.xlu0 %v1439
        %v1441 = vpop.xlane.xlu0 %1440
        %v1442 = vsel %vm1360, %v1348, -inf
        %1443 = vmax.xlane.f32.xlu0 %v1442
        %v1444 = vpop.xlane.xlu0 %1443
        %v1445 = vsel %vm1360, %v1351, -inf
        %1446 = vmax.xlane.f32.xlu0 %v1445
        %v1447 = vpop.xlane.xlu0 %1446
        %v1448 = vsel %vm1360, %v1353, -inf
        %1449 = vmax.xlane.f32.xlu0 %v1448
        %v1450 = vpop.xlane.xlu0 %1449
        %v1451 = vsel %vm1360, %v1356, -inf
        %1452 = vmax.xlane.f32.xlu0 %v1451
        %v1453 = vpop.xlane.xlu0 %1452
        %v1454 = vsel %vm1360, %v1358, -inf
        %1455 = vmax.xlane.f32.xlu0 %v1454
        %v1456 = vpop.xlane.xlu0 %1455
        %v1457 = vsub.f32 %v1062, %v1363
        %v1458 = vsub.f32 %v1064, %v1366
        %v1459 = vsub.f32 %v1067, %v1369
        %v1460 = vsub.f32 %v1069, %v1372
        %v1461 = vsub.f32 %v1072, %v1375
        %v1462 = vsub.f32 %v1074, %v1378
        %v1463 = vsub.f32 %v1077, %v1381
        %v1464 = vsub.f32 %v1079, %v1384
        %v1465 = vsub.f32 %v1155, %v1387
        %v1466 = vsub.f32 %v1157, %v1390
        %v1467 = vsub.f32 %v1160, %v1393
        %v1468 = vsub.f32 %v1162, %v1396
        %v1469 = vsub.f32 %v1165, %v1399
        %v1470 = vsub.f32 %v1167, %v1402
        %v1471 = vsub.f32 %v1170, %v1405
        %v1472 = vsub.f32 %v1172, %v1408
        %v1473 = vsub.f32 %v1248, %v1411
        %v1474 = vsub.f32 %v1250, %v1414
        %v1475 = vsub.f32 %v1253, %v1417
        %v1476 = vsub.f32 %v1255, %v1420
        %v1477 = vsub.f32 %v1258, %v1423
        %v1478 = vsub.f32 %v1260, %v1426
        %v1479 = vsub.f32 %v1263, %v1429
        %v1480 = vsub.f32 %v1265, %v1432
        %v1481 = vsub.f32 %v1341, %v1435
        %v1482 = vsub.f32 %v1343, %v1438
        %v1483 = vsub.f32 %v1346, %v1441
        %v1484 = vsub.f32 %v1348, %v1444
        %v1485 = vsub.f32 %v1351, %v1447
        %v1486 = vsub.f32 %v1353, %v1450
        %v1487 = vsub.f32 %v1356, %v1453
        %v1488 = vsub.f32 %v1358, %v1456
        %v1489 = vmul.f32 %v1457, 1.442695
        %v1490 = vpow.pop %v1489
        %v1491 = vmul.f32 %v1458, 1.442695
        %v1492 = vpow.pop %v1491
        %v1493 = vmul.f32 %v1459, 1.442695
        %v1494 = vpow.pop %v1493
        %v1495 = vmul.f32 %v1460, 1.442695
        %v1496 = vpow.pop %v1495
        %v1497 = vmul.f32 %v1461, 1.442695
        %v1498 = vpow.pop %v1497
        %v1499 = vmul.f32 %v1462, 1.442695
        %v1500 = vpow.pop %v1499
        %v1501 = vmul.f32 %v1463, 1.442695
        %v1502 = vpow.pop %v1501
        %v1503 = vmul.f32 %v1464, 1.442695
        %v1504 = vpow.pop %v1503
        %v1505 = vmul.f32 %v1465, 1.442695
        %v1506 = vpow.pop %v1505
        %v1507 = vmul.f32 %v1466, 1.442695
        %v1508 = vpow.pop %v1507
        %v1509 = vmul.f32 %v1467, 1.442695
        %v1510 = vpow.pop %v1509
        %v1511 = vmul.f32 %v1468, 1.442695
        %v1512 = vpow.pop %v1511
        %v1513 = vmul.f32 %v1469, 1.442695
        %v1514 = vpow.pop %v1513
        %v1515 = vmul.f32 %v1470, 1.442695
        %v1516 = vpow.pop %v1515
        %v1517 = vmul.f32 %v1471, 1.442695
        %v1518 = vpow.pop %v1517
        %v1519 = vmul.f32 %v1472, 1.442695
        %v1520 = vpow.pop %v1519
        %v1521 = vmul.f32 %v1473, 1.442695
        %v1522 = vpow.pop %v1521
        %v1523 = vmul.f32 %v1474, 1.442695
        %v1524 = vpow.pop %v1523
        %v1525 = vmul.f32 %v1475, 1.442695
        %v1526 = vpow.pop %v1525
        %v1527 = vmul.f32 %v1476, 1.442695
        %v1528 = vpow.pop %v1527
        %v1529 = vmul.f32 %v1477, 1.442695
        %v1530 = vpow.pop %v1529
        %v1531 = vmul.f32 %v1478, 1.442695
        %v1532 = vpow.pop %v1531
        %v1533 = vmul.f32 %v1479, 1.442695
        %v1534 = vpow.pop %v1533
        %v1535 = vmul.f32 %v1480, 1.442695
        %v1536 = vpow.pop %v1535
        %v1537 = vmul.f32 %v1481, 1.442695
        %v1538 = vpow.pop %v1537
        %v1539 = vmul.f32 %v1482, 1.442695
        %v1540 = vpow.pop %v1539
        %v1541 = vmul.f32 %v1483, 1.442695
        %v1542 = vpow.pop %v1541
        %v1543 = vmul.f32 %v1484, 1.442695
        %v1544 = vpow.pop %v1543
        %v1545 = vmul.f32 %v1485, 1.442695
        %v1546 = vpow.pop %v1545
        %v1547 = vmul.f32 %v1486, 1.442695
        %v1548 = vpow.pop %v1547
        %v1549 = vmul.f32 %v1487, 1.442695
        %v1550 = vpow.pop %v1549
        %v1551 = vmul.f32 %v1488, 1.442695
        %v1552 = vpow.pop %v1551
        %v1553 = vsel %vm1360, %v1490, 0.0
        %1554 = vadd.xlane.f32.xlu0 %v1553
        %v1555 = vpop.xlane.xlu0 %1554
        %v1556 = vsel %vm1360, %v1492, 0.0
        %1557 = vadd.xlane.f32.xlu0 %v1556
        %v1558 = vpop.xlane.xlu0 %1557
        %v1559 = vsel %vm1360, %v1494, 0.0
        %1560 = vadd.xlane.f32.xlu0 %v1559
        %v1561 = vpop.xlane.xlu0 %1560
        %v1562 = vsel %vm1360, %v1496, 0.0
        %1563 = vadd.xlane.f32.xlu0 %v1562
        %v1564 = vpop.xlane.xlu0 %1563
        %v1565 = vsel %vm1360, %v1498, 0.0
        %1566 = vadd.xlane.f32.xlu0 %v1565
        %v1567 = vpop.xlane.xlu0 %1566
        %v1568 = vsel %vm1360, %v1500, 0.0
        %1569 = vadd.xlane.f32.xlu0 %v1568
        %v1570 = vpop.xlane.xlu0 %1569
        %v1571 = vsel %vm1360, %v1502, 0.0
        %1572 = vadd.xlane.f32.xlu0 %v1571
        %v1573 = vpop.xlane.xlu0 %1572
        %v1574 = vsel %vm1360, %v1504, 0.0
        %1575 = vadd.xlane.f32.xlu0 %v1574
        %v1576 = vpop.xlane.xlu0 %1575
        %v1577 = vsel %vm1360, %v1506, 0.0
        %1578 = vadd.xlane.f32.xlu0 %v1577
        %v1579 = vpop.xlane.xlu0 %1578
        %v1580 = vsel %vm1360, %v1508, 0.0
        %1581 = vadd.xlane.f32.xlu0 %v1580
        %v1582 = vpop.xlane.xlu0 %1581
        %v1583 = vsel %vm1360, %v1510, 0.0
        %1584 = vadd.xlane.f32.xlu0 %v1583
        %v1585 = vpop.xlane.xlu0 %1584
        %v1586 = vsel %vm1360, %v1512, 0.0
        %1587 = vadd.xlane.f32.xlu0 %v1586
        %v1588 = vpop.xlane.xlu0 %1587
        %v1589 = vsel %vm1360, %v1514, 0.0
        %1590 = vadd.xlane.f32.xlu0 %v1589
        %v1591 = vpop.xlane.xlu0 %1590
        %v1592 = vsel %vm1360, %v1516, 0.0
        %1593 = vadd.xlane.f32.xlu0 %v1592
        %v1594 = vpop.xlane.xlu0 %1593
        %v1595 = vsel %vm1360, %v1518, 0.0
        %1596 = vadd.xlane.f32.xlu0 %v1595
        %v1597 = vpop.xlane.xlu0 %1596
        %v1598 = vsel %vm1360, %v1520, 0.0
        %1599 = vadd.xlane.f32.xlu0 %v1598
        %v1600 = vpop.xlane.xlu0 %1599
        %v1601 = vsel %vm1360, %v1522, 0.0
        %1602 = vadd.xlane.f32.xlu0 %v1601
        %v1603 = vpop.xlane.xlu0 %1602
        %v1604 = vsel %vm1360, %v1524, 0.0
        %1605 = vadd.xlane.f32.xlu0 %v1604
        %v1606 = vpop.xlane.xlu0 %1605
        %v1607 = vsel %vm1360, %v1526, 0.0
        %1608 = vadd.xlane.f32.xlu0 %v1607
        %v1609 = vpop.xlane.xlu0 %1608
        %v1610 = vsel %vm1360, %v1528, 0.0
        %1611 = vadd.xlane.f32.xlu0 %v1610
        %v1612 = vpop.xlane.xlu0 %1611
        %v1613 = vsel %vm1360, %v1530, 0.0
        %1614 = vadd.xlane.f32.xlu0 %v1613
        %v1615 = vpop.xlane.xlu0 %1614
        %v1616 = vsel %vm1360, %v1532, 0.0
        %1617 = vadd.xlane.f32.xlu0 %v1616
        %v1618 = vpop.xlane.xlu0 %1617
        %v1619 = vsel %vm1360, %v1534, 0.0
        %1620 = vadd.xlane.f32.xlu0 %v1619
        %v1621 = vpop.xlane.xlu0 %1620
        %v1622 = vsel %vm1360, %v1536, 0.0
        %1623 = vadd.xlane.f32.xlu0 %v1622
        %v1624 = vpop.xlane.xlu0 %1623
        %v1625 = vsel %vm1360, %v1538, 0.0
        %1626 = vadd.xlane.f32.xlu0 %v1625
        %v1627 = vpop.xlane.xlu0 %1626
        %v1628 = vsel %vm1360, %v1540, 0.0
        %1629 = vadd.xlane.f32.xlu0 %v1628
        %v1630 = vpop.xlane.xlu0 %1629
        %v1631 = vsel %vm1360, %v1542, 0.0
        %1632 = vadd.xlane.f32.xlu0 %v1631
        %v1633 = vpop.xlane.xlu0 %1632
        %v1634 = vsel %vm1360, %v1544, 0.0
        %1635 = vadd.xlane.f32.xlu0 %v1634
        %v1636 = vpop.xlane.xlu0 %1635
        %v1637 = vsel %vm1360, %v1546, 0.0
        %1638 = vadd.xlane.f32.xlu0 %v1637
        %v1639 = vpop.xlane.xlu0 %1638
        %v1640 = vsel %vm1360, %v1548, 0.0
        %1641 = vadd.xlane.f32.xlu0 %v1640
        %v1642 = vpop.xlane.xlu0 %1641
        %v1643 = vsel %vm1360, %v1550, 0.0
        %1644 = vadd.xlane.f32.xlu0 %v1643
        %v1645 = vpop.xlane.xlu0 %1644
        %v1646 = vsel %vm1360, %v1552, 0.0
        %1647 = vadd.xlane.f32.xlu0 %v1646
        %v1648 = vpop.xlane.xlu0 %1647
        %v1649 = vpack.c.bf16 %v1490, %v1490
        %v1650 = vpack.c.bf16 %v1492, %v1492
        %v1651 = vpack.c.bf16 %v1494, %v1494
        %v1652 = vpack.c.bf16 %v1496, %v1496
        %v1653 = vpack.c.bf16 %v1498, %v1498
        %v1654 = vpack.c.bf16 %v1500, %v1500
        %v1655 = vpack.c.bf16 %v1502, %v1502
        %v1656 = vpack.c.bf16 %v1504, %v1504
        %v1657 = vpack.c.bf16 %v1506, %v1506
        %v1658 = vpack.c.bf16 %v1508, %v1508
        %v1659 = vpack.c.bf16 %v1510, %v1510
        %v1660 = vpack.c.bf16 %v1512, %v1512
        %v1661 = vpack.c.bf16 %v1514, %v1514
        %v1662 = vpack.c.bf16 %v1516, %v1516
        %v1663 = vpack.c.bf16 %v1518, %v1518
        %v1664 = vpack.c.bf16 %v1520, %v1520
        %v1665 = vpack.c.bf16 %v1522, %v1522
        %v1666 = vpack.c.bf16 %v1524, %v1524
        %v1667 = vpack.c.bf16 %v1526, %v1526
        %v1668 = vpack.c.bf16 %v1528, %v1528
        %v1669 = vpack.c.bf16 %v1530, %v1530
        %v1670 = vpack.c.bf16 %v1532, %v1532
        %v1671 = vpack.c.bf16 %v1534, %v1534
        %v1672 = vpack.c.bf16 %v1536, %v1536
        %v1673 = vpack.c.bf16 %v1538, %v1538
        %v1674 = vpack.c.bf16 %v1540, %v1540
        %v1675 = vpack.c.bf16 %v1542, %v1542
        %v1676 = vpack.c.bf16 %v1544, %v1544
        %v1677 = vpack.c.bf16 %v1546, %v1546
        %v1678 = vpack.c.bf16 %v1548, %v1548
        %v1679 = vpack.c.bf16 %v1550, %v1550
        %v1680 = vpack.c.bf16 %v1552, %v1552
        %v1689 = vunpack.c.l.b16 %v1649
        %v1690 = vunpack.c.l.b16 %v1650
        %v1691 = vunpack.c.l.b16 %v1651
        %v1692 = vunpack.c.l.b16 %v1652
        %v1693 = vunpack.c.l.b16 %v1653
        %v1694 = vunpack.c.l.b16 %v1654
        %v1695 = vunpack.c.l.b16 %v1655
        %v1696 = vunpack.c.l.b16 %v1656
        %v1697 = vpack.c.b16 %v1690, %v1689
        %v1698 = vpack.c.b16 %v1692, %v1691
        %v1699 = vpack.c.b16 %v1694, %v1693
        %v1700 = vpack.c.b16 %v1696, %v1695
        %v1709 = vunpack.c.l.b16 %v955
        %v1710 = vunpack.c.l.b16 %v956
        %v1711 = vunpack.c.l.b16 %v957
        %v1712 = vunpack.c.l.b16 %v958
        %v1713 = vunpack.c.l.b16 %v959
        %v1714 = vunpack.c.l.b16 %v960
        %v1715 = vunpack.c.l.b16 %v961
        %v1716 = vunpack.c.l.b16 %v962
        %v1717 = vpack.c.b16 %v1710, %v1709
        %v1718 = vpack.c.b16 %v1712, %v1711
        %v1719 = vpack.c.b16 %v1714, %v1713
        %v1720 = vpack.c.b16 %v1716, %v1715
        %v1726 = vsel %vm1360, %v1697, 0
        %v1729 = vsel %vm1360, %v1698, 0
        %v1732 = vsel %vm1360, %v1699, 0
        %v1735 = vsel %vm1360, %v1700, 0
        %1737 = vmatpush.bf16.msra.mxu0 0
        %1738 = vmatpush.bf16.msra.mxu0 0
        %1739 = vmatpush.bf16.msra.mxu0 0
        %1740 = vmatpush.bf16.msra.mxu0 0
        %1741 = vmatpush.bf16.msra.mxu0 %v1720
        %1742 = vmatpush.bf16.msra.mxu0 %v1719
        %1743 = vmatpush.bf16.msra.mxu0 %v1718
        %1744 = vmatpush.bf16.msra.mxu0 %v1717
        %1745 = vmatmul.bf16.gmra.mxu0 %v1726
        %v1746 = vpop.f32.mrf.mxu0
        %v1747 = vadd.f32 0.0, %v1746
        %v1748 = vpop.f32.mrf.mxu0
        %v1749 = vadd.f32 0.0, %v1748
        %1750 = vmatmul.bf16.gmra.mxu0 %v1729
        %v1751 = vpop.f32.mrf.mxu0
        %v1752 = vadd.f32 0.0, %v1751
        %v1753 = vpop.f32.mrf.mxu0
        %v1754 = vadd.f32 0.0, %v1753
        %1755 = vmatmul.bf16.gmra.mxu0 %v1732
        %v1756 = vpop.f32.mrf.mxu0
        %v1757 = vadd.f32 0.0, %v1756
        %v1758 = vpop.f32.mrf.mxu0
        %v1759 = vadd.f32 0.0, %v1758
        %1760 = vmatmul.bf16.gmra.mxu0 %v1735
        %v1761 = vpop.f32.mrf.mxu0
        %v1762 = vadd.f32 0.0, %v1761
        %v1763 = vpop.f32.mrf.mxu0
        %v1764 = vadd.f32 0.0, %v1763
        %1765 = vdwg.mxu0
        %v1774 = vunpack.c.l.b16 %v1657
        %v1775 = vunpack.c.l.b16 %v1658
        %v1776 = vunpack.c.l.b16 %v1659
        %v1777 = vunpack.c.l.b16 %v1660
        %v1778 = vunpack.c.l.b16 %v1661
        %v1779 = vunpack.c.l.b16 %v1662
        %v1780 = vunpack.c.l.b16 %v1663
        %v1781 = vunpack.c.l.b16 %v1664
        %v1782 = vpack.c.b16 %v1775, %v1774
        %v1783 = vpack.c.b16 %v1777, %v1776
        %v1784 = vpack.c.b16 %v1779, %v1778
        %v1785 = vpack.c.b16 %v1781, %v1780
        %v1794 = vunpack.c.l.b16 %v963
        %v1795 = vunpack.c.l.b16 %v964
        %v1796 = vunpack.c.l.b16 %v965
        %v1797 = vunpack.c.l.b16 %v966
        %v1798 = vunpack.c.l.b16 %v967
        %v1799 = vunpack.c.l.b16 %v968
        %v1800 = vunpack.c.l.b16 %v969
        %v1801 = vunpack.c.l.b16 %v970
        %v1802 = vpack.c.b16 %v1795, %v1794
        %v1803 = vpack.c.b16 %v1797, %v1796
        %v1804 = vpack.c.b16 %v1799, %v1798
        %v1805 = vpack.c.b16 %v1801, %v1800
        %v1811 = vsel %vm1360, %v1782, 0
        %v1814 = vsel %vm1360, %v1783, 0
        %v1817 = vsel %vm1360, %v1784, 0
        %v1820 = vsel %vm1360, %v1785, 0
        %1822 = vmatpush.bf16.msra.mxu0 0
        %1823 = vmatpush.bf16.msra.mxu0 0
        %1824 = vmatpush.bf16.msra.mxu0 0
        %1825 = vmatpush.bf16.msra.mxu0 0
        %1826 = vmatpush.bf16.msra.mxu0 %v1805
        %1827 = vmatpush.bf16.msra.mxu0 %v1804
        %1828 = vmatpush.bf16.msra.mxu0 %v1803
        %1829 = vmatpush.bf16.msra.mxu0 %v1802
        %1830 = vmatmul.bf16.gmra.mxu0 %v1811
        %v1831 = vpop.f32.mrf.mxu0
        %v1832 = vadd.f32 0.0, %v1831
        %v1833 = vpop.f32.mrf.mxu0
        %v1834 = vadd.f32 0.0, %v1833
        %1835 = vmatmul.bf16.gmra.mxu0 %v1814
        %v1836 = vpop.f32.mrf.mxu0
        %v1837 = vadd.f32 0.0, %v1836
        %v1838 = vpop.f32.mrf.mxu0
        %v1839 = vadd.f32 0.0, %v1838
        %1840 = vmatmul.bf16.gmra.mxu0 %v1817
        %v1841 = vpop.f32.mrf.mxu0
        %v1842 = vadd.f32 0.0, %v1841
        %v1843 = vpop.f32.mrf.mxu0
        %v1844 = vadd.f32 0.0, %v1843
        %1845 = vmatmul.bf16.gmra.mxu0 %v1820
        %v1846 = vpop.f32.mrf.mxu0
        %v1847 = vadd.f32 0.0, %v1846
        %v1848 = vpop.f32.mrf.mxu0
        %v1849 = vadd.f32 0.0, %v1848
        %1850 = vdwg.mxu0
        %v1859 = vunpack.c.l.b16 %v1665
        %v1860 = vunpack.c.l.b16 %v1666
        %v1861 = vunpack.c.l.b16 %v1667
        %v1862 = vunpack.c.l.b16 %v1668
        %v1863 = vunpack.c.l.b16 %v1669
        %v1864 = vunpack.c.l.b16 %v1670
        %v1865 = vunpack.c.l.b16 %v1671
        %v1866 = vunpack.c.l.b16 %v1672
        %v1867 = vpack.c.b16 %v1860, %v1859
        %v1868 = vpack.c.b16 %v1862, %v1861
        %v1869 = vpack.c.b16 %v1864, %v1863
        %v1870 = vpack.c.b16 %v1866, %v1865
        %v1879 = vunpack.c.l.b16 %v971
        %v1880 = vunpack.c.l.b16 %v972
        %v1881 = vunpack.c.l.b16 %v973
        %v1882 = vunpack.c.l.b16 %v974
        %v1883 = vunpack.c.l.b16 %v975
        %v1884 = vunpack.c.l.b16 %v976
        %v1885 = vunpack.c.l.b16 %v977
        %v1886 = vunpack.c.l.b16 %v978
        %v1887 = vpack.c.b16 %v1880, %v1879
        %v1888 = vpack.c.b16 %v1882, %v1881
        %v1889 = vpack.c.b16 %v1884, %v1883
        %v1890 = vpack.c.b16 %v1886, %v1885
        %v1896 = vsel %vm1360, %v1867, 0
        %v1899 = vsel %vm1360, %v1868, 0
        %v1902 = vsel %vm1360, %v1869, 0
        %v1905 = vsel %vm1360, %v1870, 0
        %1907 = vmatpush.bf16.msra.mxu0 0
        %1908 = vmatpush.bf16.msra.mxu0 0
        %1909 = vmatpush.bf16.msra.mxu0 0
        %1910 = vmatpush.bf16.msra.mxu0 0
        %1911 = vmatpush.bf16.msra.mxu0 %v1890
        %1912 = vmatpush.bf16.msra.mxu0 %v1889
        %1913 = vmatpush.bf16.msra.mxu0 %v1888
        %1914 = vmatpush.bf16.msra.mxu0 %v1887
        %1915 = vmatmul.bf16.gmra.mxu0 %v1896
        %v1916 = vpop.f32.mrf.mxu0
        %v1917 = vadd.f32 0.0, %v1916
        %v1918 = vpop.f32.mrf.mxu0
        %v1919 = vadd.f32 0.0, %v1918
        %1920 = vmatmul.bf16.gmra.mxu0 %v1899
        %v1921 = vpop.f32.mrf.mxu0
        %v1922 = vadd.f32 0.0, %v1921
        %v1923 = vpop.f32.mrf.mxu0
        %v1924 = vadd.f32 0.0, %v1923
        %1925 = vmatmul.bf16.gmra.mxu0 %v1902
        %v1926 = vpop.f32.mrf.mxu0
        %v1927 = vadd.f32 0.0, %v1926
        %v1928 = vpop.f32.mrf.mxu0
        %v1929 = vadd.f32 0.0, %v1928
        %1930 = vmatmul.bf16.gmra.mxu0 %v1905
        %v1931 = vpop.f32.mrf.mxu0
        %v1932 = vadd.f32 0.0, %v1931
        %v1933 = vpop.f32.mrf.mxu0
        %v1934 = vadd.f32 0.0, %v1933
        %1935 = vdwg.mxu0
        %v1944 = vunpack.c.l.b16 %v1673
        %v1945 = vunpack.c.l.b16 %v1674
        %v1946 = vunpack.c.l.b16 %v1675
        %v1947 = vunpack.c.l.b16 %v1676
        %v1948 = vunpack.c.l.b16 %v1677
        %v1949 = vunpack.c.l.b16 %v1678
        %v1950 = vunpack.c.l.b16 %v1679
        %v1951 = vunpack.c.l.b16 %v1680
        %v1952 = vpack.c.b16 %v1945, %v1944
        %v1953 = vpack.c.b16 %v1947, %v1946
        %v1954 = vpack.c.b16 %v1949, %v1948
        %v1955 = vpack.c.b16 %v1951, %v1950
        %v1964 = vunpack.c.l.b16 %v979
        %v1965 = vunpack.c.l.b16 %v980
        %v1966 = vunpack.c.l.b16 %v981
        %v1967 = vunpack.c.l.b16 %v982
        %v1968 = vunpack.c.l.b16 %v983
        %v1969 = vunpack.c.l.b16 %v984
        %v1970 = vunpack.c.l.b16 %v985
        %v1971 = vunpack.c.l.b16 %v986
        %v1972 = vpack.c.b16 %v1965, %v1964
        %v1973 = vpack.c.b16 %v1967, %v1966
        %v1974 = vpack.c.b16 %v1969, %v1968
        %v1975 = vpack.c.b16 %v1971, %v1970
        %v1981 = vsel %vm1360, %v1952, 0
        %v1984 = vsel %vm1360, %v1953, 0
        %v1987 = vsel %vm1360, %v1954, 0
        %v1990 = vsel %vm1360, %v1955, 0
        %1992 = vmatpush.bf16.msra.mxu0 0
        %1993 = vmatpush.bf16.msra.mxu0 0
        %1994 = vmatpush.bf16.msra.mxu0 0
        %1995 = vmatpush.bf16.msra.mxu0 0
        %1996 = vmatpush.bf16.msra.mxu0 %v1975
        %1997 = vmatpush.bf16.msra.mxu0 %v1974
        %1998 = vmatpush.bf16.msra.mxu0 %v1973
        %1999 = vmatpush.bf16.msra.mxu0 %v1972
        %2000 = vmatmul.bf16.gmra.mxu0 %v1981
        %v2001 = vpop.f32.mrf.mxu0
        %v2002 = vadd.f32 0.0, %v2001
        %v2003 = vpop.f32.mrf.mxu0
        %v2004 = vadd.f32 0.0, %v2003
        %2005 = vmatmul.bf16.gmra.mxu0 %v1984
        %v2006 = vpop.f32.mrf.mxu0
        %v2007 = vadd.f32 0.0, %v2006
        %v2008 = vpop.f32.mrf.mxu0
        %v2009 = vadd.f32 0.0, %v2008
        %2010 = vmatmul.bf16.gmra.mxu0 %v1987
        %v2011 = vpop.f32.mrf.mxu0
        %v2012 = vadd.f32 0.0, %v2011
        %v2013 = vpop.f32.mrf.mxu0
        %v2014 = vadd.f32 0.0, %v2013
        %2015 = vmatmul.bf16.gmra.mxu0 %v1990
        %v2016 = vpop.f32.mrf.mxu0
        %v2017 = vadd.f32 0.0, %v2016
        %v2018 = vpop.f32.mrf.mxu0
        %v2019 = vadd.f32 0.0, %v2018
        %2020 = vdwg.mxu0
        %v2021 = vrcp.pop %v1555
        %v2022 = vrcp.pop %v1558
        %v2023 = vrcp.pop %v1561
        %v2024 = vrcp.pop %v1564
        %v2025 = vrcp.pop %v1567
        %v2026 = vrcp.pop %v1570
        %v2027 = vrcp.pop %v1573
        %v2028 = vrcp.pop %v1576
        %v2029 = vrcp.pop %v1579
        %v2030 = vrcp.pop %v1582
        %v2031 = vrcp.pop %v1585
        %v2032 = vrcp.pop %v1588
        %v2033 = vrcp.pop %v1591
        %v2034 = vrcp.pop %v1594
        %v2035 = vrcp.pop %v1597
        %v2036 = vrcp.pop %v1600
        %v2037 = vrcp.pop %v1603
        %v2038 = vrcp.pop %v1606
        %v2039 = vrcp.pop %v1609
        %v2040 = vrcp.pop %v1612
        %v2041 = vrcp.pop %v1615
        %v2042 = vrcp.pop %v1618
        %v2043 = vrcp.pop %v1621
        %v2044 = vrcp.pop %v1624
        %v2045 = vrcp.pop %v1627
        %v2046 = vrcp.pop %v1630
        %v2047 = vrcp.pop %v1633
        %v2048 = vrcp.pop %v1636
        %v2049 = vrcp.pop %v1639
        %v2050 = vrcp.pop %v1642
        %v2051 = vrcp.pop %v1645
        %v2052 = vrcp.pop %v1648
        %v2053 = vmul.f32 %v1747, %v2021
        %v2054 = vmul.f32 %v1749, %v2022
        %v2055 = vmul.f32 %v1752, %v2023
        %v2056 = vmul.f32 %v1754, %v2024
        %v2057 = vmul.f32 %v1757, %v2025
        %v2058 = vmul.f32 %v1759, %v2026
        %v2059 = vmul.f32 %v1762, %v2027
        %v2060 = vmul.f32 %v1764, %v2028
        %v2061 = vmul.f32 %v1832, %v2029
        %v2062 = vmul.f32 %v1834, %v2030
        %v2063 = vmul.f32 %v1837, %v2031
        %v2064 = vmul.f32 %v1839, %v2032
        %v2065 = vmul.f32 %v1842, %v2033
        %v2066 = vmul.f32 %v1844, %v2034
        %v2067 = vmul.f32 %v1847, %v2035
        %v2068 = vmul.f32 %v1849, %v2036
        %v2069 = vmul.f32 %v1917, %v2037
        %v2070 = vmul.f32 %v1919, %v2038
        %v2071 = vmul.f32 %v1922, %v2039
        %v2072 = vmul.f32 %v1924, %v2040
        %v2073 = vmul.f32 %v1927, %v2041
        %v2074 = vmul.f32 %v1929, %v2042
        %v2075 = vmul.f32 %v1932, %v2043
        %v2076 = vmul.f32 %v1934, %v2044
        %v2077 = vmul.f32 %v2002, %v2045
        %v2078 = vmul.f32 %v2004, %v2046
        %v2079 = vmul.f32 %v2007, %v2047
        %v2080 = vmul.f32 %v2009, %v2048
        %v2081 = vmul.f32 %v2012, %v2049
        %v2082 = vmul.f32 %v2014, %v2050
        %v2083 = vmul.f32 %v2017, %v2051
        %v2084 = vmul.f32 %v2019, %v2052
        %2085 = vrot.lane.b32.xlu0 %v1003, 112
        %v2086 = vpop.permute.xlu0 %2085
        %2087 = vrot.lane.b32.xlu0 %v1004, 112
        %v2088 = vpop.permute.xlu0 %2087
        %2089 = vrot.lane.b32.xlu0 %v1005, 112
        %v2090 = vpop.permute.xlu0 %2089
        %2091 = vrot.lane.b32.xlu0 %v1006, 112
        %v2092 = vpop.permute.xlu0 %2091
        %2093 = vrot.lane.b32.xlu0 %v1023, 112
        %v2094 = vpop.permute.xlu0 %2093
        %2095 = vrot.lane.b32.xlu0 %v1024, 112
        %v2096 = vpop.permute.xlu0 %2095
        %2097 = vrot.lane.b32.xlu0 %v1025, 112
        %v2098 = vpop.permute.xlu0 %2097
        %2099 = vrot.lane.b32.xlu0 %v1026, 112
        %v2100 = vpop.permute.xlu0 %2099
        %v2102 = vsel %vm1027, %v2086, 0
        %v2105 = vsel %vm1027, %v2088, 0
        %v2108 = vsel %vm1027, %v2090, 0
        %v2111 = vsel %vm1027, %v2092, 0
        %v2114 = vsel %vm1027, %v2094, 0
        %v2117 = vsel %vm1027, %v2096, 0
        %v2120 = vsel %vm1027, %v2098, 0
        %v2123 = vsel %vm1027, %v2100, 0
        %2125 = vmatpush.bf16.xpose.msra.mxu0 0
        %2126 = vmatpush.bf16.xpose.msra.mxu0 0
        %2127 = vmatpush.bf16.xpose.msra.mxu0 0
        %2128 = vmatpush.bf16.xpose.msra.mxu0 0
        %2129 = vmatpush.bf16.xpose.msra.mxu0 %v2123
        %2130 = vmatpush.bf16.xpose.msra.mxu0 %v2120
        %2131 = vmatpush.bf16.xpose.msra.mxu0 %v2117
        %2132 = vmatpush.bf16.xpose.msra.mxu0 %v2114
        %2133 = vmatmul.bf16.gmra.mxu0 %v2102
        %v2134 = vpop.f32.mrf.mxu0
        %v2135 = vadd.f32 %v883, %v2134
        %v2136 = vpop.f32.mrf.mxu0
        %v2137 = vadd.f32 %v884, %v2136
        %2138 = vmatmul.bf16.gmra.mxu0 %v2105
        %v2139 = vpop.f32.mrf.mxu0
        %v2140 = vadd.f32 %v885, %v2139
        %v2141 = vpop.f32.mrf.mxu0
        %v2142 = vadd.f32 %v886, %v2141
        %2143 = vmatmul.bf16.gmra.mxu0 %v2108
        %v2144 = vpop.f32.mrf.mxu0
        %v2145 = vadd.f32 %v887, %v2144
        %v2146 = vpop.f32.mrf.mxu0
        %v2147 = vadd.f32 %v888, %v2146
        %2148 = vmatmul.bf16.gmra.mxu0 %v2111
        %v2149 = vpop.f32.mrf.mxu0
        %v2150 = vadd.f32 %v889, %v2149
        %v2151 = vpop.f32.mrf.mxu0
        %v2152 = vadd.f32 %v890, %v2151
        %2153 = vdwg.mxu0
        %2154 = vrot.lane.b32.xlu0 %v1097, 112
        %v2155 = vpop.permute.xlu0 %2154
        %2156 = vrot.lane.b32.xlu0 %v1098, 112
        %v2157 = vpop.permute.xlu0 %2156
        %2158 = vrot.lane.b32.xlu0 %v1099, 112
        %v2159 = vpop.permute.xlu0 %2158
        %2160 = vrot.lane.b32.xlu0 %v1100, 112
        %v2161 = vpop.permute.xlu0 %2160
        %2162 = vrot.lane.b32.xlu0 %v1117, 112
        %v2163 = vpop.permute.xlu0 %2162
        %2164 = vrot.lane.b32.xlu0 %v1118, 112
        %v2165 = vpop.permute.xlu0 %2164
        %2166 = vrot.lane.b32.xlu0 %v1119, 112
        %v2167 = vpop.permute.xlu0 %2166
        %2168 = vrot.lane.b32.xlu0 %v1120, 112
        %v2169 = vpop.permute.xlu0 %2168
        %v2171 = vsel %vm1027, %v2155, 0
        %v2174 = vsel %vm1027, %v2157, 0
        %v2177 = vsel %vm1027, %v2159, 0
        %v2180 = vsel %vm1027, %v2161, 0
        %v2183 = vsel %vm1027, %v2163, 0
        %v2186 = vsel %vm1027, %v2165, 0
        %v2189 = vsel %vm1027, %v2167, 0
        %v2192 = vsel %vm1027, %v2169, 0
        %2194 = vmatpush.bf16.xpose.msra.mxu0 0
        %2195 = vmatpush.bf16.xpose.msra.mxu0 0
        %2196 = vmatpush.bf16.xpose.msra.mxu0 0
        %2197 = vmatpush.bf16.xpose.msra.mxu0 0
        %2198 = vmatpush.bf16.xpose.msra.mxu0 %v2192
        %2199 = vmatpush.bf16.xpose.msra.mxu0 %v2189
        %2200 = vmatpush.bf16.xpose.msra.mxu0 %v2186
        %2201 = vmatpush.bf16.xpose.msra.mxu0 %v2183
        %2202 = vmatmul.bf16.gmra.mxu0 %v2171
        %v2203 = vpop.f32.mrf.mxu0
        %v2204 = vadd.f32 %v883, %v2203
        %v2205 = vpop.f32.mrf.mxu0
        %v2206 = vadd.f32 %v884, %v2205
        %2207 = vmatmul.bf16.gmra.mxu0 %v2174
        %v2208 = vpop.f32.mrf.mxu0
        %v2209 = vadd.f32 %v885, %v2208
        %v2210 = vpop.f32.mrf.mxu0
        %v2211 = vadd.f32 %v886, %v2210
        %2212 = vmatmul.bf16.gmra.mxu0 %v2177
        %v2213 = vpop.f32.mrf.mxu0
        %v2214 = vadd.f32 %v887, %v2213
        %v2215 = vpop.f32.mrf.mxu0
        %v2216 = vadd.f32 %v888, %v2215
        %2217 = vmatmul.bf16.gmra.mxu0 %v2180
        %v2218 = vpop.f32.mrf.mxu0
        %v2219 = vadd.f32 %v889, %v2218
        %v2220 = vpop.f32.mrf.mxu0
        %v2221 = vadd.f32 %v890, %v2220
        %2222 = vdwg.mxu0
        %2223 = vrot.lane.b32.xlu0 %v1190, 112
        %v2224 = vpop.permute.xlu0 %2223
        %2225 = vrot.lane.b32.xlu0 %v1191, 112
        %v2226 = vpop.permute.xlu0 %2225
        %2227 = vrot.lane.b32.xlu0 %v1192, 112
        %v2228 = vpop.permute.xlu0 %2227
        %2229 = vrot.lane.b32.xlu0 %v1193, 112
        %v2230 = vpop.permute.xlu0 %2229
        %2231 = vrot.lane.b32.xlu0 %v1210, 112
        %v2232 = vpop.permute.xlu0 %2231
        %2233 = vrot.lane.b32.xlu0 %v1211, 112
        %v2234 = vpop.permute.xlu0 %2233
        %2235 = vrot.lane.b32.xlu0 %v1212, 112
        %v2236 = vpop.permute.xlu0 %2235
        %2237 = vrot.lane.b32.xlu0 %v1213, 112
        %v2238 = vpop.permute.xlu0 %2237
        %v2240 = vsel %vm1027, %v2224, 0
        %v2243 = vsel %vm1027, %v2226, 0
        %v2246 = vsel %vm1027, %v2228, 0
        %v2249 = vsel %vm1027, %v2230, 0
        %v2252 = vsel %vm1027, %v2232, 0
        %v2255 = vsel %vm1027, %v2234, 0
        %v2258 = vsel %vm1027, %v2236, 0
        %v2261 = vsel %vm1027, %v2238, 0
        %2263 = vmatpush.bf16.xpose.msra.mxu0 0
        %2264 = vmatpush.bf16.xpose.msra.mxu0 0
        %2265 = vmatpush.bf16.xpose.msra.mxu0 0
        %2266 = vmatpush.bf16.xpose.msra.mxu0 0
        %2267 = vmatpush.bf16.xpose.msra.mxu0 %v2261
        %2268 = vmatpush.bf16.xpose.msra.mxu0 %v2258
        %2269 = vmatpush.bf16.xpose.msra.mxu0 %v2255
        %2270 = vmatpush.bf16.xpose.msra.mxu0 %v2252
        %2271 = vmatmul.bf16.gmra.mxu0 %v2240
        %v2272 = vpop.f32.mrf.mxu0
        %v2273 = vadd.f32 %v883, %v2272
        %v2274 = vpop.f32.mrf.mxu0
        %v2275 = vadd.f32 %v884, %v2274
        %2276 = vmatmul.bf16.gmra.mxu0 %v2243
        %v2277 = vpop.f32.mrf.mxu0
        %v2278 = vadd.f32 %v885, %v2277
        %v2279 = vpop.f32.mrf.mxu0
        %v2280 = vadd.f32 %v886, %v2279
        %2281 = vmatmul.bf16.gmra.mxu0 %v2246
        %v2282 = vpop.f32.mrf.mxu0
        %v2283 = vadd.f32 %v887, %v2282
        %v2284 = vpop.f32.mrf.mxu0
        %v2285 = vadd.f32 %v888, %v2284
        %2286 = vmatmul.bf16.gmra.mxu0 %v2249
        %v2287 = vpop.f32.mrf.mxu0
        %v2288 = vadd.f32 %v889, %v2287
        %v2289 = vpop.f32.mrf.mxu0
        %v2290 = vadd.f32 %v890, %v2289
        %2291 = vdwg.mxu0
        %2292 = vrot.lane.b32.xlu0 %v1283, 112
        %v2293 = vpop.permute.xlu0 %2292
        %2294 = vrot.lane.b32.xlu0 %v1284, 112
        %v2295 = vpop.permute.xlu0 %2294
        %2296 = vrot.lane.b32.xlu0 %v1285, 112
        %v2297 = vpop.permute.xlu0 %2296
        %2298 = vrot.lane.b32.xlu0 %v1286, 112
        %v2299 = vpop.permute.xlu0 %2298
        %2300 = vrot.lane.b32.xlu0 %v1303, 112
        %v2301 = vpop.permute.xlu0 %2300
        %2302 = vrot.lane.b32.xlu0 %v1304, 112
        %v2303 = vpop.permute.xlu0 %2302
        %2304 = vrot.lane.b32.xlu0 %v1305, 112
        %v2305 = vpop.permute.xlu0 %2304
        %2306 = vrot.lane.b32.xlu0 %v1306, 112
        %v2307 = vpop.permute.xlu0 %2306
        %v2309 = vsel %vm1027, %v2293, 0
        %v2312 = vsel %vm1027, %v2295, 0
        %v2315 = vsel %vm1027, %v2297, 0
        %v2318 = vsel %vm1027, %v2299, 0
        %v2321 = vsel %vm1027, %v2301, 0
        %v2324 = vsel %vm1027, %v2303, 0
        %v2327 = vsel %vm1027, %v2305, 0
        %v2330 = vsel %vm1027, %v2307, 0
        %2332 = vmatpush.bf16.xpose.msra.mxu0 0
        %2333 = vmatpush.bf16.xpose.msra.mxu0 0
        %2334 = vmatpush.bf16.xpose.msra.mxu0 0
        %2335 = vmatpush.bf16.xpose.msra.mxu0 0
        %2336 = vmatpush.bf16.xpose.msra.mxu0 %v2330
        %2337 = vmatpush.bf16.xpose.msra.mxu0 %v2327
        %2338 = vmatpush.bf16.xpose.msra.mxu0 %v2324
        %2339 = vmatpush.bf16.xpose.msra.mxu0 %v2321
        %2340 = vmatmul.bf16.gmra.mxu0 %v2309
        %v2341 = vpop.f32.mrf.mxu0
        %v2342 = vadd.f32 %v883, %v2341
        %v2343 = vpop.f32.mrf.mxu0
        %v2344 = vadd.f32 %v884, %v2343
        %2345 = vmatmul.bf16.gmra.mxu0 %v2312
        %v2346 = vpop.f32.mrf.mxu0
        %v2347 = vadd.f32 %v885, %v2346
        %v2348 = vpop.f32.mrf.mxu0
        %v2349 = vadd.f32 %v886, %v2348
        %2350 = vmatmul.bf16.gmra.mxu0 %v2315
        %v2351 = vpop.f32.mrf.mxu0
        %v2352 = vadd.f32 %v887, %v2351
        %v2353 = vpop.f32.mrf.mxu0
        %v2354 = vadd.f32 %v888, %v2353
        %2355 = vmatmul.bf16.gmra.mxu0 %v2318
        %v2356 = vpop.f32.mrf.mxu0
        %v2357 = vadd.f32 %v889, %v2356
        %v2358 = vpop.f32.mrf.mxu0
        %v2359 = vadd.f32 %v890, %v2358
        %2360 = vdwg.mxu0
        %v2361 = vsel %vm1360, %v2135, -inf
        %2362 = vmax.xlane.f32.xlu0 %v2361
        %v2363 = vpop.xlane.xlu0 %2362
        %v2364 = vsel %vm1360, %v2137, -inf
        %2365 = vmax.xlane.f32.xlu0 %v2364
        %v2366 = vpop.xlane.xlu0 %2365
        %v2367 = vsel %vm1360, %v2140, -inf
        %2368 = vmax.xlane.f32.xlu0 %v2367
        %v2369 = vpop.xlane.xlu0 %2368
        %v2370 = vsel %vm1360, %v2142, -inf
        %2371 = vmax.xlane.f32.xlu0 %v2370
        %v2372 = vpop.xlane.xlu0 %2371
        %v2373 = vsel %vm1360, %v2145, -inf
        %2374 = vmax.xlane.f32.xlu0 %v2373
        %v2375 = vpop.xlane.xlu0 %2374
        %v2376 = vsel %vm1360, %v2147, -inf
        %2377 = vmax.xlane.f32.xlu0 %v2376
        %v2378 = vpop.xlane.xlu0 %2377
        %v2379 = vsel %vm1360, %v2150, -inf
        %2380 = vmax.xlane.f32.xlu0 %v2379
        %v2381 = vpop.xlane.xlu0 %2380
        %v2382 = vsel %vm1360, %v2152, -inf
        %2383 = vmax.xlane.f32.xlu0 %v2382
        %v2384 = vpop.xlane.xlu0 %2383
        %v2385 = vsel %vm1360, %v2204, -inf
        %2386 = vmax.xlane.f32.xlu0 %v2385
        %v2387 = vpop.xlane.xlu0 %2386
        %v2388 = vsel %vm1360, %v2206, -inf
        %2389 = vmax.xlane.f32.xlu0 %v2388
        %v2390 = vpop.xlane.xlu0 %2389
        %v2391 = vsel %vm1360, %v2209, -inf
        %2392 = vmax.xlane.f32.xlu0 %v2391
        %v2393 = vpop.xlane.xlu0 %2392
        %v2394 = vsel %vm1360, %v2211, -inf
        %2395 = vmax.xlane.f32.xlu0 %v2394
        %v2396 = vpop.xlane.xlu0 %2395
        %v2397 = vsel %vm1360, %v2214, -inf
        %2398 = vmax.xlane.f32.xlu0 %v2397
        %v2399 = vpop.xlane.xlu0 %2398
        %v2400 = vsel %vm1360, %v2216, -inf
        %2401 = vmax.xlane.f32.xlu0 %v2400
        %v2402 = vpop.xlane.xlu0 %2401
        %v2403 = vsel %vm1360, %v2219, -inf
        %2404 = vmax.xlane.f32.xlu0 %v2403
        %v2405 = vpop.xlane.xlu0 %2404
        %v2406 = vsel %vm1360, %v2221, -inf
        %2407 = vmax.xlane.f32.xlu0 %v2406
        %v2408 = vpop.xlane.xlu0 %2407
        %v2409 = vsel %vm1360, %v2273, -inf
        %2410 = vmax.xlane.f32.xlu0 %v2409
        %v2411 = vpop.xlane.xlu0 %2410
        %v2412 = vsel %vm1360, %v2275, -inf
        %2413 = vmax.xlane.f32.xlu0 %v2412
        %v2414 = vpop.xlane.xlu0 %2413
        %v2415 = vsel %vm1360, %v2278, -inf
        %2416 = vmax.xlane.f32.xlu0 %v2415
        %v2417 = vpop.xlane.xlu0 %2416
        %v2418 = vsel %vm1360, %v2280, -inf
        %2419 = vmax.xlane.f32.xlu0 %v2418
        %v2420 = vpop.xlane.xlu0 %2419
        %v2421 = vsel %vm1360, %v2283, -inf
        %2422 = vmax.xlane.f32.xlu0 %v2421
        %v2423 = vpop.xlane.xlu0 %2422
        %v2424 = vsel %vm1360, %v2285, -inf
        %2425 = vmax.xlane.f32.xlu0 %v2424
        %v2426 = vpop.xlane.xlu0 %2425
        %v2427 = vsel %vm1360, %v2288, -inf
        %2428 = vmax.xlane.f32.xlu0 %v2427
        %v2429 = vpop.xlane.xlu0 %2428
        %v2430 = vsel %vm1360, %v2290, -inf
        %2431 = vmax.xlane.f32.xlu0 %v2430
        %v2432 = vpop.xlane.xlu0 %2431
        %v2433 = vsel %vm1360, %v2342, -inf
        %2434 = vmax.xlane.f32.xlu0 %v2433
        %v2435 = vpop.xlane.xlu0 %2434
        %v2436 = vsel %vm1360, %v2344, -inf
        %2437 = vmax.xlane.f32.xlu0 %v2436
        %v2438 = vpop.xlane.xlu0 %2437
        %v2439 = vsel %vm1360, %v2347, -inf
        %2440 = vmax.xlane.f32.xlu0 %v2439
        %v2441 = vpop.xlane.xlu0 %2440
        %v2442 = vsel %vm1360, %v2349, -inf
        %2443 = vmax.xlane.f32.xlu0 %v2442
        %v2444 = vpop.xlane.xlu0 %2443
        %v2445 = vsel %vm1360, %v2352, -inf
        %2446 = vmax.xlane.f32.xlu0 %v2445
        %v2447 = vpop.xlane.xlu0 %2446
        %v2448 = vsel %vm1360, %v2354, -inf
        %2449 = vmax.xlane.f32.xlu0 %v2448
        %v2450 = vpop.xlane.xlu0 %2449
        %v2451 = vsel %vm1360, %v2357, -inf
        %2452 = vmax.xlane.f32.xlu0 %v2451
        %v2453 = vpop.xlane.xlu0 %2452
        %v2454 = vsel %vm1360, %v2359, -inf
        %2455 = vmax.xlane.f32.xlu0 %v2454
        %v2456 = vpop.xlane.xlu0 %2455
        %v2457 = vsub.f32 %v2135, %v2363
        %v2458 = vsub.f32 %v2137, %v2366
        %v2459 = vsub.f32 %v2140, %v2369
        %v2460 = vsub.f32 %v2142, %v2372
        %v2461 = vsub.f32 %v2145, %v2375
        %v2462 = vsub.f32 %v2147, %v2378
        %v2463 = vsub.f32 %v2150, %v2381
        %v2464 = vsub.f32 %v2152, %v2384
        %v2465 = vsub.f32 %v2204, %v2387
        %v2466 = vsub.f32 %v2206, %v2390
        %v2467 = vsub.f32 %v2209, %v2393
        %v2468 = vsub.f32 %v2211, %v2396
        %v2469 = vsub.f32 %v2214, %v2399
        %v2470 = vsub.f32 %v2216, %v2402
        %v2471 = vsub.f32 %v2219, %v2405
        %v2472 = vsub.f32 %v2221, %v2408
        %v2473 = vsub.f32 %v2273, %v2411
        %v2474 = vsub.f32 %v2275, %v2414
        %v2475 = vsub.f32 %v2278, %v2417
        %v2476 = vsub.f32 %v2280, %v2420
        %v2477 = vsub.f32 %v2283, %v2423
        %v2478 = vsub.f32 %v2285, %v2426
        %v2479 = vsub.f32 %v2288, %v2429
        %v2480 = vsub.f32 %v2290, %v2432
        %v2481 = vsub.f32 %v2342, %v2435
        %v2482 = vsub.f32 %v2344, %v2438
        %v2483 = vsub.f32 %v2347, %v2441
        %v2484 = vsub.f32 %v2349, %v2444
        %v2485 = vsub.f32 %v2352, %v2447
        %v2486 = vsub.f32 %v2354, %v2450
        %v2487 = vsub.f32 %v2357, %v2453
        %v2488 = vsub.f32 %v2359, %v2456
        %v2489 = vmul.f32 %v2457, 1.442695
        %v2490 = vpow.pop %v2489
        %v2491 = vmul.f32 %v2458, 1.442695
        %v2492 = vpow.pop %v2491
        %v2493 = vmul.f32 %v2459, 1.442695
        %v2494 = vpow.pop %v2493
        %v2495 = vmul.f32 %v2460, 1.442695
        %v2496 = vpow.pop %v2495
        %v2497 = vmul.f32 %v2461, 1.442695
        %v2498 = vpow.pop %v2497
        %v2499 = vmul.f32 %v2462, 1.442695
        %v2500 = vpow.pop %v2499
        %v2501 = vmul.f32 %v2463, 1.442695
        %v2502 = vpow.pop %v2501
        %v2503 = vmul.f32 %v2464, 1.442695
        %v2504 = vpow.pop %v2503
        %v2505 = vmul.f32 %v2465, 1.442695
        %v2506 = vpow.pop %v2505
        %v2507 = vmul.f32 %v2466, 1.442695
        %v2508 = vpow.pop %v2507
        %v2509 = vmul.f32 %v2467, 1.442695
        %v2510 = vpow.pop %v2509
        %v2511 = vmul.f32 %v2468, 1.442695
        %v2512 = vpow.pop %v2511
        %v2513 = vmul.f32 %v2469, 1.442695
        %v2514 = vpow.pop %v2513
        %v2515 = vmul.f32 %v2470, 1.442695
        %v2516 = vpow.pop %v2515
        %v2517 = vmul.f32 %v2471, 1.442695
        %v2518 = vpow.pop %v2517
        %v2519 = vmul.f32 %v2472, 1.442695
        %v2520 = vpow.pop %v2519
        %v2521 = vmul.f32 %v2473, 1.442695
        %v2522 = vpow.pop %v2521
        %v2523 = vmul.f32 %v2474, 1.442695
        %v2524 = vpow.pop %v2523
        %v2525 = vmul.f32 %v2475, 1.442695
        %v2526 = vpow.pop %v2525
        %v2527 = vmul.f32 %v2476, 1.442695
        %v2528 = vpow.pop %v2527
        %v2529 = vmul.f32 %v2477, 1.442695
        %v2530 = vpow.pop %v2529
        %v2531 = vmul.f32 %v2478, 1.442695
        %v2532 = vpow.pop %v2531
        %v2533 = vmul.f32 %v2479, 1.442695
        %v2534 = vpow.pop %v2533
        %v2535 = vmul.f32 %v2480, 1.442695
        %v2536 = vpow.pop %v2535
        %v2537 = vmul.f32 %v2481, 1.442695
        %v2538 = vpow.pop %v2537
        %v2539 = vmul.f32 %v2482, 1.442695
        %v2540 = vpow.pop %v2539
        %v2541 = vmul.f32 %v2483, 1.442695
        %v2542 = vpow.pop %v2541
        %v2543 = vmul.f32 %v2484, 1.442695
        %v2544 = vpow.pop %v2543
        %v2545 = vmul.f32 %v2485, 1.442695
        %v2546 = vpow.pop %v2545
        %v2547 = vmul.f32 %v2486, 1.442695
        %v2548 = vpow.pop %v2547
        %v2549 = vmul.f32 %v2487, 1.442695
        %v2550 = vpow.pop %v2549
        %v2551 = vmul.f32 %v2488, 1.442695
        %v2552 = vpow.pop %v2551
        %v2553 = vsel %vm1360, %v2490, 0.0
        %2554 = vadd.xlane.f32.xlu0 %v2553
        %v2555 = vpop.xlane.xlu0 %2554
        %v2556 = vsel %vm1360, %v2492, 0.0
        %2557 = vadd.xlane.f32.xlu0 %v2556
        %v2558 = vpop.xlane.xlu0 %2557
        %v2559 = vsel %vm1360, %v2494, 0.0
        %2560 = vadd.xlane.f32.xlu0 %v2559
        %v2561 = vpop.xlane.xlu0 %2560
        %v2562 = vsel %vm1360, %v2496, 0.0
        %2563 = vadd.xlane.f32.xlu0 %v2562
        %v2564 = vpop.xlane.xlu0 %2563
        %v2565 = vsel %vm1360, %v2498, 0.0
        %2566 = vadd.xlane.f32.xlu0 %v2565
        %v2567 = vpop.xlane.xlu0 %2566
        %v2568 = vsel %vm1360, %v2500, 0.0
        %2569 = vadd.xlane.f32.xlu0 %v2568
        %v2570 = vpop.xlane.xlu0 %2569
        %v2571 = vsel %vm1360, %v2502, 0.0
        %2572 = vadd.xlane.f32.xlu0 %v2571
        %v2573 = vpop.xlane.xlu0 %2572
        %v2574 = vsel %vm1360, %v2504, 0.0
        %2575 = vadd.xlane.f32.xlu0 %v2574
        %v2576 = vpop.xlane.xlu0 %2575
        %v2577 = vsel %vm1360, %v2506, 0.0
        %2578 = vadd.xlane.f32.xlu0 %v2577
        %v2579 = vpop.xlane.xlu0 %2578
        %v2580 = vsel %vm1360, %v2508, 0.0
        %2581 = vadd.xlane.f32.xlu0 %v2580
        %v2582 = vpop.xlane.xlu0 %2581
        %v2583 = vsel %vm1360, %v2510, 0.0
        %2584 = vadd.xlane.f32.xlu0 %v2583
        %v2585 = vpop.xlane.xlu0 %2584
        %v2586 = vsel %vm1360, %v2512, 0.0
        %2587 = vadd.xlane.f32.xlu0 %v2586
        %v2588 = vpop.xlane.xlu0 %2587
        %v2589 = vsel %vm1360, %v2514, 0.0
        %2590 = vadd.xlane.f32.xlu0 %v2589
        %v2591 = vpop.xlane.xlu0 %2590
        %v2592 = vsel %vm1360, %v2516, 0.0
        %2593 = vadd.xlane.f32.xlu0 %v2592
        %v2594 = vpop.xlane.xlu0 %2593
        %v2595 = vsel %vm1360, %v2518, 0.0
        %2596 = vadd.xlane.f32.xlu0 %v2595
        %v2597 = vpop.xlane.xlu0 %2596
        %v2598 = vsel %vm1360, %v2520, 0.0
        %2599 = vadd.xlane.f32.xlu0 %v2598
        %v2600 = vpop.xlane.xlu0 %2599
        %v2601 = vsel %vm1360, %v2522, 0.0
        %2602 = vadd.xlane.f32.xlu0 %v2601
        %v2603 = vpop.xlane.xlu0 %2602
        %v2604 = vsel %vm1360, %v2524, 0.0
        %2605 = vadd.xlane.f32.xlu0 %v2604
        %v2606 = vpop.xlane.xlu0 %2605
        %v2607 = vsel %vm1360, %v2526, 0.0
        %2608 = vadd.xlane.f32.xlu0 %v2607
        %v2609 = vpop.xlane.xlu0 %2608
        %v2610 = vsel %vm1360, %v2528, 0.0
        %2611 = vadd.xlane.f32.xlu0 %v2610
        %v2612 = vpop.xlane.xlu0 %2611
        %v2613 = vsel %vm1360, %v2530, 0.0
        %2614 = vadd.xlane.f32.xlu0 %v2613
        %v2615 = vpop.xlane.xlu0 %2614
        %v2616 = vsel %vm1360, %v2532, 0.0
        %2617 = vadd.xlane.f32.xlu0 %v2616
        %v2618 = vpop.xlane.xlu0 %2617
        %v2619 = vsel %vm1360, %v2534, 0.0
        %2620 = vadd.xlane.f32.xlu0 %v2619
        %v2621 = vpop.xlane.xlu0 %2620
        %v2622 = vsel %vm1360, %v2536, 0.0
        %2623 = vadd.xlane.f32.xlu0 %v2622
        %v2624 = vpop.xlane.xlu0 %2623
        %v2625 = vsel %vm1360, %v2538, 0.0
        %2626 = vadd.xlane.f32.xlu0 %v2625
        %v2627 = vpop.xlane.xlu0 %2626
        %v2628 = vsel %vm1360, %v2540, 0.0
        %2629 = vadd.xlane.f32.xlu0 %v2628
        %v2630 = vpop.xlane.xlu0 %2629
        %v2631 = vsel %vm1360, %v2542, 0.0
        %2632 = vadd.xlane.f32.xlu0 %v2631
        %v2633 = vpop.xlane.xlu0 %2632
        %v2634 = vsel %vm1360, %v2544, 0.0
        %2635 = vadd.xlane.f32.xlu0 %v2634
        %v2636 = vpop.xlane.xlu0 %2635
        %v2637 = vsel %vm1360, %v2546, 0.0
        %2638 = vadd.xlane.f32.xlu0 %v2637
        %v2639 = vpop.xlane.xlu0 %2638
        %v2640 = vsel %vm1360, %v2548, 0.0
        %2641 = vadd.xlane.f32.xlu0 %v2640
        %v2642 = vpop.xlane.xlu0 %2641
        %v2643 = vsel %vm1360, %v2550, 0.0
        %2644 = vadd.xlane.f32.xlu0 %v2643
        %v2645 = vpop.xlane.xlu0 %2644
        %v2646 = vsel %vm1360, %v2552, 0.0
        %2647 = vadd.xlane.f32.xlu0 %v2646
        %v2648 = vpop.xlane.xlu0 %2647
        %v2649 = vpack.c.bf16 %v2490, %v2490
        %v2650 = vpack.c.bf16 %v2492, %v2492
        %v2651 = vpack.c.bf16 %v2494, %v2494
        %v2652 = vpack.c.bf16 %v2496, %v2496
        %v2653 = vpack.c.bf16 %v2498, %v2498
        %v2654 = vpack.c.bf16 %v2500, %v2500
        %v2655 = vpack.c.bf16 %v2502, %v2502
        %v2656 = vpack.c.bf16 %v2504, %v2504
        %v2657 = vpack.c.bf16 %v2506, %v2506
        %v2658 = vpack.c.bf16 %v2508, %v2508
        %v2659 = vpack.c.bf16 %v2510, %v2510
        %v2660 = vpack.c.bf16 %v2512, %v2512
        %v2661 = vpack.c.bf16 %v2514, %v2514
        %v2662 = vpack.c.bf16 %v2516, %v2516
        %v2663 = vpack.c.bf16 %v2518, %v2518
        %v2664 = vpack.c.bf16 %v2520, %v2520
        %v2665 = vpack.c.bf16 %v2522, %v2522
        %v2666 = vpack.c.bf16 %v2524, %v2524
        %v2667 = vpack.c.bf16 %v2526, %v2526
        %v2668 = vpack.c.bf16 %v2528, %v2528
        %v2669 = vpack.c.bf16 %v2530, %v2530
        %v2670 = vpack.c.bf16 %v2532, %v2532
        %v2671 = vpack.c.bf16 %v2534, %v2534
        %v2672 = vpack.c.bf16 %v2536, %v2536
        %v2673 = vpack.c.bf16 %v2538, %v2538
        %v2674 = vpack.c.bf16 %v2540, %v2540
        %v2675 = vpack.c.bf16 %v2542, %v2542
        %v2676 = vpack.c.bf16 %v2544, %v2544
        %v2677 = vpack.c.bf16 %v2546, %v2546
        %v2678 = vpack.c.bf16 %v2548, %v2548
        %v2679 = vpack.c.bf16 %v2550, %v2550
        %v2680 = vpack.c.bf16 %v2552, %v2552
        %v2689 = vunpack.c.l.b16 %v2649
        %v2690 = vunpack.c.l.b16 %v2650
        %v2691 = vunpack.c.l.b16 %v2651
        %v2692 = vunpack.c.l.b16 %v2652
        %v2693 = vunpack.c.l.b16 %v2653
        %v2694 = vunpack.c.l.b16 %v2654
        %v2695 = vunpack.c.l.b16 %v2655
        %v2696 = vunpack.c.l.b16 %v2656
        %v2697 = vpack.c.b16 %v2690, %v2689
        %v2698 = vpack.c.b16 %v2692, %v2691
        %v2699 = vpack.c.b16 %v2694, %v2693
        %v2700 = vpack.c.b16 %v2696, %v2695
        %2701 = vrot.lane.b32.xlu0 %v1717, 112
        %v2702 = vpop.permute.xlu0 %2701
        %2703 = vrot.lane.b32.xlu0 %v1718, 112
        %v2704 = vpop.permute.xlu0 %2703
        %2705 = vrot.lane.b32.xlu0 %v1719, 112
        %v2706 = vpop.permute.xlu0 %2705
        %2707 = vrot.lane.b32.xlu0 %v1720, 112
        %v2708 = vpop.permute.xlu0 %2707
        %v2714 = vsel %vm1360, %v2697, 0
        %v2717 = vsel %vm1360, %v2698, 0
        %v2720 = vsel %vm1360, %v2699, 0
        %v2723 = vsel %vm1360, %v2700, 0
        %2725 = vmatpush.bf16.msra.mxu0 0
        %2726 = vmatpush.bf16.msra.mxu0 0
        %2727 = vmatpush.bf16.msra.mxu0 0
        %2728 = vmatpush.bf16.msra.mxu0 0
        %2729 = vmatpush.bf16.msra.mxu0 %v2708
        %2730 = vmatpush.bf16.msra.mxu0 %v2706
        %2731 = vmatpush.bf16.msra.mxu0 %v2704
        %2732 = vmatpush.bf16.msra.mxu0 %v2702
        %2733 = vmatmul.bf16.gmra.mxu0 %v2714
        %v2734 = vpop.f32.mrf.mxu0
        %v2735 = vadd.f32 0.0, %v2734
        %v2736 = vpop.f32.mrf.mxu0
        %v2737 = vadd.f32 0.0, %v2736
        %2738 = vmatmul.bf16.gmra.mxu0 %v2717
        %v2739 = vpop.f32.mrf.mxu0
        %v2740 = vadd.f32 0.0, %v2739
        %v2741 = vpop.f32.mrf.mxu0
        %v2742 = vadd.f32 0.0, %v2741
        %2743 = vmatmul.bf16.gmra.mxu0 %v2720
        %v2744 = vpop.f32.mrf.mxu0
        %v2745 = vadd.f32 0.0, %v2744
        %v2746 = vpop.f32.mrf.mxu0
        %v2747 = vadd.f32 0.0, %v2746
        %2748 = vmatmul.bf16.gmra.mxu0 %v2723
        %v2749 = vpop.f32.mrf.mxu0
        %v2750 = vadd.f32 0.0, %v2749
        %v2751 = vpop.f32.mrf.mxu0
        %v2752 = vadd.f32 0.0, %v2751
        %2753 = vdwg.mxu0
        %v2762 = vunpack.c.l.b16 %v2657
        %v2763 = vunpack.c.l.b16 %v2658
        %v2764 = vunpack.c.l.b16 %v2659
        %v2765 = vunpack.c.l.b16 %v2660
        %v2766 = vunpack.c.l.b16 %v2661
        %v2767 = vunpack.c.l.b16 %v2662
        %v2768 = vunpack.c.l.b16 %v2663
        %v2769 = vunpack.c.l.b16 %v2664
        %v2770 = vpack.c.b16 %v2763, %v2762
        %v2771 = vpack.c.b16 %v2765, %v2764
        %v2772 = vpack.c.b16 %v2767, %v2766
        %v2773 = vpack.c.b16 %v2769, %v2768
        %2774 = vrot.lane.b32.xlu0 %v1802, 112
        %v2775 = vpop.permute.xlu0 %2774
        %2776 = vrot.lane.b32.xlu0 %v1803, 112
        %v2777 = vpop.permute.xlu0 %2776
        %2778 = vrot.lane.b32.xlu0 %v1804, 112
        %v2779 = vpop.permute.xlu0 %2778
        %2780 = vrot.lane.b32.xlu0 %v1805, 112
        %v2781 = vpop.permute.xlu0 %2780
        %v2787 = vsel %vm1360, %v2770, 0
        %v2790 = vsel %vm1360, %v2771, 0
        %v2793 = vsel %vm1360, %v2772, 0
        %v2796 = vsel %vm1360, %v2773, 0
        %2798 = vmatpush.bf16.msra.mxu0 0
        %2799 = vmatpush.bf16.msra.mxu0 0
        %2800 = vmatpush.bf16.msra.mxu0 0
        %2801 = vmatpush.bf16.msra.mxu0 0
        %2802 = vmatpush.bf16.msra.mxu0 %v2781
        %2803 = vmatpush.bf16.msra.mxu0 %v2779
        %2804 = vmatpush.bf16.msra.mxu0 %v2777
        %2805 = vmatpush.bf16.msra.mxu0 %v2775
        %2806 = vmatmul.bf16.gmra.mxu0 %v2787
        %v2807 = vpop.f32.mrf.mxu0
        %v2808 = vadd.f32 0.0, %v2807
        %v2809 = vpop.f32.mrf.mxu0
        %v2810 = vadd.f32 0.0, %v2809
        %2811 = vmatmul.bf16.gmra.mxu0 %v2790
        %v2812 = vpop.f32.mrf.mxu0
        %v2813 = vadd.f32 0.0, %v2812
        %v2814 = vpop.f32.mrf.mxu0
        %v2815 = vadd.f32 0.0, %v2814
        %2816 = vmatmul.bf16.gmra.mxu0 %v2793
        %v2817 = vpop.f32.mrf.mxu0
        %v2818 = vadd.f32 0.0, %v2817
        %v2819 = vpop.f32.mrf.mxu0
        %v2820 = vadd.f32 0.0, %v2819
        %2821 = vmatmul.bf16.gmra.mxu0 %v2796
        %v2822 = vpop.f32.mrf.mxu0
        %v2823 = vadd.f32 0.0, %v2822
        %v2824 = vpop.f32.mrf.mxu0
        %v2825 = vadd.f32 0.0, %v2824
        %2826 = vdwg.mxu0
        %v2835 = vunpack.c.l.b16 %v2665
        %v2836 = vunpack.c.l.b16 %v2666
        %v2837 = vunpack.c.l.b16 %v2667
        %v2838 = vunpack.c.l.b16 %v2668
        %v2839 = vunpack.c.l.b16 %v2669
        %v2840 = vunpack.c.l.b16 %v2670
        %v2841 = vunpack.c.l.b16 %v2671
        %v2842 = vunpack.c.l.b16 %v2672
        %v2843 = vpack.c.b16 %v2836, %v2835
        %v2844 = vpack.c.b16 %v2838, %v2837
        %v2845 = vpack.c.b16 %v2840, %v2839
        %v2846 = vpack.c.b16 %v2842, %v2841
        %2847 = vrot.lane.b32.xlu0 %v1887, 112
        %v2848 = vpop.permute.xlu0 %2847
        %2849 = vrot.lane.b32.xlu0 %v1888, 112
        %v2850 = vpop.permute.xlu0 %2849
        %2851 = vrot.lane.b32.xlu0 %v1889, 112
        %v2852 = vpop.permute.xlu0 %2851
        %2853 = vrot.lane.b32.xlu0 %v1890, 112
        %v2854 = vpop.permute.xlu0 %2853
        %v2860 = vsel %vm1360, %v2843, 0
        %v2863 = vsel %vm1360, %v2844, 0
        %v2866 = vsel %vm1360, %v2845, 0
        %v2869 = vsel %vm1360, %v2846, 0
        %2871 = vmatpush.bf16.msra.mxu0 0
        %2872 = vmatpush.bf16.msra.mxu0 0
        %2873 = vmatpush.bf16.msra.mxu0 0
        %2874 = vmatpush.bf16.msra.mxu0 0
        %2875 = vmatpush.bf16.msra.mxu0 %v2854
        %2876 = vmatpush.bf16.msra.mxu0 %v2852
        %2877 = vmatpush.bf16.msra.mxu0 %v2850
        %2878 = vmatpush.bf16.msra.mxu0 %v2848
        %2879 = vmatmul.bf16.gmra.mxu0 %v2860
        %v2880 = vpop.f32.mrf.mxu0
        %v2881 = vadd.f32 0.0, %v2880
        %v2882 = vpop.f32.mrf.mxu0
        %v2883 = vadd.f32 0.0, %v2882
        %2884 = vmatmul.bf16.gmra.mxu0 %v2863
        %v2885 = vpop.f32.mrf.mxu0
        %v2886 = vadd.f32 0.0, %v2885
        %v2887 = vpop.f32.mrf.mxu0
        %v2888 = vadd.f32 0.0, %v2887
        %2889 = vmatmul.bf16.gmra.mxu0 %v2866
        %v2890 = vpop.f32.mrf.mxu0
        %v2891 = vadd.f32 0.0, %v2890
        %v2892 = vpop.f32.mrf.mxu0
        %v2893 = vadd.f32 0.0, %v2892
        %2894 = vmatmul.bf16.gmra.mxu0 %v2869
        %v2895 = vpop.f32.mrf.mxu0
        %v2896 = vadd.f32 0.0, %v2895
        %v2897 = vpop.f32.mrf.mxu0
        %v2898 = vadd.f32 0.0, %v2897
        %2899 = vdwg.mxu0
        %v2908 = vunpack.c.l.b16 %v2673
        %v2909 = vunpack.c.l.b16 %v2674
        %v2910 = vunpack.c.l.b16 %v2675
        %v2911 = vunpack.c.l.b16 %v2676
        %v2912 = vunpack.c.l.b16 %v2677
        %v2913 = vunpack.c.l.b16 %v2678
        %v2914 = vunpack.c.l.b16 %v2679
        %v2915 = vunpack.c.l.b16 %v2680
        %v2916 = vpack.c.b16 %v2909, %v2908
        %v2917 = vpack.c.b16 %v2911, %v2910
        %v2918 = vpack.c.b16 %v2913, %v2912
        %v2919 = vpack.c.b16 %v2915, %v2914
        %2920 = vrot.lane.b32.xlu0 %v1972, 112
        %v2921 = vpop.permute.xlu0 %2920
        %2922 = vrot.lane.b32.xlu0 %v1973, 112
        %v2923 = vpop.permute.xlu0 %2922
        %2924 = vrot.lane.b32.xlu0 %v1974, 112
        %v2925 = vpop.permute.xlu0 %2924
        %2926 = vrot.lane.b32.xlu0 %v1975, 112
        %v2927 = vpop.permute.xlu0 %2926
        %v2933 = vsel %vm1360, %v2916, 0
        %v2936 = vsel %vm1360, %v2917, 0
        %v2939 = vsel %vm1360, %v2918, 0
        %v2942 = vsel %vm1360, %v2919, 0
        %2944 = vmatpush.bf16.msra.mxu0 0
        %2945 = vmatpush.bf16.msra.mxu0 0
        %2946 = vmatpush.bf16.msra.mxu0 0
        %2947 = vmatpush.bf16.msra.mxu0 0
        %2948 = vmatpush.bf16.msra.mxu0 %v2927
        %2949 = vmatpush.bf16.msra.mxu0 %v2925
        %2950 = vmatpush.bf16.msra.mxu0 %v2923
        %2951 = vmatpush.bf16.msra.mxu0 %v2921
        %2952 = vmatmul.bf16.gmra.mxu0 %v2933
        %v2953 = vpop.f32.mrf.mxu0
        %v2954 = vadd.f32 0.0, %v2953
        %v2955 = vpop.f32.mrf.mxu0
        %v2956 = vadd.f32 0.0, %v2955
        %2957 = vmatmul.bf16.gmra.mxu0 %v2936
        %v2958 = vpop.f32.mrf.mxu0
        %v2959 = vadd.f32 0.0, %v2958
        %v2960 = vpop.f32.mrf.mxu0
        %v2961 = vadd.f32 0.0, %v2960
        %2962 = vmatmul.bf16.gmra.mxu0 %v2939
        %v2963 = vpop.f32.mrf.mxu0
        %v2964 = vadd.f32 0.0, %v2963
        %v2965 = vpop.f32.mrf.mxu0
        %v2966 = vadd.f32 0.0, %v2965
        %2967 = vmatmul.bf16.gmra.mxu0 %v2942
        %v2968 = vpop.f32.mrf.mxu0
        %v2969 = vadd.f32 0.0, %v2968
        %v2970 = vpop.f32.mrf.mxu0
        %v2971 = vadd.f32 0.0, %v2970
        %2972 = vdwg.mxu0
        %v2973 = vrcp.pop %v2555
        %v2974 = vrcp.pop %v2558
        %v2975 = vrcp.pop %v2561
        %v2976 = vrcp.pop %v2564
        %v2977 = vrcp.pop %v2567
        %v2978 = vrcp.pop %v2570
        %v2979 = vrcp.pop %v2573
        %v2980 = vrcp.pop %v2576
        %v2981 = vrcp.pop %v2579
        %v2982 = vrcp.pop %v2582
        %v2983 = vrcp.pop %v2585
        %v2984 = vrcp.pop %v2588
        %v2985 = vrcp.pop %v2591
        %v2986 = vrcp.pop %v2594
        %v2987 = vrcp.pop %v2597
        %v2988 = vrcp.pop %v2600
        %v2989 = vrcp.pop %v2603
        %v2990 = vrcp.pop %v2606
        %v2991 = vrcp.pop %v2609
        %v2992 = vrcp.pop %v2612
        %v2993 = vrcp.pop %v2615
        %v2994 = vrcp.pop %v2618
        %v2995 = vrcp.pop %v2621
        %v2996 = vrcp.pop %v2624
        %v2997 = vrcp.pop %v2627
        %v2998 = vrcp.pop %v2630
        %v2999 = vrcp.pop %v2633
        %v3000 = vrcp.pop %v2636
        %v3001 = vrcp.pop %v2639
        %v3002 = vrcp.pop %v2642
        %v3003 = vrcp.pop %v2645
        %v3004 = vrcp.pop %v2648
        %v3005 = vmul.f32 %v2735, %v2973
        %v3006 = vmul.f32 %v2737, %v2974
        %v3007 = vmul.f32 %v2740, %v2975
        %v3008 = vmul.f32 %v2742, %v2976
        %v3009 = vmul.f32 %v2745, %v2977
        %v3010 = vmul.f32 %v2747, %v2978
        %v3011 = vmul.f32 %v2750, %v2979
        %v3012 = vmul.f32 %v2752, %v2980
        %v3013 = vmul.f32 %v2808, %v2981
        %v3014 = vmul.f32 %v2810, %v2982
        %v3015 = vmul.f32 %v2813, %v2983
        %v3016 = vmul.f32 %v2815, %v2984
        %v3017 = vmul.f32 %v2818, %v2985
        %v3018 = vmul.f32 %v2820, %v2986
        %v3019 = vmul.f32 %v2823, %v2987
        %v3020 = vmul.f32 %v2825, %v2988
        %v3021 = vmul.f32 %v2881, %v2989
        %v3022 = vmul.f32 %v2883, %v2990
        %v3023 = vmul.f32 %v2886, %v2991
        %v3024 = vmul.f32 %v2888, %v2992
        %v3025 = vmul.f32 %v2891, %v2993
        %v3026 = vmul.f32 %v2893, %v2994
        %v3027 = vmul.f32 %v2896, %v2995
        %v3028 = vmul.f32 %v2898, %v2996
        %v3029 = vmul.f32 %v2954, %v2997
        %v3030 = vmul.f32 %v2956, %v2998
        %v3031 = vmul.f32 %v2959, %v2999
        %v3032 = vmul.f32 %v2961, %v3000
        %v3033 = vmul.f32 %v2964, %v3001
        %v3034 = vmul.f32 %v2966, %v3002
        %v3035 = vmul.f32 %v2969, %v3003
        %v3036 = vmul.f32 %v2971, %v3004
        %3069 = vrot.lane.b32.xlu0 %v3005, 16
        %v3070 = vpop.permute.xlu0 %3069
        %3071 = vrot.lane.b32.xlu0 %v3006, 16
        %v3072 = vpop.permute.xlu0 %3071
        %3073 = vrot.lane.b32.xlu0 %v3007, 16
        %v3074 = vpop.permute.xlu0 %3073
        %3075 = vrot.lane.b32.xlu0 %v3008, 16
        %v3076 = vpop.permute.xlu0 %3075
        %3077 = vrot.lane.b32.xlu0 %v3009, 16
        %v3078 = vpop.permute.xlu0 %3077
        %3079 = vrot.lane.b32.xlu0 %v3010, 16
        %v3080 = vpop.permute.xlu0 %3079
        %3081 = vrot.lane.b32.xlu0 %v3011, 16
        %v3082 = vpop.permute.xlu0 %3081
        %3083 = vrot.lane.b32.xlu0 %v3012, 16
        %v3084 = vpop.permute.xlu0 %3083
        %3085 = vrot.lane.b32.xlu0 %v3013, 16
        %v3086 = vpop.permute.xlu0 %3085
        %3087 = vrot.lane.b32.xlu0 %v3014, 16
        %v3088 = vpop.permute.xlu0 %3087
        %3089 = vrot.lane.b32.xlu0 %v3015, 16
        %v3090 = vpop.permute.xlu0 %3089
        %3091 = vrot.lane.b32.xlu0 %v3016, 16
        %v3092 = vpop.permute.xlu0 %3091
        %3093 = vrot.lane.b32.xlu0 %v3017, 16
        %v3094 = vpop.permute.xlu0 %3093
        %3095 = vrot.lane.b32.xlu0 %v3018, 16
        %v3096 = vpop.permute.xlu0 %3095
        %3097 = vrot.lane.b32.xlu0 %v3019, 16
        %v3098 = vpop.permute.xlu0 %3097
        %3099 = vrot.lane.b32.xlu0 %v3020, 16
        %v3100 = vpop.permute.xlu0 %3099
        %3101 = vrot.lane.b32.xlu0 %v3021, 16
        %v3102 = vpop.permute.xlu0 %3101
        %3103 = vrot.lane.b32.xlu0 %v3022, 16
        %v3104 = vpop.permute.xlu0 %3103
        %3105 = vrot.lane.b32.xlu0 %v3023, 16
        %v3106 = vpop.permute.xlu0 %3105
        %3107 = vrot.lane.b32.xlu0 %v3024, 16
        %v3108 = vpop.permute.xlu0 %3107
        %3109 = vrot.lane.b32.xlu0 %v3025, 16
        %v3110 = vpop.permute.xlu0 %3109
        %3111 = vrot.lane.b32.xlu0 %v3026, 16
        %v3112 = vpop.permute.xlu0 %3111
        %3113 = vrot.lane.b32.xlu0 %v3027, 16
        %v3114 = vpop.permute.xlu0 %3113
        %3115 = vrot.lane.b32.xlu0 %v3028, 16
        %v3116 = vpop.permute.xlu0 %3115
        %3117 = vrot.lane.b32.xlu0 %v3029, 16
        %v3118 = vpop.permute.xlu0 %3117
        %3119 = vrot.lane.b32.xlu0 %v3030, 16
        %v3120 = vpop.permute.xlu0 %3119
        %3121 = vrot.lane.b32.xlu0 %v3031, 16
        %v3122 = vpop.permute.xlu0 %3121
        %3123 = vrot.lane.b32.xlu0 %v3032, 16
        %v3124 = vpop.permute.xlu0 %3123
        %3125 = vrot.lane.b32.xlu0 %v3033, 16
        %v3126 = vpop.permute.xlu0 %3125
        %3127 = vrot.lane.b32.xlu0 %v3034, 16
        %v3128 = vpop.permute.xlu0 %3127
        %3129 = vrot.lane.b32.xlu0 %v3035, 16
        %v3130 = vpop.permute.xlu0 %3129
        %3131 = vrot.lane.b32.xlu0 %v3036, 16
        %v3132 = vpop.permute.xlu0 %3131
        %v3165 = vsel %vm1027, %v2053, %v3070
        %v3166 = vsel %vm1027, %v2054, %v3072
        %v3167 = vsel %vm1027, %v2055, %v3074
        %v3168 = vsel %vm1027, %v2056, %v3076
        %v3169 = vsel %vm1027, %v2057, %v3078
        %v3170 = vsel %vm1027, %v2058, %v3080
        %v3171 = vsel %vm1027, %v2059, %v3082
        %v3172 = vsel %vm1027, %v2060, %v3084
        %v3173 = vsel %vm1027, %v2061, %v3086
        %v3174 = vsel %vm1027, %v2062, %v3088
        %v3175 = vsel %vm1027, %v2063, %v3090
        %v3176 = vsel %vm1027, %v2064, %v3092
        %v3177 = vsel %vm1027, %v2065, %v3094
        %v3178 = vsel %vm1027, %v2066, %v3096
        %v3179 = vsel %vm1027, %v2067, %v3098
        %v3180 = vsel %vm1027, %v2068, %v3100
        %v3181 = vsel %vm1027, %v2069, %v3102
        %v3182 = vsel %vm1027, %v2070, %v3104
        %v3183 = vsel %vm1027, %v2071, %v3106
        %v3184 = vsel %vm1027, %v2072, %v3108
        %v3185 = vsel %vm1027, %v2073, %v3110
        %v3186 = vsel %vm1027, %v2074, %v3112
        %v3187 = vsel %vm1027, %v2075, %v3114
        %v3188 = vsel %vm1027, %v2076, %v3116
        %v3189 = vsel %vm1027, %v2077, %v3118
        %v3190 = vsel %vm1027, %v2078, %v3120
        %v3191 = vsel %vm1027, %v2079, %v3122
        %v3192 = vsel %vm1027, %v2080, %v3124
        %v3193 = vsel %vm1027, %v2081, %v3126
        %v3194 = vsel %vm1027, %v2082, %v3128
        %v3195 = vsel %vm1027, %v2083, %v3130
        %v3196 = vsel %vm1027, %v2084, %v3132
        %vm3197 = vcmask 261120
        %3198 = vst.msk [vmem:[%s741] sm:$0xff] %vm3197, %v3165
        %3199 = vst.msk [vmem:[%s741 + $0x8] sm:$0xff] %vm3197, %v3166
        %3200 = vst.msk [vmem:[%s741 + $0x10] sm:$0xff] %vm3197, %v3167
        %3201 = vst.msk [vmem:[%s741 + $0x18] sm:$0xff] %vm3197, %v3168
        %3202 = vst.msk [vmem:[%s741 + $0x20] sm:$0xff] %vm3197, %v3169
        %3203 = vst.msk [vmem:[%s741 + $0x28] sm:$0xff] %vm3197, %v3170
        %3204 = vst.msk [vmem:[%s741 + $0x30] sm:$0xff] %vm3197, %v3171
        %3205 = vst.msk [vmem:[%s741 + $0x38] sm:$0xff] %vm3197, %v3172
        %3206 = vst.msk [vmem:[%s741 + $0x40] sm:$0xff] %vm3197, %v3173
        %3207 = vst.msk [vmem:[%s741 + $0x48] sm:$0xff] %vm3197, %v3174
        %3208 = vst.msk [vmem:[%s741 + $0x50] sm:$0xff] %vm3197, %v3175
        %3209 = vst.msk [vmem:[%s741 + $0x58] sm:$0xff] %vm3197, %v3176
        %3210 = vst.msk [vmem:[%s741 + $0x60] sm:$0xff] %vm3197, %v3177
        %3211 = vst.msk [vmem:[%s741 + $0x68] sm:$0xff] %vm3197, %v3178
        %3212 = vst.msk [vmem:[%s741 + $0x70] sm:$0xff] %vm3197, %v3179
        %3213 = vst.msk [vmem:[%s741 + $0x78] sm:$0xff] %vm3197, %v3180
        %3214 = vst.msk [vmem:[%s741 + $0x80] sm:$0xff] %vm3197, %v3181
        %3215 = vst.msk [vmem:[%s741 + $0x88] sm:$0xff] %vm3197, %v3182
        %3216 = vst.msk [vmem:[%s741 + $0x90] sm:$0xff] %vm3197, %v3183
        %3217 = vst.msk [vmem:[%s741 + $0x98] sm:$0xff] %vm3197, %v3184
        %3218 = vst.msk [vmem:[%s741 + $0xa0] sm:$0xff] %vm3197, %v3185
        %3219 = vst.msk [vmem:[%s741 + $0xa8] sm:$0xff] %vm3197, %v3186
        %3220 = vst.msk [vmem:[%s741 + $0xb0] sm:$0xff] %vm3197, %v3187
        %3221 = vst.msk [vmem:[%s741 + $0xb8] sm:$0xff] %vm3197, %v3188
        %3222 = vst.msk [vmem:[%s741 + $0xc0] sm:$0xff] %vm3197, %v3189
        %3223 = vst.msk [vmem:[%s741 + $0xc8] sm:$0xff] %vm3197, %v3190
        %3224 = vst.msk [vmem:[%s741 + $0xd0] sm:$0xff] %vm3197, %v3191
        %3225 = vst.msk [vmem:[%s741 + $0xd8] sm:$0xff] %vm3197, %v3192
        %3226 = vst.msk [vmem:[%s741 + $0xe0] sm:$0xff] %vm3197, %v3193
        %3227 = vst.msk [vmem:[%s741 + $0xe8] sm:$0xff] %vm3197, %v3194
        %3228 = vst.msk [vmem:[%s741 + $0xf0] sm:$0xff] %vm3197, %v3195
        %3229 = vst.msk [vmem:[%s741 + $0xf8] sm:$0xff] %vm3197, %v3196
        %s3230 = sand.u32 %s145, 1
        %s3231 = scalar_lea.sflag [#allocation6], %s3230
        %s3232 = sand.u32 %s145, 1
        %s3233 = smul.addr %s3232, 256
        %s3234 = scalar_lea.vmem [#allocation5], %s3233
        // Predicated region
        $region151: #{a_call__.1} parent=137 // pred_check
          %p3235 = pneg %p155
        $region152: #{a_call__.1} parent=137 // pred_check_branch
          %3237 = sbr.rel (%p3235) target = $region154
        $region153: #{a_call__.1} parent=137 // pred_region
          %s3238 = smul.u32 4, %s22
          %3240 = vsyncadd %s3231, 0
          %s3241 = smul.addr %s3238, 16
          %s3242 = sadd.s32 %s23, %s3241
          %s3243 = smul.addr %s3242, 8
          %s3244 = scalar_lea.hbm %s4, %s3243
          %s3245 = sshll.u32 %s3234, 4
          %s3246 = int_to_ptr.vmem [resolvable:$true] %s3245
          %s3247 = sshll.u32 %s3244, 4
          %s3248 = int_to_ptr.hbm [resolvable:$true] %s3247
          %3253 = dma.vmem_to_hbm [thread:$0]  %s3246, 4096, %s3248, %s3231, 128, 256, 8
        $region154: #{a_call__.1} parent=137 // pred_fallthru
          _
      $region138: #{a_call__.1} parent=5 // pred_fallthru
        _
      %p3254 = scmp.le.s32.totalorder 2, %s13
      // Predicated region
      $region155: #{a_call__.1} parent=5 // pred_check
        %p3255 = pneg %p3254
      $region156: #{a_call__.1} parent=5 // pred_check_branch
        %3257 = sbr.rel (%p3255) target = $region158
      $region157: #{a_call__.1} parent=5 // pred_region
        %s3258 = ssub.s32 %s13, 2
        // Predicated region
        $region159: #{a_call__.1} parent=157 // pred_check
          %p3259 = pneg %p161
        $region160: #{a_call__.1} parent=157 // pred_check_branch
          %3261 = sbr.rel (%p3259) target = $region162
        $region161: #{a_call__.1} parent=157 // pred_region
          %s3262 = sand.u32 %s146, 1
          %s3263 = scalar_lea.sflag [#allocation6], %s3262
          %s3264 = sand.u32 %s146, 1
          %s3265 = smul.addr %s3264, 256
          %s3266 = scalar_lea.vmem [#allocation5], %s3265
          %3268 = dma.done %s3263, 4096
        $region162: #{a_call__.1} parent=157 // pred_fallthru
          _
      $region158: #{a_call__.1} parent=5 // pred_fallthru
        _
    $region6: #{a_call__.1} parent=1 // loop_footer
      %s17 = sadd.s32 1, %s13
    $region7: #{a_call__.1} parent=1 // loop_footer_branch
      %12 = sbr.rel target = $region3
    $region8: #{a_call__.1} parent=1 // loop_exit
      _
    %3269 = vsyncpa [#allocation6], 1
    %s3270 = scalar_lea.sflag [#allocation6], 1
    %3271 = vsyncpa %s3270, 1

</llo_original>
